<compile_context>
chip_gen: v7x
topology: tpu7x:2x2x1
jax: 0.10.0
libtpu: 0.0.40
codegen_flags: <defaults>
</compile_context>

<pallas_src>
import jax
import jax.numpy as jnp
from jax.experimental import pallas as pl
from jax.experimental.pallas import tpu as pltpu


def _pointnet_kernel(x_ref,
                     w1_ref, b1_ref,
                     w2_ref, b2_ref,
                     w3_ref, b3_ref,
                     w4_ref,
                     local_ref, gmax_ref):
    """One grid step == one batch element x one TN-point tile (channels-first).

    x_ref     : (C, TN)       input points, f32 (points on the lane axis)
    wK_ref    : (C_out, C_in) BN-scale-folded conv weights (w1 f32, w2..w4 bf16)
    bK_ref    : (C_out, 1)    fused biases (f32); b4 is applied in the wrapper
    local_ref : (64, TN)      local_features_2 (layer-2 activations)
    gmax_ref  : (1024, 1)     running max of the RAW layer-4 matmul output,
                              resident across the trailing 'arbitrary' N axis
    """
    C, TN = x_ref.shape

    # ---- layer 1: K = C (tiny) -> rank-1 VPU FMAs in f32, skip the MXU ------
    x = x_ref[...]                                      # (C, TN) f32
    w1 = w1_ref[...]                                    # (64, C) f32
    y1 = w1[:, 0:1] * x[0:1, :]                         # (64, TN)
    for c in range(1, C):                               # static unroll (C small)
        y1 = y1 + w1[:, c:c + 1] * x[c:c + 1, :]
    h1 = jnp.maximum(y1 + b1_ref[...], 0.0)             # (64, TN) f32

    # ---- layers 2..4: bf16 MXU matmuls, f32 accumulation ---------------------
    def mxu(w_ref, h):
        return jnp.dot(w_ref[...], h.astype(jnp.bfloat16),
                       preferred_element_type=jnp.float32)

    h2 = jnp.maximum(mxu(w2_ref, h1) + b2_ref[...], 0.0)     # (64, TN)
    h3 = jnp.maximum(mxu(w3_ref, h2) + b3_ref[...], 0.0)     # (128, TN)
    # TODO(synk): an int8 (v5e/v6e) or fp8 (v7x) w4 path could lift the K=128
    # half-depth MXU ceiling on ~91% of the FLOPs; kept bf16 here for accuracy.
    y4 = mxu(w4_ref, h3)                                      # (1024, TN) raw

    local_ref[...] = h2.astype(local_ref.dtype)

    # Per-batch-element max over this tile's points (lane reduce) on the RAW
    # matmul output; bias + ReLU are applied once in the wrapper because
    # max_n relu(y_n + b) == relu(max_n y_n + b).
    tile_max = jnp.max(y4, axis=1, keepdims=True)             # (1024, 1)

    ni = pl.program_id(2)

    @pl.when(ni == 0)
    def _():
        gmax_ref[...] = tile_max

    @pl.when(ni > 0)
    def _():
        gmax_ref[...] = jnp.maximum(gmax_ref[...], tile_max)


_MAX_TN = 4096   # ~6 KB/point working set -> ~26 MB at 4096 points (fits 48 MB)
_MIN_TN = 1024   # keep per-step work large enough to amortize step overhead


def _pick_point_tile(N):
    """Return (TN, N_pad): point-tile size and (possibly padded) point count."""
    if N <= _MAX_TN:
        return N, N                      # one full-N tile; (8,128) rule waived
    # Prefer a 128-aligned tile that divides N exactly (no padding needed).
    for tn in range(_MAX_TN, _MIN_TN - 1, -128):
        if N % tn == 0:
            return tn, N
    # Otherwise pad (by replicating a real point) to the least-waste tile.
    best_tn, best_pad = None, None
    for tn in range(_MAX_TN, _MIN_TN - 1, -128):
        n_pad = -(-N // tn) * tn
        if best_pad is None or n_pad < best_pad:
            best_tn, best_pad = tn, n_pad
    return best_tn, best_pad


def pointnet_forward_split(points, params, *, local_dtype=jnp.float32):
    """points: (B, N, C) f32.

    Returns (local (B, 64, N) in `local_dtype`, global (B, 1024) f32) -- the
    lean form; prefer this over the concatenated output when the consumer can
    take the two pieces separately (a following kernel_size=1 conv splits
    algebraically into W_a @ local + W_b @ broadcast(global))."""
    B, N, C = points.shape
    (w1, b1), (w2, b2), (w3, b3), (w4, b4) = params

    TN, N_pad = _pick_point_tile(N)
    x = jnp.transpose(points, (0, 2, 1))                      # (B, C, N)
    if N_pad != N:
        # Replicate the last point (NOT zero-pad) so the global max is unchanged.
        pad = jnp.broadcast_to(x[:, :, N - 1:N], (B, C, N_pad - N))
        x = jnp.concatenate([x, pad], axis=-1)

    nt = N_pad // TN
    # v7x megacore: keep >= 2 units of 'parallel' work.  With one batch element,
    # split the point axis into two parallel halves and merge partial maxes.
    nsplit = 2 if (B == 1 and nt >= 2 and nt % 2 == 0) else 1
    nt_s = nt // nsplit
    grid = (B, nsplit, nt_s)

    def x_map(b, s, ni):
        return (b, 0, s * nt_s + ni)

    def local_map(b, s, ni):
        return (b, 0, s * nt_s + ni)

    def gmax_map(b, s, ni):
        return (b, s, 0, 0)

    def const_spec(shape):
        return pl.BlockSpec(shape, lambda b, s, ni: (0,) * len(shape))

    flops = 2 * B * N_pad * (C * 64 + 64 * 64 + 64 * 128 + 128 * 1024)
    bytes_accessed = (
        x.size * x.dtype.itemsize
        + sum(a.size * a.dtype.itemsize
              for a in (w1, b1, w2, b2, w3, b3, w4))
        + B * N_pad * 64 * jnp.dtype(local_dtype).itemsize     # local out
        + B * nsplit * 1024 * 4)                               # global max out

    local, gmax_raw = pl.pallas_call(
        _pointnet_kernel,
        out_shape=(jax.ShapeDtypeStruct((B, 64, N_pad), local_dtype),
                   jax.ShapeDtypeStruct((B, nsplit, 1024, 1), jnp.float32)),
        grid_spec=pltpu.PrefetchScalarGridSpec(
            num_scalar_prefetch=0,
            grid=grid,
            in_specs=[
                pl.BlockSpec((None, C, TN), x_map),
                const_spec(w1.shape), const_spec(b1.shape),
                const_spec(w2.shape), const_spec(b2.shape),
                const_spec(w3.shape), const_spec(b3.shape),
                const_spec(w4.shape),
            ],
            out_specs=(
                pl.BlockSpec((None, 64, TN), local_map),
                pl.BlockSpec((None, None, 1024, 1), gmax_map),
            ),
        ),
        compiler_params=pltpu.CompilerParams(
            dimension_semantics=("parallel", "parallel", "arbitrary"),
            vmem_limit_bytes=48 * 1024 * 1024,
        ),
        cost_estimate=pl.CostEstimate(flops=flops, transcendentals=0,
                                      bytes_accessed=bytes_accessed),
    )(x, w1, b1, w2, b2, w3, b3, w4)

    if N_pad != N:
        local = local[:, :, :N]
    gmax_raw = jnp.max(gmax_raw, axis=1)[..., 0]              # (B, 1024)
    global_features = jnp.maximum(gmax_raw + b4[:, 0][None, :], 0.0)
    return local, global_features


def pointnet_forward(points, params):
    """points: (B, N, C) f32 -> (B, 1088, N) f32, matching the PyTorch module.

    NOTE: the broadcast+concat (B, 1088, N) tensor below is the single largest
    HBM consumer end-to-end; consumers that can accept (local, global)
    separately should call pointnet_forward_split instead."""
    B, N, C = points.shape
    local, gvec = pointnet_forward_split(points, params)
    g_rep = jnp.broadcast_to(gvec[:, :, None], (B, 1024, N))
    return jnp.concatenate([local.astype(jnp.float32), g_rep], axis=1)


def make_params(key, channel=2):
    """Deterministic synthetic parameters; Conv1d(k=1)+BN(eval) fully folded.

    Weight layout is (C_out, C_in) (channels-first matmul).  BN scale is folded
    into the conv weight (w' = w * scale); layer-1 weight stays f32 (VPU path),
    layers 2-4 are bf16 (MXU path); biases are f32 of shape (C_out, 1)."""
    dims = [(channel, 64), (64, 64), (64, 128), (128, 1024)]
    eps = 1e-5
    params = []
    for li, (cin, cout) in enumerate(dims):
        key, k_w, k_b, k_g, k_be, k_m, k_v = jax.random.split(key, 7)
        w = jax.random.normal(k_w, (cout, cin), jnp.float32) * 0.1
        conv_b = jax.random.normal(k_b, (cout,), jnp.float32) * 0.1
        gamma = 1.0 + 0.1 * jax.random.normal(k_g, (cout,), jnp.float32)
        beta = 0.1 * jax.random.normal(k_be, (cout,), jnp.float32)
        rmean = 0.1 * jax.random.normal(k_m, (cout,), jnp.float32)
        rvar = 0.5 + jax.random.uniform(k_v, (cout,), jnp.float32)
        scale = gamma / jnp.sqrt(rvar + eps)
        w_folded = w * scale[:, None]
        bias = (conv_b - rmean) * scale + beta
        w_out = w_folded if li == 0 else w_folded.astype(jnp.bfloat16)
        params.append((w_out, bias.reshape(cout, 1)))
    return params


def pointnet_reference(points, params):
    """Pure-JAX reference with the same dtype policy as the kernel
    (f32 layer 1, bf16 MXU layers with f32 accumulation)."""
    B, N, C = points.shape
    x = jnp.transpose(points, (0, 2, 1))                      # (B, C, N)
    (w1, b1), _, _, _ = params
    h = jnp.maximum(
        jnp.einsum('oc,bcn->bon', w1, x,
                   precision=jax.lax.Precision.HIGHEST) + b1[None], 0.0)
    acts = [h]
    for (w, b) in params[1:]:
        y = jnp.einsum('oc,bcn->bon', w, h.astype(jnp.bfloat16),
                       preferred_element_type=jnp.float32)
        h = jnp.maximum(y + b[None], 0.0)
        acts.append(h)
    local2 = acts[1]                                          # (B, 64, N)
    g = jnp.max(acts[3], axis=2)                              # (B, 1024)
    return jnp.concatenate(
        [local2, jnp.broadcast_to(g[:, :, None], (B, 1024, N))], axis=1)


if __name__ == "__main__":
    B, N, C = 2, 64, 2   # module defaults: batch=2, point_num=64, channel=2
    key = jax.random.PRNGKey(0)
    key, kx = jax.random.split(key)
    points = jax.random.normal(kx, (B, N, C), jnp.float32)
    params = make_params(key, channel=C)

    out = jax.block_until_ready(pointnet_forward(points, params))
    ref = pointnet_reference(points, params)

    assert out.shape == (B, 64 + 1024, N), out.shape
    # bf16 matmul path -> compare against the dtype-matched reference.
    assert jnp.allclose(out, ref, atol=2e-2, rtol=2e-2), \
        float(jnp.max(jnp.abs(out - ref)))
    print("KERNEL_OK")
</pallas_src>

<mosaic_0001>
module attributes {stable_mosaic.version = 11 : i64} {
  func.func @_pointnet_kernel(%arg0: i32, %arg1: i32, %arg2: i32, %arg3: memref<1x2x64xf32, #tpu.memory_space<vmem>>, %arg4: memref<64x2xf32, #tpu.memory_space<vmem>>, %arg5: memref<64x1xf32, #tpu.memory_space<vmem>>, %arg6: memref<64x64xbf16, #tpu.memory_space<vmem>>, %arg7: memref<64x1xf32, #tpu.memory_space<vmem>>, %arg8: memref<128x64xbf16, #tpu.memory_space<vmem>>, %arg9: memref<128x1xf32, #tpu.memory_space<vmem>>, %arg10: memref<1024x128xbf16, #tpu.memory_space<vmem>>, %arg11: memref<1x64x64xf32, #tpu.memory_space<vmem>>, %arg12: memref<1x1x1024x1xf32, #tpu.memory_space<vmem>>) attributes {dimension_semantics = [#tpu.dimension_semantics<parallel>, #tpu.dimension_semantics<parallel>, #tpu.dimension_semantics<arbitrary>], iteration_bounds = array<i64: 2, 1, 1>, scalar_prefetch = 0 : i64, scratch_operands = 0 : i64, tpu.core_type = #tpu.core_type<tc>, window_params = [{transform_indices = @transform_0, window_bounds = array<i64: 1, 2, 64>}, {pipeline_mode = #tpu.pipeline_mode<synchronous>, transform_indices = @transform_1, window_bounds = array<i64: 64, 2>}, {pipeline_mode = #tpu.pipeline_mode<synchronous>, transform_indices = @transform_2, window_bounds = array<i64: 64, 1>}, {pipeline_mode = #tpu.pipeline_mode<synchronous>, transform_indices = @transform_3, window_bounds = array<i64: 64, 64>}, {pipeline_mode = #tpu.pipeline_mode<synchronous>, transform_indices = @transform_4, window_bounds = array<i64: 64, 1>}, {pipeline_mode = #tpu.pipeline_mode<synchronous>, transform_indices = @transform_5, window_bounds = array<i64: 128, 64>}, {pipeline_mode = #tpu.pipeline_mode<synchronous>, transform_indices = @transform_6, window_bounds = array<i64: 128, 1>}, {pipeline_mode = #tpu.pipeline_mode<synchronous>, transform_indices = @transform_7, window_bounds = array<i64: 1024, 128>}, {transform_indices = @transform_8, window_bounds = array<i64: 1, 64, 64>}, {transform_indices = @transform_9, window_bounds = array<i64: 1, 1, 1024, 1>}]} {
    %c0 = arith.constant 0 : index
    %c0_0 = arith.constant 0 : index
    %c0_1 = arith.constant 0 : index
    %0 = vector.load %arg3[%c0, %c0_0, %c0_1] : memref<1x2x64xf32, #tpu.memory_space<vmem>>, vector<1x2x64xf32>
    %1 = vector.shape_cast %0 : vector<1x2x64xf32> to vector<2x64xf32>
    %c0_2 = arith.constant 0 : index
    %c0_3 = arith.constant 0 : index
    %2 = vector.load %arg4[%c0_2, %c0_3] : memref<64x2xf32, #tpu.memory_space<vmem>>, vector<64x2xf32>
    %3 = vector.extract_strided_slice %2 {offsets = [0, 0], sizes = [64, 1], strides = [1, 1]} : vector<64x2xf32> to vector<64x1xf32>
    %4 = vector.extract_strided_slice %1 {offsets = [0, 0], sizes = [1, 64], strides = [1, 1]} : vector<2x64xf32> to vector<1x64xf32>
    %5 = vector.broadcast %3 : vector<64x1xf32> to vector<64x64xf32>
    %6 = vector.broadcast %4 : vector<1x64xf32> to vector<64x64xf32>
    %7 = arith.mulf %5, %6 : vector<64x64xf32>
    %8 = vector.extract_strided_slice %2 {offsets = [0, 1], sizes = [64, 1], strides = [1, 1]} : vector<64x2xf32> to vector<64x1xf32>
    %9 = vector.extract_strided_slice %1 {offsets = [1, 0], sizes = [1, 64], strides = [1, 1]} : vector<2x64xf32> to vector<1x64xf32>
    %10 = vector.broadcast %8 : vector<64x1xf32> to vector<64x64xf32>
    %11 = vector.broadcast %9 : vector<1x64xf32> to vector<64x64xf32>
    %12 = arith.mulf %10, %11 : vector<64x64xf32>
    %13 = arith.addf %7, %12 : vector<64x64xf32>
    %c0_4 = arith.constant 0 : index
    %c0_5 = arith.constant 0 : index
    %14 = vector.load %arg5[%c0_4, %c0_5] : memref<64x1xf32, #tpu.memory_space<vmem>>, vector<64x1xf32>
    %15 = vector.broadcast %14 : vector<64x1xf32> to vector<64x64xf32>
    %16 = arith.addf %13, %15 : vector<64x64xf32>
    %cst = arith.constant 0.000000e+00 : f32
    %17 = vector.broadcast %cst : f32 to vector<64x64xf32>
    %18 = arith.maximumf %16, %17 : vector<64x64xf32>
    %c0_6 = arith.constant 0 : index
    %c0_7 = arith.constant 0 : index
    %19 = vector.load %arg6[%c0_6, %c0_7] : memref<64x64xbf16, #tpu.memory_space<vmem>>, vector<64x64xbf16>
    %20 = arith.truncf %18 : vector<64x64xf32> to vector<64x64xbf16>
    %cst_8 = arith.constant dense<0.000000e+00> : vector<64x64xf32>
    %21 = tpu.matmul %19, %20, %cst_8 {dimension_numbers = #tpu.dot_dimension_numbers<[1], [0], [0], [1], [0, 0, 1, 1], [], []>} : vector<64x64xbf16>, vector<64x64xbf16>, vector<64x64xf32> -> vector<64x64xf32>
    %c0_9 = arith.constant 0 : index
    %c0_10 = arith.constant 0 : index
    %22 = vector.load %arg7[%c0_9, %c0_10] : memref<64x1xf32, #tpu.memory_space<vmem>>, vector<64x1xf32>
    %23 = vector.broadcast %22 : vector<64x1xf32> to vector<64x64xf32>
    %24 = arith.addf %21, %23 : vector<64x64xf32>
    %cst_11 = arith.constant 0.000000e+00 : f32
    %25 = vector.broadcast %cst_11 : f32 to vector<64x64xf32>
    %26 = arith.maximumf %24, %25 : vector<64x64xf32>
    %c0_12 = arith.constant 0 : index
    %c0_13 = arith.constant 0 : index
    %27 = vector.load %arg8[%c0_12, %c0_13] : memref<128x64xbf16, #tpu.memory_space<vmem>>, vector<128x64xbf16>
    %28 = arith.truncf %26 : vector<64x64xf32> to vector<64x64xbf16>
    %cst_14 = arith.constant dense<0.000000e+00> : vector<128x64xf32>
    %29 = tpu.matmul %27, %28, %cst_14 {dimension_numbers = #tpu.dot_dimension_numbers<[1], [0], [0], [1], [0, 0, 1, 1], [], []>} : vector<128x64xbf16>, vector<64x64xbf16>, vector<128x64xf32> -> vector<128x64xf32>
    %c0_15 = arith.constant 0 : index
    %c0_16 = arith.constant 0 : index
    %30 = vector.load %arg9[%c0_15, %c0_16] : memref<128x1xf32, #tpu.memory_space<vmem>>, vector<128x1xf32>
    %31 = vector.broadcast %30 : vector<128x1xf32> to vector<128x64xf32>
    %32 = arith.addf %29, %31 : vector<128x64xf32>
    %cst_17 = arith.constant 0.000000e+00 : f32
    %33 = vector.broadcast %cst_17 : f32 to vector<128x64xf32>
    %34 = arith.maximumf %32, %33 : vector<128x64xf32>
    %c0_18 = arith.constant 0 : index
    %c0_19 = arith.constant 0 : index
    %35 = vector.load %arg10[%c0_18, %c0_19] : memref<1024x128xbf16, #tpu.memory_space<vmem>>, vector<1024x128xbf16>
    %36 = arith.truncf %34 : vector<128x64xf32> to vector<128x64xbf16>
    %cst_20 = arith.constant dense<0.000000e+00> : vector<1024x64xf32>
    %37 = tpu.matmul %35, %36, %cst_20 {dimension_numbers = #tpu.dot_dimension_numbers<[1], [0], [0], [1], [0, 0, 1, 1], [], []>} : vector<1024x128xbf16>, vector<128x64xbf16>, vector<1024x64xf32> -> vector<1024x64xf32>
    %c0_21 = arith.constant 0 : index
    %c0_22 = arith.constant 0 : index
    %c0_23 = arith.constant 0 : index
    %38 = vector.load %arg11[%c0_21, %c0_22, %c0_23] : memref<1x64x64xf32, #tpu.memory_space<vmem>>, vector<1x64x64xf32>
    %39 = vector.shape_cast %38 : vector<1x64x64xf32> to vector<64x64xf32>
    %40 = vector.shape_cast %26 : vector<64x64xf32> to vector<1x64x64xf32>
    tpu.vector_store %arg11[%c0_21, %c0_22, %c0_23], %40 {strides = array<i32>} : memref<1x64x64xf32, #tpu.memory_space<vmem>>, vector<1x64x64xf32>,
    %cst_24 = arith.constant dense<0xFF800000> : vector<1024xf32>
    %41 = vector.multi_reduction <maximumf>, %37, %cst_24 [1] : vector<1024x64xf32> to vector<1024xf32>
    %42 = vector.shape_cast %41 : vector<1024xf32> to vector<1024x1xf32>
    %c0_i32 = arith.constant 0 : i32
    %43 = arith.cmpi eq, %arg2, %c0_i32 : i32
    %44 = arith.extui %43 : i1 to i32
    %c0_i32_25 = arith.constant 0 : i32
    %45 = arith.cmpi ne, %44, %c0_i32_25 : i32
    scf.if %45 {
      %c0_28 = arith.constant 0 : index
      %c0_29 = arith.constant 0 : index
      %c0_30 = arith.constant 0 : index
      %c0_31 = arith.constant 0 : index
      %49 = vector.load %arg12[%c0_28, %c0_29, %c0_30, %c0_31] : memref<1x1x1024x1xf32, #tpu.memory_space<vmem>>, vector<1x1x1024x1xf32>
      %50 = vector.shape_cast %49 : vector<1x1x1024x1xf32> to vector<1024x1xf32>
      %51 = vector.shape_cast %42 : vector<1024x1xf32> to vector<1x1x1024x1xf32>
      tpu.vector_store %arg12[%c0_28, %c0_29, %c0_30, %c0_31], %51 {strides = array<i32>} : memref<1x1x1024x1xf32, #tpu.memory_space<vmem>>, vector<1x1x1024x1xf32>,
    } else {
    }
    %c0_i32_26 = arith.constant 0 : i32
    %46 = arith.cmpi sgt, %arg2, %c0_i32_26 : i32
    %47 = arith.extui %46 : i1 to i32
    %c0_i32_27 = arith.constant 0 : i32
    %48 = arith.cmpi ne, %47, %c0_i32_27 : i32
    scf.if %48 {
      %c0_28 = arith.constant 0 : index
      %c0_29 = arith.constant 0 : index
      %c0_30 = arith.constant 0 : index
      %c0_31 = arith.constant 0 : index
      %49 = vector.load %arg12[%c0_28, %c0_29, %c0_30, %c0_31] : memref<1x1x1024x1xf32, #tpu.memory_space<vmem>>, vector<1x1x1024x1xf32>
      %50 = vector.shape_cast %49 : vector<1x1x1024x1xf32> to vector<1024x1xf32>
      %51 = arith.maximumf %50, %42 : vector<1024x1xf32>
      %c0_32 = arith.constant 0 : index
      %c0_33 = arith.constant 0 : index
      %c0_34 = arith.constant 0 : index
      %c0_35 = arith.constant 0 : index
      %52 = vector.load %arg12[%c0_32, %c0_33, %c0_34, %c0_35] : memref<1x1x1024x1xf32, #tpu.memory_space<vmem>>, vector<1x1x1024x1xf32>
      %53 = vector.shape_cast %52 : vector<1x1x1024x1xf32> to vector<1024x1xf32>
      %54 = vector.shape_cast %51 : vector<1024x1xf32> to vector<1x1x1024x1xf32>
      tpu.vector_store %arg12[%c0_32, %c0_33, %c0_34, %c0_35], %54 {strides = array<i32>} : memref<1x1x1024x1xf32, #tpu.memory_space<vmem>>, vector<1x1x1024x1xf32>,
    } else {
    }
    return
  }
  func.func @transform_0(%arg0: i32, %arg1: i32, %arg2: i32) -> (i32, i32, i32) {
    %c1_i32 = arith.constant 1 : i32
    %0 = arith.muli %arg1, %c1_i32 : i32
    %1 = arith.addi %0, %arg2 : i32
    %c0_i32 = arith.constant 0 : i32
    %c0_i32_0 = arith.constant 0 : i32
    return %arg0, %c0_i32, %1 : i32, i32, i32
  }
  func.func @transform_1(%arg0: i32, %arg1: i32, %arg2: i32) -> (i32, i32) {
    %c0_i32 = arith.constant 0 : i32
    %c0_i32_0 = arith.constant 0 : i32
    %c0_i32_1 = arith.constant 0 : i32
    return %c0_i32, %c0_i32_0 : i32, i32
  }
  func.func @transform_2(%arg0: i32, %arg1: i32, %arg2: i32) -> (i32, i32) {
    %c0_i32 = arith.constant 0 : i32
    %c0_i32_0 = arith.constant 0 : i32
    %c0_i32_1 = arith.constant 0 : i32
    return %c0_i32, %c0_i32_0 : i32, i32
  }
  func.func @transform_3(%arg0: i32, %arg1: i32, %arg2: i32) -> (i32, i32) {
    %c0_i32 = arith.constant 0 : i32
    %c0_i32_0 = arith.constant 0 : i32
    %c0_i32_1 = arith.constant 0 : i32
    return %c0_i32, %c0_i32_0 : i32, i32
  }
  func.func @transform_4(%arg0: i32, %arg1: i32, %arg2: i32) -> (i32, i32) {
    %c0_i32 = arith.constant 0 : i32
    %c0_i32_0 = arith.constant 0 : i32
    %c0_i32_1 = arith.constant 0 : i32
    return %c0_i32, %c0_i32_0 : i32, i32
  }
  func.func @transform_5(%arg0: i32, %arg1: i32, %arg2: i32) -> (i32, i32) {
    %c0_i32 = arith.constant 0 : i32
    %c0_i32_0 = arith.constant 0 : i32
    %c0_i32_1 = arith.constant 0 : i32
    return %c0_i32, %c0_i32_0 : i32, i32
  }
  func.func @transform_6(%arg0: i32, %arg1: i32, %arg2: i32) -> (i32, i32) {
    %c0_i32 = arith.constant 0 : i32
    %c0_i32_0 = arith.constant 0 : i32
    %c0_i32_1 = arith.constant 0 : i32
    return %c0_i32, %c0_i32_0 : i32, i32
  }
  func.func @transform_7(%arg0: i32, %arg1: i32, %arg2: i32) -> (i32, i32) {
    %c0_i32 = arith.constant 0 : i32
    %c0_i32_0 = arith.constant 0 : i32
    %c0_i32_1 = arith.constant 0 : i32
    return %c0_i32, %c0_i32_0 : i32, i32
  }
  func.func @transform_8(%arg0: i32, %arg1: i32, %arg2: i32) -> (i32, i32, i32) {
    %c1_i32 = arith.constant 1 : i32
    %0 = arith.muli %arg1, %c1_i32 : i32
    %1 = arith.addi %0, %arg2 : i32
    %c0_i32 = arith.constant 0 : i32
    %c0_i32_0 = arith.constant 0 : i32
    return %arg0, %c0_i32, %1 : i32, i32, i32
  }
  func.func @transform_9(%arg0: i32, %arg1: i32, %arg2: i32) -> (i32, i32, i32, i32) {
    %c0_i32 = arith.constant 0 : i32
    %c0_i32_0 = arith.constant 0 : i32
    %c0_i32_1 = arith.constant 0 : i32
    return %arg0, %arg1, %c0_i32, %c0_i32_0 : i32, i32, i32, i32
  }
}

</mosaic_0001>

<llo_original>
// kernel: tpu_custom_call.1
$region0: #{tpu_custom_call.1}
  #allocation0 [shape = 'u32[]', space=smem, size = 0x4, offset = 0x4, fixed_abs, tag = 'smem constant byte address 0x4 - core index']
  #allocation1 [shape = 'u32[144,128]{1,0:T(1,128)}', space=vmem, size = 0x12000, scoped, tag = 'internal scratch']
  %s0 = inlined_call_operand.vmem [shape: f32[2,2,64], index: 0, kind: input, shape index: {}]
  %s1 = inlined_call_operand.vmem [shape: f32[64,2], index: 1, kind: input, shape index: {}]
  %s2 = inlined_call_operand.vmem [shape: f32[64,1], index: 2, kind: input, shape index: {}]
  %s3 = inlined_call_operand.vmem [shape: bf16[64,64], index: 3, kind: input, shape index: {}]
  %s4 = inlined_call_operand.vmem [shape: f32[64,1], index: 4, kind: input, shape index: {}]
  %s5 = inlined_call_operand.vmem [shape: bf16[128,64], index: 5, kind: input, shape index: {}]
  %s6 = inlined_call_operand.vmem [shape: f32[128,1], index: 6, kind: input, shape index: {}]
  %s7 = inlined_call_operand.hbm [shape: bf16[1024,128], index: 7, kind: input, shape index: {}]
  %s8 = inlined_call_operand.hbm [shape: f32[2,64,64], index: 8, kind: output, shape index: {0}]
  %s9 = inlined_call_operand.vmem [shape: f32[2,1,1024,1], index: 9, kind: output, shape index: {1}]
  %10 = xla_tuple %s8, %s9
  %s11 = sld [smem:[#allocation0]]
  $region85: #{tpu_custom_call.1} parent=0
    _
  %s13 = ssub.s32 1, %s11
  %s14 = scalar_select 0, %s13, %s11
  $region1: #{tpu_custom_call.1} parent=0
    #allocation2 [shape = 'u8[262144]{0}', space=vmem, size = 0x40000, scoped, tag = 'input window, operand 7, single buffered']
    #allocation3 [shape = 's32[2]{0}', space=sflag, size = 0x8, scoped, tag = 'scoped memory for tpu_custom_call.1']
    #allocation4 [shape = 's32[2]{0}', space=sflag, size = 0x8, scoped, tag = 'scoped memory for tpu_custom_call.1']
    #allocation5 [shape = 'u8[65536]{0}', space=vmem, size = 0x10000, scoped, tag = 'output window, operand 0']
    %15 = vsyncpa [#allocation3], 0
    %16 = vsyncpa [#allocation4], 0
    %s17 = scalar_lea.sflag [#allocation4], 1
    %18 = vsyncpa %s17, 0
    loop: start=0, step=1, limit=4
    $region2: #{tpu_custom_call.1} parent=1 // loop_pre_header
      _
    $region3: #{tpu_custom_call.1} parent=1 // loop_header
      %s20 = sphi 0, %s24
      %p21 = scmp.ge.s32.totalorder %s20, 4
      %s27 = sphi 0, %s46
      %s28 = sphi 0, %s42
      %s29 = sphi 0, %s38
      %s30 = sphi 0, %s27
      %s31 = sphi 0, %s28
      %s32 = sphi 0, %s29
      %s33 = sphi 0, %s30
      %s34 = sphi 0, %s31
      %s35 = sphi 0, %s32
      %s53 = sphi 0, %s55
      %s56 = sphi 0, %s53
      %s57 = sphi 0, %s56
      %s73 = sphi 0, %s57
      %s77 = sphi 0, %s77
      %s79 = sphi 0, %s77
      %s80 = sphi 0, %s79
      %s94 = sphi 0, %s80
      %s98 = sphi 0, %s98
      %s100 = sphi 0, %s98
      %s101 = sphi 0, %s100
      %s115 = sphi 0, %s101
      %s119 = sphi 0, %s119
      %s121 = sphi 0, %s119
      %s122 = sphi 0, %s121
      %s136 = sphi 0, %s122
      %s140 = sphi 0, %s140
      %s142 = sphi 0, %s140
      %s143 = sphi 0, %s142
      %s157 = sphi 0, %s143
      %s161 = sphi 0, %s161
      %s163 = sphi 0, %s161
      %s164 = sphi 0, %s163
      %s178 = sphi 0, %s164
      %s182 = sphi 0, %s182
      %s184 = sphi 0, %s182
      %s185 = sphi 0, %s184
      %s199 = sphi 0, %s185
      %s203 = sphi 0, %s203
      %s205 = sphi 0, %s203
      %s206 = sphi 0, %s205
      %s220 = sphi 0, %s206
      %s230 = sphi 0, %s232
      %s233 = sphi 0, %s230
      %s234 = sphi 0, %s233
      %s250 = sphi 0, %s234
      %s258 = sphi 0, %s260
      %s261 = sphi 0, %s258
      %s262 = sphi 0, %s261
      %s278 = sphi 0, %s262
    $region4: #{tpu_custom_call.1} parent=1 // loop_header_branch
      %23 = sbr.rel (%p21) target = $region8
    $region5: #{tpu_custom_call.1} parent=1 // loop_body
      %s25 = ssub.s32 %s20, 1
      %s26 = ssub.s32 %s20, 2
      %s36 = sadd.s32 1, %s29
      %p37 = scmp.ge.s32.totalorder %s36, 1
      %s38 = scalar_select %p37, 0, %s36
      %s39 = sadd.s32 1, %s28
      %s40 = scalar_select %p37, %s39, %s28
      %p41 = scmp.ge.s32.totalorder %s40, 1
      %s42 = scalar_select %p41, 0, %s40
      %s43 = sadd.s32 1, %s27
      %s44 = scalar_select %p41, %s43, %s27
      %p45 = scmp.ge.s32.totalorder %s44, 2
      %s46 = scalar_select %p45, 0, %s44
      %s47 = sadd.s32 %s28, %s29
      %s48 = sadd.s32 %s42, %s38
      %s49 = ssub.s32 %s27, %s46
      %s50 = ssub.s32 %s47, %s48
      %s51 = sor.u32 %s49, %s50
      %p52 = scmp.eq.s32.totalorder %s51, 0
      %s54 = sadd.s32 %s53, 1
      %s55 = scalar_select %p52, %s53, %s54
      %p58 = pneg %p52
      %p59 = scmp.eq.s32.totalorder %s20, 1
      %p60 = por %p58, %p59
      %p61 = scmp.ne.s32.totalorder %s53, %s56
      %p62 = scmp.eq.s32.totalorder %s20, 0
      %p63 = por %p61, %p62
      %p64 = scmp.ne.s32.totalorder %s53, %s56
      %p65 = scmp.eq.s32.totalorder %s25, 1
      %p66 = por %p64, %p65
      %p67 = scmp.ne.s32.totalorder %s56, %s57
      %p68 = scmp.eq.s32.totalorder %s25, 0
      %p69 = por %p67, %p68
      %p70 = scmp.ne.s32.totalorder %s56, %s57
      %p71 = scmp.eq.s32.totalorder %s26, 1
      %p72 = por %p70, %p71
      %p74 = scmp.ne.s32.totalorder %s57, %s73
      %p75 = scmp.eq.s32.totalorder %s26, 0
      %p76 = por %p74, %p75
      %s78 = sadd.s32 %s77, 1
      %p81 = scmp.eq.s32.totalorder %s20, 1
      %p82 = scmp.ne.s32.totalorder %s77, %s79
      %p83 = scmp.eq.s32.totalorder %s20, 0
      %p84 = por %p82, %p83
      %p85 = scmp.ne.s32.totalorder %s77, %s79
      %p86 = scmp.eq.s32.totalorder %s25, 1
      %p87 = por %p85, %p86
      %p88 = scmp.ne.s32.totalorder %s79, %s80
      %p89 = scmp.eq.s32.totalorder %s25, 0
      %p90 = por %p88, %p89
      %p91 = scmp.ne.s32.totalorder %s79, %s80
      %p92 = scmp.eq.s32.totalorder %s26, 1
      %p93 = por %p91, %p92
      %p95 = scmp.ne.s32.totalorder %s80, %s94
      %p96 = scmp.eq.s32.totalorder %s26, 0
      %p97 = por %p95, %p96
      %s99 = sadd.s32 %s98, 1
      %p102 = scmp.eq.s32.totalorder %s20, 1
      %p103 = scmp.ne.s32.totalorder %s98, %s100
      %p104 = scmp.eq.s32.totalorder %s20, 0
      %p105 = por %p103, %p104
      %p106 = scmp.ne.s32.totalorder %s98, %s100
      %p107 = scmp.eq.s32.totalorder %s25, 1
      %p108 = por %p106, %p107
      %p109 = scmp.ne.s32.totalorder %s100, %s101
      %p110 = scmp.eq.s32.totalorder %s25, 0
      %p111 = por %p109, %p110
      %p112 = scmp.ne.s32.totalorder %s100, %s101
      %p113 = scmp.eq.s32.totalorder %s26, 1
      %p114 = por %p112, %p113
      %p116 = scmp.ne.s32.totalorder %s101, %s115
      %p117 = scmp.eq.s32.totalorder %s26, 0
      %p118 = por %p116, %p117
      %s120 = sadd.s32 %s119, 1
      %p123 = scmp.eq.s32.totalorder %s20, 1
      %p124 = scmp.ne.s32.totalorder %s119, %s121
      %p125 = scmp.eq.s32.totalorder %s20, 0
      %p126 = por %p124, %p125
      %p127 = scmp.ne.s32.totalorder %s119, %s121
      %p128 = scmp.eq.s32.totalorder %s25, 1
      %p129 = por %p127, %p128
      %p130 = scmp.ne.s32.totalorder %s121, %s122
      %p131 = scmp.eq.s32.totalorder %s25, 0
      %p132 = por %p130, %p131
      %p133 = scmp.ne.s32.totalorder %s121, %s122
      %p134 = scmp.eq.s32.totalorder %s26, 1
      %p135 = por %p133, %p134
      %p137 = scmp.ne.s32.totalorder %s122, %s136
      %p138 = scmp.eq.s32.totalorder %s26, 0
      %p139 = por %p137, %p138
      %s141 = sadd.s32 %s140, 1
      %p144 = scmp.eq.s32.totalorder %s20, 1
      %p145 = scmp.ne.s32.totalorder %s140, %s142
      %p146 = scmp.eq.s32.totalorder %s20, 0
      %p147 = por %p145, %p146
      %p148 = scmp.ne.s32.totalorder %s140, %s142
      %p149 = scmp.eq.s32.totalorder %s25, 1
      %p150 = por %p148, %p149
      %p151 = scmp.ne.s32.totalorder %s142, %s143
      %p152 = scmp.eq.s32.totalorder %s25, 0
      %p153 = por %p151, %p152
      %p154 = scmp.ne.s32.totalorder %s142, %s143
      %p155 = scmp.eq.s32.totalorder %s26, 1
      %p156 = por %p154, %p155
      %p158 = scmp.ne.s32.totalorder %s143, %s157
      %p159 = scmp.eq.s32.totalorder %s26, 0
      %p160 = por %p158, %p159
      %s162 = sadd.s32 %s161, 1
      %p165 = scmp.eq.s32.totalorder %s20, 1
      %p166 = scmp.ne.s32.totalorder %s161, %s163
      %p167 = scmp.eq.s32.totalorder %s20, 0
      %p168 = por %p166, %p167
      %p169 = scmp.ne.s32.totalorder %s161, %s163
      %p170 = scmp.eq.s32.totalorder %s25, 1
      %p171 = por %p169, %p170
      %p172 = scmp.ne.s32.totalorder %s163, %s164
      %p173 = scmp.eq.s32.totalorder %s25, 0
      %p174 = por %p172, %p173
      %p175 = scmp.ne.s32.totalorder %s163, %s164
      %p176 = scmp.eq.s32.totalorder %s26, 1
      %p177 = por %p175, %p176
      %p179 = scmp.ne.s32.totalorder %s164, %s178
      %p180 = scmp.eq.s32.totalorder %s26, 0
      %p181 = por %p179, %p180
      %s183 = sadd.s32 %s182, 1
      %p186 = scmp.eq.s32.totalorder %s20, 1
      %p187 = scmp.ne.s32.totalorder %s182, %s184
      %p188 = scmp.eq.s32.totalorder %s20, 0
      %p189 = por %p187, %p188
      %p190 = scmp.ne.s32.totalorder %s182, %s184
      %p191 = scmp.eq.s32.totalorder %s25, 1
      %p192 = por %p190, %p191
      %p193 = scmp.ne.s32.totalorder %s184, %s185
      %p194 = scmp.eq.s32.totalorder %s25, 0
      %p195 = por %p193, %p194
      %p196 = scmp.ne.s32.totalorder %s184, %s185
      %p197 = scmp.eq.s32.totalorder %s26, 1
      %p198 = por %p196, %p197
      %p200 = scmp.ne.s32.totalorder %s185, %s199
      %p201 = scmp.eq.s32.totalorder %s26, 0
      %p202 = por %p200, %p201
      %s204 = sadd.s32 %s203, 1
      %p207 = scmp.eq.s32.totalorder %s20, 1
      %p208 = scmp.ne.s32.totalorder %s203, %s205
      %p209 = scmp.eq.s32.totalorder %s20, 0
      %p210 = por %p208, %p209
      %p211 = scmp.ne.s32.totalorder %s203, %s205
      %p212 = scmp.eq.s32.totalorder %s25, 1
      %p213 = por %p211, %p212
      %p214 = scmp.ne.s32.totalorder %s205, %s206
      %p215 = scmp.eq.s32.totalorder %s25, 0
      %p216 = por %p214, %p215
      %p217 = scmp.ne.s32.totalorder %s205, %s206
      %p218 = scmp.eq.s32.totalorder %s26, 1
      %p219 = por %p217, %p218
      %p221 = scmp.ne.s32.totalorder %s206, %s220
      %p222 = scmp.eq.s32.totalorder %s26, 0
      %p223 = por %p221, %p222
      %s224 = sadd.s32 %s28, %s29
      %s225 = sadd.s32 %s42, %s38
      %s226 = ssub.s32 %s27, %s46
      %s227 = ssub.s32 %s224, %s225
      %s228 = sor.u32 %s226, %s227
      %p229 = scmp.eq.s32.totalorder %s228, 0
      %s231 = sadd.s32 %s230, 1
      %s232 = scalar_select %p229, %s230, %s231
      %p235 = pneg %p229
      %p236 = scmp.eq.s32.totalorder %s20, 1
      %p237 = por %p235, %p236
      %p238 = scmp.ne.s32.totalorder %s230, %s233
      %p239 = scmp.eq.s32.totalorder %s20, 0
      %p240 = por %p238, %p239
      %p241 = scmp.ne.s32.totalorder %s230, %s233
      %p242 = scmp.eq.s32.totalorder %s25, 1
      %p243 = por %p241, %p242
      %p244 = scmp.ne.s32.totalorder %s233, %s234
      %p245 = scmp.eq.s32.totalorder %s25, 0
      %p246 = por %p244, %p245
      %p247 = scmp.ne.s32.totalorder %s233, %s234
      %p248 = scmp.eq.s32.totalorder %s26, 1
      %p249 = por %p247, %p248
      %p251 = scmp.ne.s32.totalorder %s234, %s250
      %p252 = scmp.eq.s32.totalorder %s26, 0
      %p253 = por %p251, %p252
      %s254 = ssub.s32 %s27, %s46
      %s255 = ssub.s32 %s28, %s42
      %s256 = sor.u32 %s254, %s255
      %p257 = scmp.eq.s32.totalorder %s256, 0
      %s259 = sadd.s32 %s258, 1
      %s260 = scalar_select %p257, %s258, %s259
      %p263 = pneg %p257
      %p264 = scmp.eq.s32.totalorder %s20, 1
      %p265 = por %p263, %p264
      %p266 = scmp.ne.s32.totalorder %s258, %s261
      %p267 = scmp.eq.s32.totalorder %s20, 0
      %p268 = por %p266, %p267
      %p269 = scmp.ne.s32.totalorder %s258, %s261
      %p270 = scmp.eq.s32.totalorder %s25, 1
      %p271 = por %p269, %p270
      %p272 = scmp.ne.s32.totalorder %s261, %s262
      %p273 = scmp.eq.s32.totalorder %s25, 0
      %p274 = por %p272, %p273
      %p275 = scmp.ne.s32.totalorder %s261, %s262
      %p276 = scmp.eq.s32.totalorder %s26, 1
      %p277 = por %p275, %p276
      %p279 = scmp.ne.s32.totalorder %s262, %s278
      %p280 = scmp.eq.s32.totalorder %s26, 0
      %p281 = por %p279, %p280
      %p282 = scmp.le.s32.totalorder 1, %s20
      %p283 = scmp.lt.s32.totalorder %s20, 3
      %p284 = pnand %p282, %p283
      %p285 = pneg %p284
      // Predicated region
      $region9: #{tpu_custom_call.1} parent=5 // pred_check
        _
      $region10: #{tpu_custom_call.1} parent=5 // pred_check_branch
        %287 = sbr.rel (%p284) target = $region12
      $region11: #{tpu_custom_call.1} parent=5 // pred_region
        %s288 = ssub.s32 %s20, 1
        // Predicated region
        $region13: #{tpu_custom_call.1} parent=11 // pred_check
          %p289 = pneg %p90
        $region14: #{tpu_custom_call.1} parent=11 // pred_check_branch
          %291 = sbr.rel (%p289) target = $region16
        $region15: #{tpu_custom_call.1} parent=11 // pred_region
          _
        $region16: #{tpu_custom_call.1} parent=11 // pred_fallthru
          _
        // Predicated region
        $region17: #{tpu_custom_call.1} parent=11 // pred_check
          %p292 = pneg %p111
        $region18: #{tpu_custom_call.1} parent=11 // pred_check_branch
          %294 = sbr.rel (%p292) target = $region20
        $region19: #{tpu_custom_call.1} parent=11 // pred_region
          _
        $region20: #{tpu_custom_call.1} parent=11 // pred_fallthru
          _
        // Predicated region
        $region21: #{tpu_custom_call.1} parent=11 // pred_check
          %p295 = pneg %p132
        $region22: #{tpu_custom_call.1} parent=11 // pred_check_branch
          %297 = sbr.rel (%p295) target = $region24
        $region23: #{tpu_custom_call.1} parent=11 // pred_region
          _
        $region24: #{tpu_custom_call.1} parent=11 // pred_fallthru
          _
        // Predicated region
        $region25: #{tpu_custom_call.1} parent=11 // pred_check
          %p298 = pneg %p153
        $region26: #{tpu_custom_call.1} parent=11 // pred_check_branch
          %300 = sbr.rel (%p298) target = $region28
        $region27: #{tpu_custom_call.1} parent=11 // pred_region
          _
        $region28: #{tpu_custom_call.1} parent=11 // pred_fallthru
          _
        // Predicated region
        $region29: #{tpu_custom_call.1} parent=11 // pred_check
          %p301 = pneg %p174
        $region30: #{tpu_custom_call.1} parent=11 // pred_check_branch
          %303 = sbr.rel (%p301) target = $region32
        $region31: #{tpu_custom_call.1} parent=11 // pred_region
          _
        $region32: #{tpu_custom_call.1} parent=11 // pred_fallthru
          _
        // Predicated region
        $region33: #{tpu_custom_call.1} parent=11 // pred_check
          %p304 = pneg %p195
        $region34: #{tpu_custom_call.1} parent=11 // pred_check_branch
          %306 = sbr.rel (%p304) target = $region36
        $region35: #{tpu_custom_call.1} parent=11 // pred_region
          _
        $region36: #{tpu_custom_call.1} parent=11 // pred_fallthru
          _
        // Predicated region
        $region37: #{tpu_custom_call.1} parent=11 // pred_check
          %p307 = pneg %p216
        $region38: #{tpu_custom_call.1} parent=11 // pred_check_branch
          %309 = sbr.rel (%p307) target = $region40
        $region39: #{tpu_custom_call.1} parent=11 // pred_region
          %s311 = ssub.s32 8192, 8192
          %312 = vsyncadd [#allocation3], %s311
          %s313 = sshll.u32 [#allocation2], 4
          %s314 = int_to_ptr.vmem [resolvable:$true] %s313
          %319 = dma.hbm_to_vmem [thread:$0]  %s7, 8192, %s314, [#allocation3], 64, 64, 4
        $region40: #{tpu_custom_call.1} parent=11 // pred_fallthru
          _
      $region12: #{tpu_custom_call.1} parent=5 // pred_fallthru
        _
      %p320 = scmp.lt.s32.totalorder %s20, 2
      // Predicated region
      $region41: #{tpu_custom_call.1} parent=5 // pred_check
        %p321 = pneg %p320
      $region42: #{tpu_custom_call.1} parent=5 // pred_check_branch
        %323 = sbr.rel (%p321) target = $region44
      $region43: #{tpu_custom_call.1} parent=5 // pred_region
        // Predicated region
        $region45: #{tpu_custom_call.1} parent=43 // pred_check
          %p324 = pneg %p63
        $region46: #{tpu_custom_call.1} parent=43 // pred_check_branch
          %326 = sbr.rel (%p324) target = $region48
        $region47: #{tpu_custom_call.1} parent=43 // pred_region
          %s327 = sadd.s32 %s28, %s29
          %p328 = scmp.lt.s32.totalorder %s27, 1
          %s329 = scalar_select %p328, %s27, 1
          %p330 = scmp.lt.s32.totalorder %s327, 0
          %s331 = scalar_select %p330, %s327, 0
          %s332 = sadd.s32 %s331, %s329
          %s333 = smul.addr %s332, 2
          %s334 = scalar_lea.vmem %s0, %s333
          %s335 = sadd.s32 %s28, %s29
        $region48: #{tpu_custom_call.1} parent=43 // pred_fallthru
          _
      $region44: #{tpu_custom_call.1} parent=5 // pred_fallthru
        _
      %p336 = scmp.le.s32.totalorder 1, %s20
      %p337 = scmp.lt.s32.totalorder %s20, 3
      %p338 = pnand %p336, %p337
      %p339 = pneg %p338
      // Predicated region
      $region49: #{tpu_custom_call.1} parent=5 // pred_check
        _
      $region50: #{tpu_custom_call.1} parent=5 // pred_check_branch
        %341 = sbr.rel (%p338) target = $region52
      $region51: #{tpu_custom_call.1} parent=5 // pred_region
        %s342 = ssub.s32 %s20, 1
        // Predicated region
        $region53: #{tpu_custom_call.1} parent=51 // pred_check
          %p343 = pneg %p216
        $region54: #{tpu_custom_call.1} parent=51 // pred_check_branch
          %345 = sbr.rel (%p343) target = $region56
        $region55: #{tpu_custom_call.1} parent=51 // pred_region
          %346 = dma.done [#allocation3], 8192
        $region56: #{tpu_custom_call.1} parent=51 // pred_fallthru
          _
        %s347 = sadd.s32 %s31, %s32
        %p348 = scmp.lt.s32.totalorder %s30, 1
        %s349 = scalar_select %p348, %s30, 1
        %p350 = scmp.lt.s32.totalorder %s347, 0
        %s351 = scalar_select %p350, %s347, 0
        %s352 = sadd.s32 %s351, %s349
        %s353 = smul.addr %s352, 2
        %s354 = scalar_lea.vmem %s0, %s353
        %p355 = pneg %p69
        %p356 = pneg %p66
        %p357 = pneg %p90
        %p358 = pneg %p87
        %p359 = pneg %p111
        %p360 = pneg %p108
        %p361 = pneg %p132
        %p362 = pneg %p129
        %p363 = pneg %p153
        %p364 = pneg %p150
        %p365 = pneg %p174
        %p366 = pneg %p171
        %p367 = pneg %p195
        %p368 = pneg %p192
        %p369 = pneg %p216
        %p370 = pneg %p213
        %p371 = pneg %p246
        %p372 = pneg %p243
        %s373 = sand.u32 %s233, 1
        %s374 = scalar_lea.sflag [#allocation4], %s373
        %s375 = sand.u32 %s233, 1
        %s376 = smul.addr %s375, 64
        %s377 = scalar_lea.vmem [#allocation5], %s376
        %p378 = pneg %p274
        %p379 = pneg %p271
        %p380 = scmp.lt.s32.totalorder %s30, 1
        %s381 = scalar_select %p380, %s30, 1
        %p382 = scmp.lt.s32.totalorder %s31, 0
        %s383 = scalar_select %p382, %s31, 0
        %s384 = smul.addr %s383, 128
        %s385 = smul.addr %s381, 128
        %s386 = sadd.s32 %s384, %s385
        %s387 = smul.addr %s386, 8
        %s388 = scalar_lea.vmem %s9, %s387
        %s389 = sadd.s32 %s31, %s32
        %p390 = scmp.lt.s32.totalorder %s30, 1
        %s391 = scalar_select %p390, %s30, 1
        %p392 = scmp.lt.s32.totalorder %s389, 0
        %s393 = scalar_select %p392, %s389, 0
        %s394 = sadd.s32 %s393, %s391
        %s395 = smul.addr %s394, 2
        %s396 = scalar_lea.vmem %s0, %s395
        %s397 = sadd.s32 %s31, %s32
        %s398 = sadd.s32 %s31, %s32
        %p399 = scmp.lt.s32.totalorder %s30, 1
        %s400 = scalar_select %p399, %s30, 1
        %p401 = scmp.lt.s32.totalorder %s31, 0
        %s402 = scalar_select %p401, %s31, 0
        %s403 = smul.addr %s402, 128
        %s404 = smul.addr %s400, 128
        %s405 = sadd.s32 %s403, %s404
        %s406 = smul.addr %s405, 8
        %s407 = scalar_lea.vmem %s9, %s406
        %v409 = vld [vmem:[%s396] sm:$0x3]
        %v410 = vld [vmem:[%s1] sm:$0xff]
        %v411 = vld [vmem:[%s1 + $0x8] sm:$0xff]
        %v412 = vld [vmem:[%s1 + $0x10] sm:$0xff]
        %v413 = vld [vmem:[%s1 + $0x18] sm:$0xff]
        %v414 = vld [vmem:[%s1 + $0x20] sm:$0xff]
        %v415 = vld [vmem:[%s1 + $0x28] sm:$0xff]
        %v416 = vld [vmem:[%s1 + $0x30] sm:$0xff]
        %v417 = vld [vmem:[%s1 + $0x38] sm:$0xff]
        %419 = vset.pattern.permute.xlu0 0
        %420 = vperm.xlu0 %419, %v410
        %v421 = vpop.permute.xlu0 %420
        %424 = vset.pattern.permute.xlu0 0
        %425 = vperm.xlu0 %424, %v411
        %v426 = vpop.permute.xlu0 %425
        %429 = vset.pattern.permute.xlu0 0
        %430 = vperm.xlu0 %429, %v412
        %v431 = vpop.permute.xlu0 %430
        %434 = vset.pattern.permute.xlu0 0
        %435 = vperm.xlu0 %434, %v413
        %v436 = vpop.permute.xlu0 %435
        %439 = vset.pattern.permute.xlu0 0
        %440 = vperm.xlu0 %439, %v414
        %v441 = vpop.permute.xlu0 %440
        %444 = vset.pattern.permute.xlu0 0
        %445 = vperm.xlu0 %444, %v415
        %v446 = vpop.permute.xlu0 %445
        %449 = vset.pattern.permute.xlu0 0
        %450 = vperm.xlu0 %449, %v416
        %v451 = vpop.permute.xlu0 %450
        %454 = vset.pattern.permute.xlu0 0
        %455 = vperm.xlu0 %454, %v417
        %v456 = vpop.permute.xlu0 %455
        %v458 = vlaneseq
        %v459 = vshrl.u32 %v458, 7
        %v460 = vsub.s32 0, %v459
        %v461 = vrot.slane %v409, %v460
        %v462 = vmul.f32 %v421, %v461
        %v463 = vmul.f32 %v426, %v461
        %v464 = vmul.f32 %v431, %v461
        %v465 = vmul.f32 %v436, %v461
        %v466 = vmul.f32 %v441, %v461
        %v467 = vmul.f32 %v446, %v461
        %v468 = vmul.f32 %v451, %v461
        %v469 = vmul.f32 %v456, %v461
        %470 = vset.pattern.permute.xlu0 1
        %471 = vperm.xlu0 %470, %v410
        %v472 = vpop.permute.xlu0 %471
        %474 = vset.pattern.permute.xlu0 1
        %475 = vperm.xlu0 %474, %v411
        %v476 = vpop.permute.xlu0 %475
        %478 = vset.pattern.permute.xlu0 1
        %479 = vperm.xlu0 %478, %v412
        %v480 = vpop.permute.xlu0 %479
        %482 = vset.pattern.permute.xlu0 1
        %483 = vperm.xlu0 %482, %v413
        %v484 = vpop.permute.xlu0 %483
        %486 = vset.pattern.permute.xlu0 1
        %487 = vperm.xlu0 %486, %v414
        %v488 = vpop.permute.xlu0 %487
        %490 = vset.pattern.permute.xlu0 1
        %491 = vperm.xlu0 %490, %v415
        %v492 = vpop.permute.xlu0 %491
        %494 = vset.pattern.permute.xlu0 1
        %495 = vperm.xlu0 %494, %v416
        %v496 = vpop.permute.xlu0 %495
        %498 = vset.pattern.permute.xlu0 1
        %499 = vperm.xlu0 %498, %v417
        %v500 = vpop.permute.xlu0 %499
        %v502 = vlaneseq
        %v503 = vshrl.u32 %v502, 7
        %v504 = vsub.s32 1, %v503
        %v505 = vrot.slane %v409, %v504
        %v506 = vmul.f32 %v472, %v505
        %v507 = vmul.f32 %v476, %v505
        %v508 = vmul.f32 %v480, %v505
        %v509 = vmul.f32 %v484, %v505
        %v510 = vmul.f32 %v488, %v505
        %v511 = vmul.f32 %v492, %v505
        %v512 = vmul.f32 %v496, %v505
        %v513 = vmul.f32 %v500, %v505
        %v514 = vadd.f32 %v462, %v506
        %v515 = vadd.f32 %v463, %v507
        %v516 = vadd.f32 %v464, %v508
        %v517 = vadd.f32 %v465, %v509
        %v518 = vadd.f32 %v466, %v510
        %v519 = vadd.f32 %v467, %v511
        %v520 = vadd.f32 %v468, %v512
        %v521 = vadd.f32 %v469, %v513
        %v522 = vld [vmem:[%s2] sm:$0xff]
        %v523 = vld [vmem:[%s2 + $0x8] sm:$0xff]
        %v524 = vld [vmem:[%s2 + $0x10] sm:$0xff]
        %v525 = vld [vmem:[%s2 + $0x18] sm:$0xff]
        %v526 = vld [vmem:[%s2 + $0x20] sm:$0xff]
        %v527 = vld [vmem:[%s2 + $0x28] sm:$0xff]
        %v528 = vld [vmem:[%s2 + $0x30] sm:$0xff]
        %v529 = vld [vmem:[%s2 + $0x38] sm:$0xff]
        %531 = vset.pattern.permute.xlu0 0
        %532 = vperm.xlu0 %531, %v522
        %v533 = vpop.permute.xlu0 %532
        %536 = vset.pattern.permute.xlu0 0
        %537 = vperm.xlu0 %536, %v523
        %v538 = vpop.permute.xlu0 %537
        %541 = vset.pattern.permute.xlu0 0
        %542 = vperm.xlu0 %541, %v524
        %v543 = vpop.permute.xlu0 %542
        %546 = vset.pattern.permute.xlu0 0
        %547 = vperm.xlu0 %546, %v525
        %v548 = vpop.permute.xlu0 %547
        %551 = vset.pattern.permute.xlu0 0
        %552 = vperm.xlu0 %551, %v526
        %v553 = vpop.permute.xlu0 %552
        %556 = vset.pattern.permute.xlu0 0
        %557 = vperm.xlu0 %556, %v527
        %v558 = vpop.permute.xlu0 %557
        %561 = vset.pattern.permute.xlu0 0
        %562 = vperm.xlu0 %561, %v528
        %v563 = vpop.permute.xlu0 %562
        %566 = vset.pattern.permute.xlu0 0
        %567 = vperm.xlu0 %566, %v529
        %v568 = vpop.permute.xlu0 %567
        %v570 = vadd.f32 %v514, %v533
        %v571 = vadd.f32 %v515, %v538
        %v572 = vadd.f32 %v516, %v543
        %v573 = vadd.f32 %v517, %v548
        %v574 = vadd.f32 %v518, %v553
        %v575 = vadd.f32 %v519, %v558
        %v576 = vadd.f32 %v520, %v563
        %v577 = vadd.f32 %v521, %v568
        %v578 = vmax.f32 %v570, 0.0
        %v579 = vmax.f32 %v571, 0.0
        %v580 = vmax.f32 %v572, 0.0
        %v581 = vmax.f32 %v573, 0.0
        %v582 = vmax.f32 %v574, 0.0
        %v583 = vmax.f32 %v575, 0.0
        %v584 = vmax.f32 %v576, 0.0
        %v585 = vmax.f32 %v577, 0.0
        %v586 = vld [vmem:[%s3] sm:$0xf]
        %v587 = vld [vmem:[%s3 + $0x4] sm:$0xf]
        %v588 = vld [vmem:[%s3 + $0x8] sm:$0xf]
        %v589 = vld [vmem:[%s3 + $0xc] sm:$0xf]
        %v590 = vld [vmem:[%s3 + $0x10] sm:$0xf]
        %v591 = vld [vmem:[%s3 + $0x14] sm:$0xf]
        %v592 = vld [vmem:[%s3 + $0x18] sm:$0xf]
        %v593 = vld [vmem:[%s3 + $0x1c] sm:$0xf]
        %v594 = vpack.c.bf16 %v579, %v578
        %v595 = vpack.c.bf16 %v581, %v580
        %v596 = vpack.c.bf16 %v583, %v582
        %v597 = vpack.c.bf16 %v585, %v584
        %v598 = vld [vmem:[%s4] sm:$0xff]
        %v599 = vld [vmem:[%s4 + $0x8] sm:$0xff]
        %v600 = vld [vmem:[%s4 + $0x10] sm:$0xff]
        %v601 = vld [vmem:[%s4 + $0x18] sm:$0xff]
        %v602 = vld [vmem:[%s4 + $0x20] sm:$0xff]
        %v603 = vld [vmem:[%s4 + $0x28] sm:$0xff]
        %v604 = vld [vmem:[%s4 + $0x30] sm:$0xff]
        %v605 = vld [vmem:[%s4 + $0x38] sm:$0xff]
        %607 = vset.pattern.permute.xlu0 0
        %608 = vperm.xlu0 %607, %v598
        %v609 = vpop.permute.xlu0 %608
        %612 = vset.pattern.permute.xlu0 0
        %613 = vperm.xlu0 %612, %v599
        %v614 = vpop.permute.xlu0 %613
        %617 = vset.pattern.permute.xlu0 0
        %618 = vperm.xlu0 %617, %v600
        %v619 = vpop.permute.xlu0 %618
        %622 = vset.pattern.permute.xlu0 0
        %623 = vperm.xlu0 %622, %v601
        %v624 = vpop.permute.xlu0 %623
        %627 = vset.pattern.permute.xlu0 0
        %628 = vperm.xlu0 %627, %v602
        %v629 = vpop.permute.xlu0 %628
        %632 = vset.pattern.permute.xlu0 0
        %633 = vperm.xlu0 %632, %v603
        %v634 = vpop.permute.xlu0 %633
        %637 = vset.pattern.permute.xlu0 0
        %638 = vperm.xlu0 %637, %v604
        %v639 = vpop.permute.xlu0 %638
        %642 = vset.pattern.permute.xlu0 0
        %643 = vperm.xlu0 %642, %v605
        %v644 = vpop.permute.xlu0 %643
        %v654 = vunpack.c.l.b16 %v586
        %v655 = vunpack.c.l.b16 %v587
        %v656 = vunpack.c.l.b16 %v588
        %v657 = vunpack.c.l.b16 %v589
        %v658 = vunpack.c.l.b16 %v590
        %v659 = vunpack.c.l.b16 %v591
        %v660 = vunpack.c.l.b16 %v592
        %v661 = vunpack.c.l.b16 %v593
        %v662 = vpack.c.b16 %v655, %v654
        %v663 = vpack.c.b16 %v657, %v656
        %v664 = vpack.c.b16 %v659, %v658
        %v665 = vpack.c.b16 %v661, %v660
        %vm666 = vcmask 523264
        %v668 = vsel %vm666, %v662, 0
        %v671 = vsel %vm666, %v663, 0
        %v674 = vsel %vm666, %v664, 0
        %v677 = vsel %vm666, %v665, 0
        %679 = vmatprep.subr.bf16.mxu0 0
        %680 = vmatpush1.bf16.msra.mxu0 %v594
        %681 = vmatprep.subr.bf16.mxu0 0
        %682 = vmatpush1.bf16.msra.mxu0 %v595
        %683 = vmatprep.subr.bf16.mxu0 0
        %684 = vmatpush1.bf16.msra.mxu0 %v596
        %685 = vmatprep.subr.bf16.mxu0 0
        %686 = vmatpush1.bf16.msra.mxu0 %v597
        %687 = vmatprep.subr.bf16.mxu0 0
        %688 = vmatpush1.bf16.msra.mxu0 0
        %689 = vmatprep.subr.bf16.mxu0 0
        %690 = vmatpush1.bf16.msra.mxu0 0
        %691 = vmatprep.subr.bf16.mxu0 0
        %692 = vmatpush1.bf16.msra.mxu0 0
        %693 = vmatprep.subr.bf16.mxu0 0
        %694 = vmatpush1.bf16.msra.mxu0 0
        %695 = vmatprep.subr.bf16.mxu0 0
        %696 = vmatpush1.bf16.msra.mxu0 0
        %697 = vmatprep.subr.bf16.mxu0 0
        %698 = vmatpush1.bf16.msra.mxu0 0
        %699 = vmatprep.subr.bf16.mxu0 0
        %700 = vmatpush1.bf16.msra.mxu0 0
        %701 = vmatprep.subr.bf16.mxu0 0
        %702 = vmatpush1.bf16.msra.mxu0 0
        %703 = vmatprep.subr.bf16.mxu0 0
        %704 = vmatpush1.bf16.msra.mxu0 0
        %705 = vmatprep.subr.bf16.mxu0 0
        %706 = vmatpush1.bf16.msra.mxu0 0
        %707 = vmatprep.subr.bf16.mxu0 0
        %708 = vmatpush1.bf16.msra.mxu0 0
        %709 = vmatprep.subr.bf16.mxu0 0
        %710 = vmatpush1.bf16.msra.mxu0 0
        %711 = vmatprep.mubr.bf16.mxu0 0
        %712 = vmatmul.mubr.bf16.gmra.mrb[0].mxu0 %v668
        %v713 = vpop.f32.mrb[0].mxu0
        %v714 = vadd.f32 %v609, %v713
        %v715 = vpop.f32.mrb[0].mxu0
        %v716 = vpop.f32.mrb[0].mxu0
        %v717 = vadd.f32 %v614, %v716
        %v718 = vpop.f32.mrb[0].mxu0
        %719 = vmatprep.mubr.bf16.mxu0 0
        %720 = vmatmul.mubr.bf16.gmra.mrb[0].mxu0 %v671
        %v721 = vpop.f32.mrb[0].mxu0
        %v722 = vadd.f32 %v619, %v721
        %v723 = vpop.f32.mrb[0].mxu0
        %v724 = vpop.f32.mrb[0].mxu0
        %v725 = vadd.f32 %v624, %v724
        %v726 = vpop.f32.mrb[0].mxu0
        %727 = vmatprep.mubr.bf16.mxu0 0
        %728 = vmatmul.mubr.bf16.gmra.mrb[0].mxu0 %v674
        %v729 = vpop.f32.mrb[0].mxu0
        %v730 = vadd.f32 %v629, %v729
        %v731 = vpop.f32.mrb[0].mxu0
        %v732 = vpop.f32.mrb[0].mxu0
        %v733 = vadd.f32 %v634, %v732
        %v734 = vpop.f32.mrb[0].mxu0
        %735 = vmatprep.mubr.bf16.mxu0 0
        %736 = vmatmul.mubr.bf16.gmra.mrb[0].mxu0 %v677
        %v737 = vpop.f32.mrb[0].mxu0
        %v738 = vadd.f32 %v639, %v737
        %v739 = vpop.f32.mrb[0].mxu0
        %v740 = vpop.f32.mrb[0].mxu0
        %v741 = vadd.f32 %v644, %v740
        %v742 = vpop.f32.mrb[0].mxu0
        %743 = vdwg.mxu0
        %v744 = vmax.f32 %v714, 0.0
        %v745 = vmax.f32 %v717, 0.0
        %v746 = vmax.f32 %v722, 0.0
        %v747 = vmax.f32 %v725, 0.0
        %v748 = vmax.f32 %v730, 0.0
        %v749 = vmax.f32 %v733, 0.0
        %v750 = vmax.f32 %v738, 0.0
        %v751 = vmax.f32 %v741, 0.0
        %v752 = vld [vmem:[%s5] sm:$0xf]
        %v753 = vld [vmem:[%s5 + $0x4] sm:$0xf]
        %v754 = vld [vmem:[%s5 + $0x8] sm:$0xf]
        %v755 = vld [vmem:[%s5 + $0xc] sm:$0xf]
        %v756 = vld [vmem:[%s5 + $0x10] sm:$0xf]
        %v757 = vld [vmem:[%s5 + $0x14] sm:$0xf]
        %v758 = vld [vmem:[%s5 + $0x18] sm:$0xf]
        %v759 = vld [vmem:[%s5 + $0x1c] sm:$0xf]
        %v760 = vld [vmem:[%s5 + $0x20] sm:$0xf]
        %v761 = vld [vmem:[%s5 + $0x24] sm:$0xf]
        %v762 = vld [vmem:[%s5 + $0x28] sm:$0xf]
        %v763 = vld [vmem:[%s5 + $0x2c] sm:$0xf]
        %v764 = vld [vmem:[%s5 + $0x30] sm:$0xf]
        %v765 = vld [vmem:[%s5 + $0x34] sm:$0xf]
        %v766 = vld [vmem:[%s5 + $0x38] sm:$0xf]
        %v767 = vld [vmem:[%s5 + $0x3c] sm:$0xf]
        %v768 = vpack.c.bf16 %v745, %v744
        %v769 = vpack.c.bf16 %v747, %v746
        %v770 = vpack.c.bf16 %v749, %v748
        %v771 = vpack.c.bf16 %v751, %v750
        %v772 = vld [vmem:[%s6] sm:$0xff]
        %v773 = vld [vmem:[%s6 + $0x8] sm:$0xff]
        %v774 = vld [vmem:[%s6 + $0x10] sm:$0xff]
        %v775 = vld [vmem:[%s6 + $0x18] sm:$0xff]
        %v776 = vld [vmem:[%s6 + $0x20] sm:$0xff]
        %v777 = vld [vmem:[%s6 + $0x28] sm:$0xff]
        %v778 = vld [vmem:[%s6 + $0x30] sm:$0xff]
        %v779 = vld [vmem:[%s6 + $0x38] sm:$0xff]
        %v780 = vld [vmem:[%s6 + $0x40] sm:$0xff]
        %v781 = vld [vmem:[%s6 + $0x48] sm:$0xff]
        %v782 = vld [vmem:[%s6 + $0x50] sm:$0xff]
        %v783 = vld [vmem:[%s6 + $0x58] sm:$0xff]
        %v784 = vld [vmem:[%s6 + $0x60] sm:$0xff]
        %v785 = vld [vmem:[%s6 + $0x68] sm:$0xff]
        %v786 = vld [vmem:[%s6 + $0x70] sm:$0xff]
        %v787 = vld [vmem:[%s6 + $0x78] sm:$0xff]
        %789 = vset.pattern.permute.xlu0 0
        %790 = vperm.xlu0 %789, %v772
        %v791 = vpop.permute.xlu0 %790
        %794 = vset.pattern.permute.xlu0 0
        %795 = vperm.xlu0 %794, %v773
        %v796 = vpop.permute.xlu0 %795
        %799 = vset.pattern.permute.xlu0 0
        %800 = vperm.xlu0 %799, %v774
        %v801 = vpop.permute.xlu0 %800
        %804 = vset.pattern.permute.xlu0 0
        %805 = vperm.xlu0 %804, %v775
        %v806 = vpop.permute.xlu0 %805
        %809 = vset.pattern.permute.xlu0 0
        %810 = vperm.xlu0 %809, %v776
        %v811 = vpop.permute.xlu0 %810
        %814 = vset.pattern.permute.xlu0 0
        %815 = vperm.xlu0 %814, %v777
        %v816 = vpop.permute.xlu0 %815
        %819 = vset.pattern.permute.xlu0 0
        %820 = vperm.xlu0 %819, %v778
        %v821 = vpop.permute.xlu0 %820
        %824 = vset.pattern.permute.xlu0 0
        %825 = vperm.xlu0 %824, %v779
        %v826 = vpop.permute.xlu0 %825
        %829 = vset.pattern.permute.xlu0 0
        %830 = vperm.xlu0 %829, %v780
        %v831 = vpop.permute.xlu0 %830
        %834 = vset.pattern.permute.xlu0 0
        %835 = vperm.xlu0 %834, %v781
        %v836 = vpop.permute.xlu0 %835
        %839 = vset.pattern.permute.xlu0 0
        %840 = vperm.xlu0 %839, %v782
        %v841 = vpop.permute.xlu0 %840
        %844 = vset.pattern.permute.xlu0 0
        %845 = vperm.xlu0 %844, %v783
        %v846 = vpop.permute.xlu0 %845
        %849 = vset.pattern.permute.xlu0 0
        %850 = vperm.xlu0 %849, %v784
        %v851 = vpop.permute.xlu0 %850
        %854 = vset.pattern.permute.xlu0 0
        %855 = vperm.xlu0 %854, %v785
        %v856 = vpop.permute.xlu0 %855
        %859 = vset.pattern.permute.xlu0 0
        %860 = vperm.xlu0 %859, %v786
        %v861 = vpop.permute.xlu0 %860
        %864 = vset.pattern.permute.xlu0 0
        %865 = vperm.xlu0 %864, %v787
        %v866 = vpop.permute.xlu0 %865
        %v884 = vunpack.c.l.b16 %v752
        %v885 = vunpack.c.l.b16 %v753
        %v886 = vunpack.c.l.b16 %v754
        %v887 = vunpack.c.l.b16 %v755
        %v888 = vunpack.c.l.b16 %v756
        %v889 = vunpack.c.l.b16 %v757
        %v890 = vunpack.c.l.b16 %v758
        %v891 = vunpack.c.l.b16 %v759
        %v892 = vunpack.c.l.b16 %v760
        %v893 = vunpack.c.l.b16 %v761
        %v894 = vunpack.c.l.b16 %v762
        %v895 = vunpack.c.l.b16 %v763
        %v896 = vunpack.c.l.b16 %v764
        %v897 = vunpack.c.l.b16 %v765
        %v898 = vunpack.c.l.b16 %v766
        %v899 = vunpack.c.l.b16 %v767
        %v900 = vpack.c.b16 %v885, %v884
        %v901 = vpack.c.b16 %v887, %v886
        %v902 = vpack.c.b16 %v889, %v888
        %v903 = vpack.c.b16 %v891, %v890
        %v904 = vpack.c.b16 %v893, %v892
        %v905 = vpack.c.b16 %v895, %v894
        %v906 = vpack.c.b16 %v897, %v896
        %v907 = vpack.c.b16 %v899, %v898
        %v909 = vsel %vm666, %v900, 0
        %v912 = vsel %vm666, %v901, 0
        %v915 = vsel %vm666, %v902, 0
        %v918 = vsel %vm666, %v903, 0
        %v921 = vsel %vm666, %v904, 0
        %v924 = vsel %vm666, %v905, 0
        %v927 = vsel %vm666, %v906, 0
        %v930 = vsel %vm666, %v907, 0
        %932 = vmatprep.subr.bf16.mxu0 0
        %933 = vmatpush1.bf16.msra.mxu0 %v768
        %934 = vmatprep.subr.bf16.mxu0 0
        %935 = vmatpush1.bf16.msra.mxu0 %v769
        %936 = vmatprep.subr.bf16.mxu0 0
        %937 = vmatpush1.bf16.msra.mxu0 %v770
        %938 = vmatprep.subr.bf16.mxu0 0
        %939 = vmatpush1.bf16.msra.mxu0 %v771
        %940 = vmatprep.subr.bf16.mxu0 0
        %941 = vmatpush1.bf16.msra.mxu0 0
        %942 = vmatprep.subr.bf16.mxu0 0
        %943 = vmatpush1.bf16.msra.mxu0 0
        %944 = vmatprep.subr.bf16.mxu0 0
        %945 = vmatpush1.bf16.msra.mxu0 0
        %946 = vmatprep.subr.bf16.mxu0 0
        %947 = vmatpush1.bf16.msra.mxu0 0
        %948 = vmatprep.subr.bf16.mxu0 0
        %949 = vmatpush1.bf16.msra.mxu0 0
        %950 = vmatprep.subr.bf16.mxu0 0
        %951 = vmatpush1.bf16.msra.mxu0 0
        %952 = vmatprep.subr.bf16.mxu0 0
        %953 = vmatpush1.bf16.msra.mxu0 0
        %954 = vmatprep.subr.bf16.mxu0 0
        %955 = vmatpush1.bf16.msra.mxu0 0
        %956 = vmatprep.subr.bf16.mxu0 0
        %957 = vmatpush1.bf16.msra.mxu0 0
        %958 = vmatprep.subr.bf16.mxu0 0
        %959 = vmatpush1.bf16.msra.mxu0 0
        %960 = vmatprep.subr.bf16.mxu0 0
        %961 = vmatpush1.bf16.msra.mxu0 0
        %962 = vmatprep.subr.bf16.mxu0 0
        %963 = vmatpush1.bf16.msra.mxu0 0
        %964 = vmatprep.mubr.bf16.mxu0 0
        %965 = vmatmul.mubr.bf16.gmra.mrb[0].mxu0 %v909
        %v966 = vpop.f32.mrb[0].mxu0
        %v967 = vadd.f32 %v791, %v966
        %v968 = vpop.f32.mrb[0].mxu0
        %v969 = vpop.f32.mrb[0].mxu0
        %v970 = vadd.f32 %v796, %v969
        %v971 = vpop.f32.mrb[0].mxu0
        %972 = vmatprep.mubr.bf16.mxu0 0
        %973 = vmatmul.mubr.bf16.gmra.mrb[0].mxu0 %v912
        %v974 = vpop.f32.mrb[0].mxu0
        %v975 = vadd.f32 %v801, %v974
        %v976 = vpop.f32.mrb[0].mxu0
        %v977 = vpop.f32.mrb[0].mxu0
        %v978 = vadd.f32 %v806, %v977
        %v979 = vpop.f32.mrb[0].mxu0
        %980 = vmatprep.mubr.bf16.mxu0 0
        %981 = vmatmul.mubr.bf16.gmra.mrb[0].mxu0 %v915
        %v982 = vpop.f32.mrb[0].mxu0
        %v983 = vadd.f32 %v811, %v982
        %v984 = vpop.f32.mrb[0].mxu0
        %v985 = vpop.f32.mrb[0].mxu0
        %v986 = vadd.f32 %v816, %v985
        %v987 = vpop.f32.mrb[0].mxu0
        %988 = vmatprep.mubr.bf16.mxu0 0
        %989 = vmatmul.mubr.bf16.gmra.mrb[0].mxu0 %v918
        %v990 = vpop.f32.mrb[0].mxu0
        %v991 = vadd.f32 %v821, %v990
        %v992 = vpop.f32.mrb[0].mxu0
        %v993 = vpop.f32.mrb[0].mxu0
        %v994 = vadd.f32 %v826, %v993
        %v995 = vpop.f32.mrb[0].mxu0
        %996 = vmatprep.mubr.bf16.mxu0 0
        %997 = vmatmul.mubr.bf16.gmra.mrb[0].mxu0 %v921
        %v998 = vpop.f32.mrb[0].mxu0
        %v999 = vadd.f32 %v831, %v998
        %v1000 = vpop.f32.mrb[0].mxu0
        %v1001 = vpop.f32.mrb[0].mxu0
        %v1002 = vadd.f32 %v836, %v1001
        %v1003 = vpop.f32.mrb[0].mxu0
        %1004 = vmatprep.mubr.bf16.mxu0 0
        %1005 = vmatmul.mubr.bf16.gmra.mrb[0].mxu0 %v924
        %v1006 = vpop.f32.mrb[0].mxu0
        %v1007 = vadd.f32 %v841, %v1006
        %v1008 = vpop.f32.mrb[0].mxu0
        %v1009 = vpop.f32.mrb[0].mxu0
        %v1010 = vadd.f32 %v846, %v1009
        %v1011 = vpop.f32.mrb[0].mxu0
        %1012 = vmatprep.mubr.bf16.mxu0 0
        %1013 = vmatmul.mubr.bf16.gmra.mrb[0].mxu0 %v927
        %v1014 = vpop.f32.mrb[0].mxu0
        %v1015 = vadd.f32 %v851, %v1014
        %v1016 = vpop.f32.mrb[0].mxu0
        %v1017 = vpop.f32.mrb[0].mxu0
        %v1018 = vadd.f32 %v856, %v1017
        %v1019 = vpop.f32.mrb[0].mxu0
        %1020 = vmatprep.mubr.bf16.mxu0 0
        %1021 = vmatmul.mubr.bf16.gmra.mrb[0].mxu0 %v930
        %v1022 = vpop.f32.mrb[0].mxu0
        %v1023 = vadd.f32 %v861, %v1022
        %v1024 = vpop.f32.mrb[0].mxu0
        %v1025 = vpop.f32.mrb[0].mxu0
        %v1026 = vadd.f32 %v866, %v1025
        %v1027 = vpop.f32.mrb[0].mxu0
        %1028 = vdwg.mxu0
        %v1029 = vmax.f32 %v967, 0.0
        %v1030 = vmax.f32 %v970, 0.0
        %v1031 = vmax.f32 %v975, 0.0
        %v1032 = vmax.f32 %v978, 0.0
        %v1033 = vmax.f32 %v983, 0.0
        %v1034 = vmax.f32 %v986, 0.0
        %v1035 = vmax.f32 %v991, 0.0
        %v1036 = vmax.f32 %v994, 0.0
        %v1037 = vmax.f32 %v999, 0.0
        %v1038 = vmax.f32 %v1002, 0.0
        %v1039 = vmax.f32 %v1007, 0.0
        %v1040 = vmax.f32 %v1010, 0.0
        %v1041 = vmax.f32 %v1015, 0.0
        %v1042 = vmax.f32 %v1018, 0.0
        %v1043 = vmax.f32 %v1023, 0.0
        %v1044 = vmax.f32 %v1026, 0.0
        %v1045 = vld [vmem:[#allocation2] sm:$0xf]
        %v1046 = vld [vmem:[#allocation2 + $0x4] sm:$0xf]
        %v1047 = vld [vmem:[#allocation2 + $0x8] sm:$0xf]
        %v1048 = vld [vmem:[#allocation2 + $0xc] sm:$0xf]
        %v1049 = vld [vmem:[#allocation2 + $0x10] sm:$0xf]
        %v1050 = vld [vmem:[#allocation2 + $0x14] sm:$0xf]
        %v1051 = vld [vmem:[#allocation2 + $0x18] sm:$0xf]
        %v1052 = vld [vmem:[#allocation2 + $0x1c] sm:$0xf]
        %v1053 = vld [vmem:[#allocation2 + $0x20] sm:$0xf]
        %v1054 = vld [vmem:[#allocation2 + $0x24] sm:$0xf]
        %v1055 = vld [vmem:[#allocation2 + $0x28] sm:$0xf]
        %v1056 = vld [vmem:[#allocation2 + $0x2c] sm:$0xf]
        %v1057 = vld [vmem:[#allocation2 + $0x30] sm:$0xf]
        %v1058 = vld [vmem:[#allocation2 + $0x34] sm:$0xf]
        %v1059 = vld [vmem:[#allocation2 + $0x38] sm:$0xf]
        %v1060 = vld [vmem:[#allocation2 + $0x3c] sm:$0xf]
        %v1061 = vld [vmem:[#allocation2 + $0x40] sm:$0xf]
        %v1062 = vld [vmem:[#allocation2 + $0x44] sm:$0xf]
        %v1063 = vld [vmem:[#allocation2 + $0x48] sm:$0xf]
        %v1064 = vld [vmem:[#allocation2 + $0x4c] sm:$0xf]
        %v1065 = vld [vmem:[#allocation2 + $0x50] sm:$0xf]
        %v1066 = vld [vmem:[#allocation2 + $0x54] sm:$0xf]
        %v1067 = vld [vmem:[#allocation2 + $0x58] sm:$0xf]
        %v1068 = vld [vmem:[#allocation2 + $0x5c] sm:$0xf]
        %v1069 = vld [vmem:[#allocation2 + $0x60] sm:$0xf]
        %v1070 = vld [vmem:[#allocation2 + $0x64] sm:$0xf]
        %v1071 = vld [vmem:[#allocation2 + $0x68] sm:$0xf]
        %v1072 = vld [vmem:[#allocation2 + $0x6c] sm:$0xf]
        %v1073 = vld [vmem:[#allocation2 + $0x70] sm:$0xf]
        %v1074 = vld [vmem:[#allocation2 + $0x74] sm:$0xf]
        %v1075 = vld [vmem:[#allocation2 + $0x78] sm:$0xf]
        %v1076 = vld [vmem:[#allocation2 + $0x7c] sm:$0xf]
        %v1077 = vld [vmem:[#allocation2 + $0x80] sm:$0xf]
        %v1078 = vld [vmem:[#allocation2 + $0x84] sm:$0xf]
        %v1079 = vld [vmem:[#allocation2 + $0x88] sm:$0xf]
        %v1080 = vld [vmem:[#allocation2 + $0x8c] sm:$0xf]
        %v1081 = vld [vmem:[#allocation2 + $0x90] sm:$0xf]
        %v1082 = vld [vmem:[#allocation2 + $0x94] sm:$0xf]
        %v1083 = vld [vmem:[#allocation2 + $0x98] sm:$0xf]
        %v1084 = vld [vmem:[#allocation2 + $0x9c] sm:$0xf]
        %v1085 = vld [vmem:[#allocation2 + $0xa0] sm:$0xf]
        %v1086 = vld [vmem:[#allocation2 + $0xa4] sm:$0xf]
        %v1087 = vld [vmem:[#allocation2 + $0xa8] sm:$0xf]
        %v1088 = vld [vmem:[#allocation2 + $0xac] sm:$0xf]
        %v1089 = vld [vmem:[#allocation2 + $0xb0] sm:$0xf]
        %v1090 = vld [vmem:[#allocation2 + $0xb4] sm:$0xf]
        %v1091 = vld [vmem:[#allocation2 + $0xb8] sm:$0xf]
        %v1092 = vld [vmem:[#allocation2 + $0xbc] sm:$0xf]
        %v1093 = vld [vmem:[#allocation2 + $0xc0] sm:$0xf]
        %v1094 = vld [vmem:[#allocation2 + $0xc4] sm:$0xf]
        %v1095 = vld [vmem:[#allocation2 + $0xc8] sm:$0xf]
        %v1096 = vld [vmem:[#allocation2 + $0xcc] sm:$0xf]
        %v1097 = vld [vmem:[#allocation2 + $0xd0] sm:$0xf]
        %v1098 = vld [vmem:[#allocation2 + $0xd4] sm:$0xf]
        %v1099 = vld [vmem:[#allocation2 + $0xd8] sm:$0xf]
        %v1100 = vld [vmem:[#allocation2 + $0xdc] sm:$0xf]
        %v1101 = vld [vmem:[#allocation2 + $0xe0] sm:$0xf]
        %v1102 = vld [vmem:[#allocation2 + $0xe4] sm:$0xf]
        %v1103 = vld [vmem:[#allocation2 + $0xe8] sm:$0xf]
        %v1104 = vld [vmem:[#allocation2 + $0xec] sm:$0xf]
        %v1105 = vld [vmem:[#allocation2 + $0xf0] sm:$0xf]
        %v1106 = vld [vmem:[#allocation2 + $0xf4] sm:$0xf]
        %v1107 = vld [vmem:[#allocation2 + $0xf8] sm:$0xf]
        %v1108 = vld [vmem:[#allocation2 + $0xfc] sm:$0xf]
        %v1109 = vld [vmem:[#allocation2 + $0x100] sm:$0xf]
        %v1110 = vld [vmem:[#allocation2 + $0x104] sm:$0xf]
        %v1111 = vld [vmem:[#allocation2 + $0x108] sm:$0xf]
        %v1112 = vld [vmem:[#allocation2 + $0x10c] sm:$0xf]
        %v1113 = vld [vmem:[#allocation2 + $0x110] sm:$0xf]
        %v1114 = vld [vmem:[#allocation2 + $0x114] sm:$0xf]
        %v1115 = vld [vmem:[#allocation2 + $0x118] sm:$0xf]
        %v1116 = vld [vmem:[#allocation2 + $0x11c] sm:$0xf]
        %v1117 = vld [vmem:[#allocation2 + $0x120] sm:$0xf]
        %v1118 = vld [vmem:[#allocation2 + $0x124] sm:$0xf]
        %v1119 = vld [vmem:[#allocation2 + $0x128] sm:$0xf]
        %v1120 = vld [vmem:[#allocation2 + $0x12c] sm:$0xf]
        %v1121 = vld [vmem:[#allocation2 + $0x130] sm:$0xf]
        %v1122 = vld [vmem:[#allocation2 + $0x134] sm:$0xf]
        %v1123 = vld [vmem:[#allocation2 + $0x138] sm:$0xf]
        %v1124 = vld [vmem:[#allocation2 + $0x13c] sm:$0xf]
        %v1125 = vld [vmem:[#allocation2 + $0x140] sm:$0xf]
        %v1126 = vld [vmem:[#allocation2 + $0x144] sm:$0xf]
        %v1127 = vld [vmem:[#allocation2 + $0x148] sm:$0xf]
        %v1128 = vld [vmem:[#allocation2 + $0x14c] sm:$0xf]
        %v1129 = vld [vmem:[#allocation2 + $0x150] sm:$0xf]
        %v1130 = vld [vmem:[#allocation2 + $0x154] sm:$0xf]
        %v1131 = vld [vmem:[#allocation2 + $0x158] sm:$0xf]
        %v1132 = vld [vmem:[#allocation2 + $0x15c] sm:$0xf]
        %v1133 = vld [vmem:[#allocation2 + $0x160] sm:$0xf]
        %v1134 = vld [vmem:[#allocation2 + $0x164] sm:$0xf]
        %v1135 = vld [vmem:[#allocation2 + $0x168] sm:$0xf]
        %v1136 = vld [vmem:[#allocation2 + $0x16c] sm:$0xf]
        %v1137 = vld [vmem:[#allocation2 + $0x170] sm:$0xf]
        %v1138 = vld [vmem:[#allocation2 + $0x174] sm:$0xf]
        %v1139 = vld [vmem:[#allocation2 + $0x178] sm:$0xf]
        %v1140 = vld [vmem:[#allocation2 + $0x17c] sm:$0xf]
        %v1141 = vld [vmem:[#allocation2 + $0x180] sm:$0xf]
        %v1142 = vld [vmem:[#allocation2 + $0x184] sm:$0xf]
        %v1143 = vld [vmem:[#allocation2 + $0x188] sm:$0xf]
        %v1144 = vld [vmem:[#allocation2 + $0x18c] sm:$0xf]
        %v1145 = vld [vmem:[#allocation2 + $0x190] sm:$0xf]
        %v1146 = vld [vmem:[#allocation2 + $0x194] sm:$0xf]
        %v1147 = vld [vmem:[#allocation2 + $0x198] sm:$0xf]
        %v1148 = vld [vmem:[#allocation2 + $0x19c] sm:$0xf]
        %v1149 = vld [vmem:[#allocation2 + $0x1a0] sm:$0xf]
        %v1150 = vld [vmem:[#allocation2 + $0x1a4] sm:$0xf]
        %v1151 = vld [vmem:[#allocation2 + $0x1a8] sm:$0xf]
        %v1152 = vld [vmem:[#allocation2 + $0x1ac] sm:$0xf]
        %v1153 = vld [vmem:[#allocation2 + $0x1b0] sm:$0xf]
        %v1154 = vld [vmem:[#allocation2 + $0x1b4] sm:$0xf]
        %v1155 = vld [vmem:[#allocation2 + $0x1b8] sm:$0xf]
        %v1156 = vld [vmem:[#allocation2 + $0x1bc] sm:$0xf]
        %v1157 = vld [vmem:[#allocation2 + $0x1c0] sm:$0xf]
        %v1158 = vld [vmem:[#allocation2 + $0x1c4] sm:$0xf]
        %v1159 = vld [vmem:[#allocation2 + $0x1c8] sm:$0xf]
        %v1160 = vld [vmem:[#allocation2 + $0x1cc] sm:$0xf]
        %v1161 = vld [vmem:[#allocation2 + $0x1d0] sm:$0xf]
        %v1162 = vld [vmem:[#allocation2 + $0x1d4] sm:$0xf]
        %v1163 = vld [vmem:[#allocation2 + $0x1d8] sm:$0xf]
        %v1164 = vld [vmem:[#allocation2 + $0x1dc] sm:$0xf]
        %v1165 = vld [vmem:[#allocation2 + $0x1e0] sm:$0xf]
        %v1166 = vld [vmem:[#allocation2 + $0x1e4] sm:$0xf]
        %v1167 = vld [vmem:[#allocation2 + $0x1e8] sm:$0xf]
        %v1168 = vld [vmem:[#allocation2 + $0x1ec] sm:$0xf]
        %v1169 = vld [vmem:[#allocation2 + $0x1f0] sm:$0xf]
        %v1170 = vld [vmem:[#allocation2 + $0x1f4] sm:$0xf]
        %v1171 = vld [vmem:[#allocation2 + $0x1f8] sm:$0xf]
        %v1172 = vld [vmem:[#allocation2 + $0x1fc] sm:$0xf]
        %v1173 = vpack.c.bf16 %v1030, %v1029
        %v1174 = vpack.c.bf16 %v1032, %v1031
        %v1175 = vpack.c.bf16 %v1034, %v1033
        %v1176 = vpack.c.bf16 %v1036, %v1035
        %v1177 = vpack.c.bf16 %v1038, %v1037
        %v1178 = vpack.c.bf16 %v1040, %v1039
        %v1179 = vpack.c.bf16 %v1042, %v1041
        %v1180 = vpack.c.bf16 %v1044, %v1043
        %v1309 = vunpack.c.l.b16 %v1045
        %v1310 = vunpack.c.l.b16 %v1046
        %v1311 = vunpack.c.l.b16 %v1047
        %v1312 = vunpack.c.l.b16 %v1048
        %v1313 = vunpack.c.l.b16 %v1049
        %v1314 = vunpack.c.l.b16 %v1050
        %v1315 = vunpack.c.l.b16 %v1051
        %v1316 = vunpack.c.l.b16 %v1052
        %v1317 = vunpack.c.l.b16 %v1053
        %v1318 = vunpack.c.l.b16 %v1054
        %v1319 = vunpack.c.l.b16 %v1055
        %v1320 = vunpack.c.l.b16 %v1056
        %v1321 = vunpack.c.l.b16 %v1057
        %v1322 = vunpack.c.l.b16 %v1058
        %v1323 = vunpack.c.l.b16 %v1059
        %v1324 = vunpack.c.l.b16 %v1060
        %v1325 = vunpack.c.l.b16 %v1061
        %v1326 = vunpack.c.l.b16 %v1062
        %v1327 = vunpack.c.l.b16 %v1063
        %v1328 = vunpack.c.l.b16 %v1064
        %v1329 = vunpack.c.l.b16 %v1065
        %v1330 = vunpack.c.l.b16 %v1066
        %v1331 = vunpack.c.l.b16 %v1067
        %v1332 = vunpack.c.l.b16 %v1068
        %v1333 = vunpack.c.l.b16 %v1069
        %v1334 = vunpack.c.l.b16 %v1070
        %v1335 = vunpack.c.l.b16 %v1071
        %v1336 = vunpack.c.l.b16 %v1072
        %v1337 = vunpack.c.l.b16 %v1073
        %v1338 = vunpack.c.l.b16 %v1074
        %v1339 = vunpack.c.l.b16 %v1075
        %v1340 = vunpack.c.l.b16 %v1076
        %v1341 = vunpack.c.l.b16 %v1077
        %v1342 = vunpack.c.l.b16 %v1078
        %v1343 = vunpack.c.l.b16 %v1079
        %v1344 = vunpack.c.l.b16 %v1080
        %v1345 = vunpack.c.l.b16 %v1081
        %v1346 = vunpack.c.l.b16 %v1082
        %v1347 = vunpack.c.l.b16 %v1083
        %v1348 = vunpack.c.l.b16 %v1084
        %v1349 = vunpack.c.l.b16 %v1085
        %v1350 = vunpack.c.l.b16 %v1086
        %v1351 = vunpack.c.l.b16 %v1087
        %v1352 = vunpack.c.l.b16 %v1088
        %v1353 = vunpack.c.l.b16 %v1089
        %v1354 = vunpack.c.l.b16 %v1090
        %v1355 = vunpack.c.l.b16 %v1091
        %v1356 = vunpack.c.l.b16 %v1092
        %v1357 = vunpack.c.l.b16 %v1093
        %v1358 = vunpack.c.l.b16 %v1094
        %v1359 = vunpack.c.l.b16 %v1095
        %v1360 = vunpack.c.l.b16 %v1096
        %v1361 = vunpack.c.l.b16 %v1097
        %v1362 = vunpack.c.l.b16 %v1098
        %v1363 = vunpack.c.l.b16 %v1099
        %v1364 = vunpack.c.l.b16 %v1100
        %v1365 = vunpack.c.l.b16 %v1101
        %v1366 = vunpack.c.l.b16 %v1102
        %v1367 = vunpack.c.l.b16 %v1103
        %v1368 = vunpack.c.l.b16 %v1104
        %v1369 = vunpack.c.l.b16 %v1105
        %v1370 = vunpack.c.l.b16 %v1106
        %v1371 = vunpack.c.l.b16 %v1107
        %v1372 = vunpack.c.l.b16 %v1108
        %v1373 = vunpack.c.l.b16 %v1109
        %v1374 = vunpack.c.l.b16 %v1110
        %v1375 = vunpack.c.l.b16 %v1111
        %v1376 = vunpack.c.l.b16 %v1112
        %v1377 = vunpack.c.l.b16 %v1113
        %v1378 = vunpack.c.l.b16 %v1114
        %v1379 = vunpack.c.l.b16 %v1115
        %v1380 = vunpack.c.l.b16 %v1116
        %v1381 = vunpack.c.l.b16 %v1117
        %v1382 = vunpack.c.l.b16 %v1118
        %v1383 = vunpack.c.l.b16 %v1119
        %v1384 = vunpack.c.l.b16 %v1120
        %v1385 = vunpack.c.l.b16 %v1121
        %v1386 = vunpack.c.l.b16 %v1122
        %v1387 = vunpack.c.l.b16 %v1123
        %v1388 = vunpack.c.l.b16 %v1124
        %v1389 = vunpack.c.l.b16 %v1125
        %v1390 = vunpack.c.l.b16 %v1126
        %v1391 = vunpack.c.l.b16 %v1127
        %v1392 = vunpack.c.l.b16 %v1128
        %v1393 = vunpack.c.l.b16 %v1129
        %v1394 = vunpack.c.l.b16 %v1130
        %v1395 = vunpack.c.l.b16 %v1131
        %v1396 = vunpack.c.l.b16 %v1132
        %v1397 = vunpack.c.l.b16 %v1133
        %v1398 = vunpack.c.l.b16 %v1134
        %v1399 = vunpack.c.l.b16 %v1135
        %v1400 = vunpack.c.l.b16 %v1136
        %v1401 = vunpack.c.l.b16 %v1137
        %v1402 = vunpack.c.l.b16 %v1138
        %v1403 = vunpack.c.l.b16 %v1139
        %v1404 = vunpack.c.l.b16 %v1140
        %v1405 = vunpack.c.l.b16 %v1141
        %v1406 = vunpack.c.l.b16 %v1142
        %v1407 = vunpack.c.l.b16 %v1143
        %v1408 = vunpack.c.l.b16 %v1144
        %v1409 = vunpack.c.l.b16 %v1145
        %v1410 = vunpack.c.l.b16 %v1146
        %v1411 = vunpack.c.l.b16 %v1147
        %v1412 = vunpack.c.l.b16 %v1148
        %v1413 = vunpack.c.l.b16 %v1149
        %v1414 = vunpack.c.l.b16 %v1150
        %v1415 = vunpack.c.l.b16 %v1151
        %v1416 = vunpack.c.l.b16 %v1152
        %v1417 = vunpack.c.l.b16 %v1153
        %v1418 = vunpack.c.l.b16 %v1154
        %v1419 = vunpack.c.l.b16 %v1155
        %v1420 = vunpack.c.l.b16 %v1156
        %v1421 = vunpack.c.l.b16 %v1157
        %v1422 = vunpack.c.l.b16 %v1158
        %v1423 = vunpack.c.l.b16 %v1159
        %v1424 = vunpack.c.l.b16 %v1160
        %v1425 = vunpack.c.l.b16 %v1161
        %v1426 = vunpack.c.l.b16 %v1162
        %v1427 = vunpack.c.l.b16 %v1163
        %v1428 = vunpack.c.l.b16 %v1164
        %v1429 = vunpack.c.l.b16 %v1165
        %v1430 = vunpack.c.l.b16 %v1166
        %v1431 = vunpack.c.l.b16 %v1167
        %v1432 = vunpack.c.l.b16 %v1168
        %v1433 = vunpack.c.l.b16 %v1169
        %v1434 = vunpack.c.l.b16 %v1170
        %v1435 = vunpack.c.l.b16 %v1171
        %v1436 = vunpack.c.l.b16 %v1172
        %v1437 = vpack.c.b16 %v1310, %v1309
        %v1438 = vpack.c.b16 %v1312, %v1311
        %v1439 = vpack.c.b16 %v1314, %v1313
        %v1440 = vpack.c.b16 %v1316, %v1315
        %v1441 = vpack.c.b16 %v1318, %v1317
        %v1442 = vpack.c.b16 %v1320, %v1319
        %v1443 = vpack.c.b16 %v1322, %v1321
        %v1444 = vpack.c.b16 %v1324, %v1323
        %v1445 = vpack.c.b16 %v1326, %v1325
        %v1446 = vpack.c.b16 %v1328, %v1327
        %v1447 = vpack.c.b16 %v1330, %v1329
        %v1448 = vpack.c.b16 %v1332, %v1331
        %v1449 = vpack.c.b16 %v1334, %v1333
        %v1450 = vpack.c.b16 %v1336, %v1335
        %v1451 = vpack.c.b16 %v1338, %v1337
        %v1452 = vpack.c.b16 %v1340, %v1339
        %v1453 = vpack.c.b16 %v1342, %v1341
        %v1454 = vpack.c.b16 %v1344, %v1343
        %v1455 = vpack.c.b16 %v1346, %v1345
        %v1456 = vpack.c.b16 %v1348, %v1347
        %v1457 = vpack.c.b16 %v1350, %v1349
        %v1458 = vpack.c.b16 %v1352, %v1351
        %v1459 = vpack.c.b16 %v1354, %v1353
        %v1460 = vpack.c.b16 %v1356, %v1355
        %v1461 = vpack.c.b16 %v1358, %v1357
        %v1462 = vpack.c.b16 %v1360, %v1359
        %v1463 = vpack.c.b16 %v1362, %v1361
        %v1464 = vpack.c.b16 %v1364, %v1363
        %v1465 = vpack.c.b16 %v1366, %v1365
        %v1466 = vpack.c.b16 %v1368, %v1367
        %v1467 = vpack.c.b16 %v1370, %v1369
        %v1468 = vpack.c.b16 %v1372, %v1371
        %v1469 = vpack.c.b16 %v1374, %v1373
        %v1470 = vpack.c.b16 %v1376, %v1375
        %v1471 = vpack.c.b16 %v1378, %v1377
        %v1472 = vpack.c.b16 %v1380, %v1379
        %v1473 = vpack.c.b16 %v1382, %v1381
        %v1474 = vpack.c.b16 %v1384, %v1383
        %v1475 = vpack.c.b16 %v1386, %v1385
        %v1476 = vpack.c.b16 %v1388, %v1387
        %v1477 = vpack.c.b16 %v1390, %v1389
        %v1478 = vpack.c.b16 %v1392, %v1391
        %v1479 = vpack.c.b16 %v1394, %v1393
        %v1480 = vpack.c.b16 %v1396, %v1395
        %v1481 = vpack.c.b16 %v1398, %v1397
        %v1482 = vpack.c.b16 %v1400, %v1399
        %v1483 = vpack.c.b16 %v1402, %v1401
        %v1484 = vpack.c.b16 %v1404, %v1403
        %v1485 = vpack.c.b16 %v1406, %v1405
        %v1486 = vpack.c.b16 %v1408, %v1407
        %v1487 = vpack.c.b16 %v1410, %v1409
        %v1488 = vpack.c.b16 %v1412, %v1411
        %v1489 = vpack.c.b16 %v1414, %v1413
        %v1490 = vpack.c.b16 %v1416, %v1415
        %v1491 = vpack.c.b16 %v1418, %v1417
        %v1492 = vpack.c.b16 %v1420, %v1419
        %v1493 = vpack.c.b16 %v1422, %v1421
        %v1494 = vpack.c.b16 %v1424, %v1423
        %v1495 = vpack.c.b16 %v1426, %v1425
        %v1496 = vpack.c.b16 %v1428, %v1427
        %v1497 = vpack.c.b16 %v1430, %v1429
        %v1498 = vpack.c.b16 %v1432, %v1431
        %v1499 = vpack.c.b16 %v1434, %v1433
        %v1500 = vpack.c.b16 %v1436, %v1435
        %1565 = vmatprep.subr.bf16.mxu0 0
        %1566 = vmatpush1.bf16.msra.mxu0 %v1173
        %1567 = vmatprep.subr.bf16.mxu0 0
        %1568 = vmatpush1.bf16.msra.mxu0 %v1174
        %1569 = vmatprep.subr.bf16.mxu0 0
        %1570 = vmatpush1.bf16.msra.mxu0 %v1175
        %1571 = vmatprep.subr.bf16.mxu0 0
        %1572 = vmatpush1.bf16.msra.mxu0 %v1176
        %1573 = vmatprep.subr.bf16.mxu0 0
        %1574 = vmatpush1.bf16.msra.mxu0 %v1177
        %1575 = vmatprep.subr.bf16.mxu0 0
        %1576 = vmatpush1.bf16.msra.mxu0 %v1178
        %1577 = vmatprep.subr.bf16.mxu0 0
        %1578 = vmatpush1.bf16.msra.mxu0 %v1179
        %1579 = vmatprep.subr.bf16.mxu0 0
        %1580 = vmatpush1.bf16.msra.mxu0 %v1180
        %1581 = vmatprep.subr.bf16.mxu0 0
        %1582 = vmatpush1.bf16.msra.mxu0 0
        %1583 = vmatprep.subr.bf16.mxu0 0
        %1584 = vmatpush1.bf16.msra.mxu0 0
        %1585 = vmatprep.subr.bf16.mxu0 0
        %1586 = vmatpush1.bf16.msra.mxu0 0
        %1587 = vmatprep.subr.bf16.mxu0 0
        %1588 = vmatpush1.bf16.msra.mxu0 0
        %1589 = vmatprep.subr.bf16.mxu0 0
        %1590 = vmatpush1.bf16.msra.mxu0 0
        %1591 = vmatprep.subr.bf16.mxu0 0
        %1592 = vmatpush1.bf16.msra.mxu0 0
        %1593 = vmatprep.subr.bf16.mxu0 0
        %1594 = vmatpush1.bf16.msra.mxu0 0
        %1595 = vmatprep.subr.bf16.mxu0 0
        %1596 = vmatpush1.bf16.msra.mxu0 0
        %1597 = vmatprep.mubr.bf16.mxu0 0
        %1598 = vmatmul.mubr.bf16.gmra.mrb[0].mxu0 %v1437
        %v1599 = vpop.f32.mrb[0].mxu0
        %v1600 = vadd.f32 0.0, %v1599
        %v1601 = vpop.f32.mrb[0].mxu0
        %v1602 = vpop.f32.mrb[0].mxu0
        %v1603 = vadd.f32 0.0, %v1602
        %v1604 = vpop.f32.mrb[0].mxu0
        %1605 = vmatprep.mubr.bf16.mxu0 0
        %1606 = vmatmul.mubr.bf16.gmra.mrb[0].mxu0 %v1438
        %v1607 = vpop.f32.mrb[0].mxu0
        %v1608 = vadd.f32 0.0, %v1607
        %v1609 = vpop.f32.mrb[0].mxu0
        %v1610 = vpop.f32.mrb[0].mxu0
        %v1611 = vadd.f32 0.0, %v1610
        %v1612 = vpop.f32.mrb[0].mxu0
        %1613 = vmatprep.mubr.bf16.mxu0 0
        %1614 = vmatmul.mubr.bf16.gmra.mrb[0].mxu0 %v1439
        %v1615 = vpop.f32.mrb[0].mxu0
        %v1616 = vadd.f32 0.0, %v1615
        %v1617 = vpop.f32.mrb[0].mxu0
        %v1618 = vpop.f32.mrb[0].mxu0
        %v1619 = vadd.f32 0.0, %v1618
        %v1620 = vpop.f32.mrb[0].mxu0
        %1621 = vmatprep.mubr.bf16.mxu0 0
        %1622 = vmatmul.mubr.bf16.gmra.mrb[0].mxu0 %v1440
        %v1623 = vpop.f32.mrb[0].mxu0
        %v1624 = vadd.f32 0.0, %v1623
        %v1625 = vpop.f32.mrb[0].mxu0
        %v1626 = vpop.f32.mrb[0].mxu0
        %v1627 = vadd.f32 0.0, %v1626
        %v1628 = vpop.f32.mrb[0].mxu0
        %1629 = vmatprep.mubr.bf16.mxu0 0
        %1630 = vmatmul.mubr.bf16.gmra.mrb[0].mxu0 %v1441
        %v1631 = vpop.f32.mrb[0].mxu0
        %v1632 = vadd.f32 0.0, %v1631
        %v1633 = vpop.f32.mrb[0].mxu0
        %v1634 = vpop.f32.mrb[0].mxu0
        %v1635 = vadd.f32 0.0, %v1634
        %v1636 = vpop.f32.mrb[0].mxu0
        %1637 = vmatprep.mubr.bf16.mxu0 0
        %1638 = vmatmul.mubr.bf16.gmra.mrb[0].mxu0 %v1442
        %v1639 = vpop.f32.mrb[0].mxu0
        %v1640 = vadd.f32 0.0, %v1639
        %v1641 = vpop.f32.mrb[0].mxu0
        %v1642 = vpop.f32.mrb[0].mxu0
        %v1643 = vadd.f32 0.0, %v1642
        %v1644 = vpop.f32.mrb[0].mxu0
        %1645 = vmatprep.mubr.bf16.mxu0 0
        %1646 = vmatmul.mubr.bf16.gmra.mrb[0].mxu0 %v1443
        %v1647 = vpop.f32.mrb[0].mxu0
        %v1648 = vadd.f32 0.0, %v1647
        %v1649 = vpop.f32.mrb[0].mxu0
        %v1650 = vpop.f32.mrb[0].mxu0
        %v1651 = vadd.f32 0.0, %v1650
        %v1652 = vpop.f32.mrb[0].mxu0
        %1653 = vmatprep.mubr.bf16.mxu0 0
        %1654 = vmatmul.mubr.bf16.gmra.mrb[0].mxu0 %v1444
        %v1655 = vpop.f32.mrb[0].mxu0
        %v1656 = vadd.f32 0.0, %v1655
        %v1657 = vpop.f32.mrb[0].mxu0
        %v1658 = vpop.f32.mrb[0].mxu0
        %v1659 = vadd.f32 0.0, %v1658
        %v1660 = vpop.f32.mrb[0].mxu0
        %1661 = vmatprep.mubr.bf16.mxu0 0
        %1662 = vmatmul.mubr.bf16.gmra.mrb[0].mxu0 %v1445
        %v1663 = vpop.f32.mrb[0].mxu0
        %v1664 = vadd.f32 0.0, %v1663
        %v1665 = vpop.f32.mrb[0].mxu0
        %v1666 = vpop.f32.mrb[0].mxu0
        %v1667 = vadd.f32 0.0, %v1666
        %v1668 = vpop.f32.mrb[0].mxu0
        %1669 = vmatprep.mubr.bf16.mxu0 0
        %1670 = vmatmul.mubr.bf16.gmra.mrb[0].mxu0 %v1446
        %v1671 = vpop.f32.mrb[0].mxu0
        %v1672 = vadd.f32 0.0, %v1671
        %v1673 = vpop.f32.mrb[0].mxu0
        %v1674 = vpop.f32.mrb[0].mxu0
        %v1675 = vadd.f32 0.0, %v1674
        %v1676 = vpop.f32.mrb[0].mxu0
        %1677 = vmatprep.mubr.bf16.mxu0 0
        %1678 = vmatmul.mubr.bf16.gmra.mrb[0].mxu0 %v1447
        %v1679 = vpop.f32.mrb[0].mxu0
        %v1680 = vadd.f32 0.0, %v1679
        %v1681 = vpop.f32.mrb[0].mxu0
        %v1682 = vpop.f32.mrb[0].mxu0
        %v1683 = vadd.f32 0.0, %v1682
        %v1684 = vpop.f32.mrb[0].mxu0
        %1685 = vmatprep.mubr.bf16.mxu0 0
        %1686 = vmatmul.mubr.bf16.gmra.mrb[0].mxu0 %v1448
        %v1687 = vpop.f32.mrb[0].mxu0
        %v1688 = vadd.f32 0.0, %v1687
        %v1689 = vpop.f32.mrb[0].mxu0
        %v1690 = vpop.f32.mrb[0].mxu0
        %v1691 = vadd.f32 0.0, %v1690
        %v1692 = vpop.f32.mrb[0].mxu0
        %1693 = vmatprep.mubr.bf16.mxu0 0
        %1694 = vmatmul.mubr.bf16.gmra.mrb[0].mxu0 %v1449
        %v1695 = vpop.f32.mrb[0].mxu0
        %v1696 = vadd.f32 0.0, %v1695
        %v1697 = vpop.f32.mrb[0].mxu0
        %v1698 = vpop.f32.mrb[0].mxu0
        %v1699 = vadd.f32 0.0, %v1698
        %v1700 = vpop.f32.mrb[0].mxu0
        %1701 = vmatprep.mubr.bf16.mxu0 0
        %1702 = vmatmul.mubr.bf16.gmra.mrb[0].mxu0 %v1450
        %v1703 = vpop.f32.mrb[0].mxu0
        %v1704 = vadd.f32 0.0, %v1703
        %v1705 = vpop.f32.mrb[0].mxu0
        %v1706 = vpop.f32.mrb[0].mxu0
        %v1707 = vadd.f32 0.0, %v1706
        %v1708 = vpop.f32.mrb[0].mxu0
        %1709 = vmatprep.mubr.bf16.mxu0 0
        %1710 = vmatmul.mubr.bf16.gmra.mrb[0].mxu0 %v1451
        %v1711 = vpop.f32.mrb[0].mxu0
        %v1712 = vadd.f32 0.0, %v1711
        %v1713 = vpop.f32.mrb[0].mxu0
        %v1714 = vpop.f32.mrb[0].mxu0
        %v1715 = vadd.f32 0.0, %v1714
        %v1716 = vpop.f32.mrb[0].mxu0
        %1717 = vmatprep.mubr.bf16.mxu0 0
        %1718 = vmatmul.mubr.bf16.gmra.mrb[0].mxu0 %v1452
        %v1719 = vpop.f32.mrb[0].mxu0
        %v1720 = vadd.f32 0.0, %v1719
        %v1721 = vpop.f32.mrb[0].mxu0
        %v1722 = vpop.f32.mrb[0].mxu0
        %v1723 = vadd.f32 0.0, %v1722
        %v1724 = vpop.f32.mrb[0].mxu0
        %1725 = vmatprep.mubr.bf16.mxu0 0
        %1726 = vmatmul.mubr.bf16.gmra.mrb[0].mxu0 %v1453
        %v1727 = vpop.f32.mrb[0].mxu0
        %v1728 = vadd.f32 0.0, %v1727
        %v1729 = vpop.f32.mrb[0].mxu0
        %v1730 = vpop.f32.mrb[0].mxu0
        %v1731 = vadd.f32 0.0, %v1730
        %v1732 = vpop.f32.mrb[0].mxu0
        %1733 = vmatprep.mubr.bf16.mxu0 0
        %1734 = vmatmul.mubr.bf16.gmra.mrb[0].mxu0 %v1454
        %v1735 = vpop.f32.mrb[0].mxu0
        %v1736 = vadd.f32 0.0, %v1735
        %v1737 = vpop.f32.mrb[0].mxu0
        %v1738 = vpop.f32.mrb[0].mxu0
        %v1739 = vadd.f32 0.0, %v1738
        %v1740 = vpop.f32.mrb[0].mxu0
        %1741 = vmatprep.mubr.bf16.mxu0 0
        %1742 = vmatmul.mubr.bf16.gmra.mrb[0].mxu0 %v1455
        %v1743 = vpop.f32.mrb[0].mxu0
        %v1744 = vadd.f32 0.0, %v1743
        %v1745 = vpop.f32.mrb[0].mxu0
        %v1746 = vpop.f32.mrb[0].mxu0
        %v1747 = vadd.f32 0.0, %v1746
        %v1748 = vpop.f32.mrb[0].mxu0
        %1749 = vmatprep.mubr.bf16.mxu0 0
        %1750 = vmatmul.mubr.bf16.gmra.mrb[0].mxu0 %v1456
        %v1751 = vpop.f32.mrb[0].mxu0
        %v1752 = vadd.f32 0.0, %v1751
        %v1753 = vpop.f32.mrb[0].mxu0
        %v1754 = vpop.f32.mrb[0].mxu0
        %v1755 = vadd.f32 0.0, %v1754
        %v1756 = vpop.f32.mrb[0].mxu0
        %1757 = vmatprep.mubr.bf16.mxu0 0
        %1758 = vmatmul.mubr.bf16.gmra.mrb[0].mxu0 %v1457
        %v1759 = vpop.f32.mrb[0].mxu0
        %v1760 = vadd.f32 0.0, %v1759
        %v1761 = vpop.f32.mrb[0].mxu0
        %v1762 = vpop.f32.mrb[0].mxu0
        %v1763 = vadd.f32 0.0, %v1762
        %v1764 = vpop.f32.mrb[0].mxu0
        %1765 = vmatprep.mubr.bf16.mxu0 0
        %1766 = vmatmul.mubr.bf16.gmra.mrb[0].mxu0 %v1458
        %v1767 = vpop.f32.mrb[0].mxu0
        %v1768 = vadd.f32 0.0, %v1767
        %v1769 = vpop.f32.mrb[0].mxu0
        %v1770 = vpop.f32.mrb[0].mxu0
        %v1771 = vadd.f32 0.0, %v1770
        %v1772 = vpop.f32.mrb[0].mxu0
        %1773 = vmatprep.mubr.bf16.mxu0 0
        %1774 = vmatmul.mubr.bf16.gmra.mrb[0].mxu0 %v1459
        %v1775 = vpop.f32.mrb[0].mxu0
        %v1776 = vadd.f32 0.0, %v1775
        %v1777 = vpop.f32.mrb[0].mxu0
        %v1778 = vpop.f32.mrb[0].mxu0
        %v1779 = vadd.f32 0.0, %v1778
        %v1780 = vpop.f32.mrb[0].mxu0
        %1781 = vmatprep.mubr.bf16.mxu0 0
        %1782 = vmatmul.mubr.bf16.gmra.mrb[0].mxu0 %v1460
        %v1783 = vpop.f32.mrb[0].mxu0
        %v1784 = vadd.f32 0.0, %v1783
        %v1785 = vpop.f32.mrb[0].mxu0
        %v1786 = vpop.f32.mrb[0].mxu0
        %v1787 = vadd.f32 0.0, %v1786
        %v1788 = vpop.f32.mrb[0].mxu0
        %1789 = vmatprep.mubr.bf16.mxu0 0
        %1790 = vmatmul.mubr.bf16.gmra.mrb[0].mxu0 %v1461
        %v1791 = vpop.f32.mrb[0].mxu0
        %v1792 = vadd.f32 0.0, %v1791
        %v1793 = vpop.f32.mrb[0].mxu0
        %v1794 = vpop.f32.mrb[0].mxu0
        %v1795 = vadd.f32 0.0, %v1794
        %v1796 = vpop.f32.mrb[0].mxu0
        %1797 = vmatprep.mubr.bf16.mxu0 0
        %1798 = vmatmul.mubr.bf16.gmra.mrb[0].mxu0 %v1462
        %v1799 = vpop.f32.mrb[0].mxu0
        %v1800 = vadd.f32 0.0, %v1799
        %v1801 = vpop.f32.mrb[0].mxu0
        %v1802 = vpop.f32.mrb[0].mxu0
        %v1803 = vadd.f32 0.0, %v1802
        %v1804 = vpop.f32.mrb[0].mxu0
        %1805 = vmatprep.mubr.bf16.mxu0 0
        %1806 = vmatmul.mubr.bf16.gmra.mrb[0].mxu0 %v1463
        %v1807 = vpop.f32.mrb[0].mxu0
        %v1808 = vadd.f32 0.0, %v1807
        %v1809 = vpop.f32.mrb[0].mxu0
        %v1810 = vpop.f32.mrb[0].mxu0
        %v1811 = vadd.f32 0.0, %v1810
        %v1812 = vpop.f32.mrb[0].mxu0
        %1813 = vmatprep.mubr.bf16.mxu0 0
        %1814 = vmatmul.mubr.bf16.gmra.mrb[0].mxu0 %v1464
        %v1815 = vpop.f32.mrb[0].mxu0
        %v1816 = vadd.f32 0.0, %v1815
        %v1817 = vpop.f32.mrb[0].mxu0
        %v1818 = vpop.f32.mrb[0].mxu0
        %v1819 = vadd.f32 0.0, %v1818
        %v1820 = vpop.f32.mrb[0].mxu0
        %1821 = vmatprep.mubr.bf16.mxu0 0
        %1822 = vmatmul.mubr.bf16.gmra.mrb[0].mxu0 %v1465
        %v1823 = vpop.f32.mrb[0].mxu0
        %v1824 = vadd.f32 0.0, %v1823
        %v1825 = vpop.f32.mrb[0].mxu0
        %v1826 = vpop.f32.mrb[0].mxu0
        %v1827 = vadd.f32 0.0, %v1826
        %v1828 = vpop.f32.mrb[0].mxu0
        %1829 = vmatprep.mubr.bf16.mxu0 0
        %1830 = vmatmul.mubr.bf16.gmra.mrb[0].mxu0 %v1466
        %v1831 = vpop.f32.mrb[0].mxu0
        %v1832 = vadd.f32 0.0, %v1831
        %v1833 = vpop.f32.mrb[0].mxu0
        %v1834 = vpop.f32.mrb[0].mxu0
        %v1835 = vadd.f32 0.0, %v1834
        %v1836 = vpop.f32.mrb[0].mxu0
        %1837 = vmatprep.mubr.bf16.mxu0 0
        %1838 = vmatmul.mubr.bf16.gmra.mrb[0].mxu0 %v1467
        %v1839 = vpop.f32.mrb[0].mxu0
        %v1840 = vadd.f32 0.0, %v1839
        %v1841 = vpop.f32.mrb[0].mxu0
        %v1842 = vpop.f32.mrb[0].mxu0
        %v1843 = vadd.f32 0.0, %v1842
        %v1844 = vpop.f32.mrb[0].mxu0
        %1845 = vmatprep.mubr.bf16.mxu0 0
        %1846 = vmatmul.mubr.bf16.gmra.mrb[0].mxu0 %v1468
        %v1847 = vpop.f32.mrb[0].mxu0
        %v1848 = vadd.f32 0.0, %v1847
        %v1849 = vpop.f32.mrb[0].mxu0
        %v1850 = vpop.f32.mrb[0].mxu0
        %v1851 = vadd.f32 0.0, %v1850
        %v1852 = vpop.f32.mrb[0].mxu0
        %1853 = vmatprep.mubr.bf16.mxu0 0
        %1854 = vmatmul.mubr.bf16.gmra.mrb[0].mxu0 %v1469
        %v1855 = vpop.f32.mrb[0].mxu0
        %v1856 = vadd.f32 0.0, %v1855
        %v1857 = vpop.f32.mrb[0].mxu0
        %v1858 = vpop.f32.mrb[0].mxu0
        %v1859 = vadd.f32 0.0, %v1858
        %v1860 = vpop.f32.mrb[0].mxu0
        %1861 = vmatprep.mubr.bf16.mxu0 0
        %1862 = vmatmul.mubr.bf16.gmra.mrb[0].mxu0 %v1470
        %v1863 = vpop.f32.mrb[0].mxu0
        %v1864 = vadd.f32 0.0, %v1863
        %v1865 = vpop.f32.mrb[0].mxu0
        %v1866 = vpop.f32.mrb[0].mxu0
        %v1867 = vadd.f32 0.0, %v1866
        %v1868 = vpop.f32.mrb[0].mxu0
        %1869 = vmatprep.mubr.bf16.mxu0 0
        %1870 = vmatmul.mubr.bf16.gmra.mrb[0].mxu0 %v1471
        %v1871 = vpop.f32.mrb[0].mxu0
        %v1872 = vadd.f32 0.0, %v1871
        %v1873 = vpop.f32.mrb[0].mxu0
        %v1874 = vpop.f32.mrb[0].mxu0
        %v1875 = vadd.f32 0.0, %v1874
        %v1876 = vpop.f32.mrb[0].mxu0
        %1877 = vmatprep.mubr.bf16.mxu0 0
        %1878 = vmatmul.mubr.bf16.gmra.mrb[0].mxu0 %v1472
        %v1879 = vpop.f32.mrb[0].mxu0
        %v1880 = vadd.f32 0.0, %v1879
        %v1881 = vpop.f32.mrb[0].mxu0
        %v1882 = vpop.f32.mrb[0].mxu0
        %v1883 = vadd.f32 0.0, %v1882
        %v1884 = vpop.f32.mrb[0].mxu0
        %1885 = vmatprep.mubr.bf16.mxu0 0
        %1886 = vmatmul.mubr.bf16.gmra.mrb[0].mxu0 %v1473
        %v1887 = vpop.f32.mrb[0].mxu0
        %v1888 = vadd.f32 0.0, %v1887
        %v1889 = vpop.f32.mrb[0].mxu0
        %v1890 = vpop.f32.mrb[0].mxu0
        %v1891 = vadd.f32 0.0, %v1890
        %v1892 = vpop.f32.mrb[0].mxu0
        %1893 = vmatprep.mubr.bf16.mxu0 0
        %1894 = vmatmul.mubr.bf16.gmra.mrb[0].mxu0 %v1474
        %v1895 = vpop.f32.mrb[0].mxu0
        %v1896 = vadd.f32 0.0, %v1895
        %v1897 = vpop.f32.mrb[0].mxu0
        %v1898 = vpop.f32.mrb[0].mxu0
        %v1899 = vadd.f32 0.0, %v1898
        %v1900 = vpop.f32.mrb[0].mxu0
        %1901 = vmatprep.mubr.bf16.mxu0 0
        %1902 = vmatmul.mubr.bf16.gmra.mrb[0].mxu0 %v1475
        %v1903 = vpop.f32.mrb[0].mxu0
        %v1904 = vadd.f32 0.0, %v1903
        %v1905 = vpop.f32.mrb[0].mxu0
        %v1906 = vpop.f32.mrb[0].mxu0
        %v1907 = vadd.f32 0.0, %v1906
        %v1908 = vpop.f32.mrb[0].mxu0
        %1909 = vmatprep.mubr.bf16.mxu0 0
        %1910 = vmatmul.mubr.bf16.gmra.mrb[0].mxu0 %v1476
        %v1911 = vpop.f32.mrb[0].mxu0
        %v1912 = vadd.f32 0.0, %v1911
        %v1913 = vpop.f32.mrb[0].mxu0
        %v1914 = vpop.f32.mrb[0].mxu0
        %v1915 = vadd.f32 0.0, %v1914
        %v1916 = vpop.f32.mrb[0].mxu0
        %1917 = vmatprep.mubr.bf16.mxu0 0
        %1918 = vmatmul.mubr.bf16.gmra.mrb[0].mxu0 %v1477
        %v1919 = vpop.f32.mrb[0].mxu0
        %v1920 = vadd.f32 0.0, %v1919
        %v1921 = vpop.f32.mrb[0].mxu0
        %v1922 = vpop.f32.mrb[0].mxu0
        %v1923 = vadd.f32 0.0, %v1922
        %v1924 = vpop.f32.mrb[0].mxu0
        %1925 = vmatprep.mubr.bf16.mxu0 0
        %1926 = vmatmul.mubr.bf16.gmra.mrb[0].mxu0 %v1478
        %v1927 = vpop.f32.mrb[0].mxu0
        %v1928 = vadd.f32 0.0, %v1927
        %v1929 = vpop.f32.mrb[0].mxu0
        %v1930 = vpop.f32.mrb[0].mxu0
        %v1931 = vadd.f32 0.0, %v1930
        %v1932 = vpop.f32.mrb[0].mxu0
        %1933 = vmatprep.mubr.bf16.mxu0 0
        %1934 = vmatmul.mubr.bf16.gmra.mrb[0].mxu0 %v1479
        %v1935 = vpop.f32.mrb[0].mxu0
        %v1936 = vadd.f32 0.0, %v1935
        %v1937 = vpop.f32.mrb[0].mxu0
        %v1938 = vpop.f32.mrb[0].mxu0
        %v1939 = vadd.f32 0.0, %v1938
        %v1940 = vpop.f32.mrb[0].mxu0
        %1941 = vmatprep.mubr.bf16.mxu0 0
        %1942 = vmatmul.mubr.bf16.gmra.mrb[0].mxu0 %v1480
        %v1943 = vpop.f32.mrb[0].mxu0
        %v1944 = vadd.f32 0.0, %v1943
        %v1945 = vpop.f32.mrb[0].mxu0
        %v1946 = vpop.f32.mrb[0].mxu0
        %v1947 = vadd.f32 0.0, %v1946
        %v1948 = vpop.f32.mrb[0].mxu0
        %1949 = vmatprep.mubr.bf16.mxu0 0
        %1950 = vmatmul.mubr.bf16.gmra.mrb[0].mxu0 %v1481
        %v1951 = vpop.f32.mrb[0].mxu0
        %v1952 = vadd.f32 0.0, %v1951
        %v1953 = vpop.f32.mrb[0].mxu0
        %v1954 = vpop.f32.mrb[0].mxu0
        %v1955 = vadd.f32 0.0, %v1954
        %v1956 = vpop.f32.mrb[0].mxu0
        %1957 = vmatprep.mubr.bf16.mxu0 0
        %1958 = vmatmul.mubr.bf16.gmra.mrb[0].mxu0 %v1482
        %v1959 = vpop.f32.mrb[0].mxu0
        %v1960 = vadd.f32 0.0, %v1959
        %v1961 = vpop.f32.mrb[0].mxu0
        %v1962 = vpop.f32.mrb[0].mxu0
        %v1963 = vadd.f32 0.0, %v1962
        %v1964 = vpop.f32.mrb[0].mxu0
        %1965 = vmatprep.mubr.bf16.mxu0 0
        %1966 = vmatmul.mubr.bf16.gmra.mrb[0].mxu0 %v1483
        %v1967 = vpop.f32.mrb[0].mxu0
        %v1968 = vadd.f32 0.0, %v1967
        %v1969 = vpop.f32.mrb[0].mxu0
        %v1970 = vpop.f32.mrb[0].mxu0
        %v1971 = vadd.f32 0.0, %v1970
        %v1972 = vpop.f32.mrb[0].mxu0
        %1973 = vmatprep.mubr.bf16.mxu0 0
        %1974 = vmatmul.mubr.bf16.gmra.mrb[0].mxu0 %v1484
        %v1975 = vpop.f32.mrb[0].mxu0
        %v1976 = vadd.f32 0.0, %v1975
        %v1977 = vpop.f32.mrb[0].mxu0
        %v1978 = vpop.f32.mrb[0].mxu0
        %v1979 = vadd.f32 0.0, %v1978
        %v1980 = vpop.f32.mrb[0].mxu0
        %1981 = vmatprep.mubr.bf16.mxu0 0
        %1982 = vmatmul.mubr.bf16.gmra.mrb[0].mxu0 %v1485
        %v1983 = vpop.f32.mrb[0].mxu0
        %v1984 = vadd.f32 0.0, %v1983
        %v1985 = vpop.f32.mrb[0].mxu0
        %v1986 = vpop.f32.mrb[0].mxu0
        %v1987 = vadd.f32 0.0, %v1986
        %v1988 = vpop.f32.mrb[0].mxu0
        %1989 = vmatprep.mubr.bf16.mxu0 0
        %1990 = vmatmul.mubr.bf16.gmra.mrb[0].mxu0 %v1486
        %v1991 = vpop.f32.mrb[0].mxu0
        %v1992 = vadd.f32 0.0, %v1991
        %v1993 = vpop.f32.mrb[0].mxu0
        %v1994 = vpop.f32.mrb[0].mxu0
        %v1995 = vadd.f32 0.0, %v1994
        %v1996 = vpop.f32.mrb[0].mxu0
        %1997 = vmatprep.mubr.bf16.mxu0 0
        %1998 = vmatmul.mubr.bf16.gmra.mrb[0].mxu0 %v1487
        %v1999 = vpop.f32.mrb[0].mxu0
        %v2000 = vadd.f32 0.0, %v1999
        %v2001 = vpop.f32.mrb[0].mxu0
        %v2002 = vpop.f32.mrb[0].mxu0
        %v2003 = vadd.f32 0.0, %v2002
        %v2004 = vpop.f32.mrb[0].mxu0
        %2005 = vmatprep.mubr.bf16.mxu0 0
        %2006 = vmatmul.mubr.bf16.gmra.mrb[0].mxu0 %v1488
        %v2007 = vpop.f32.mrb[0].mxu0
        %v2008 = vadd.f32 0.0, %v2007
        %v2009 = vpop.f32.mrb[0].mxu0
        %v2010 = vpop.f32.mrb[0].mxu0
        %v2011 = vadd.f32 0.0, %v2010
        %v2012 = vpop.f32.mrb[0].mxu0
        %2013 = vmatprep.mubr.bf16.mxu0 0
        %2014 = vmatmul.mubr.bf16.gmra.mrb[0].mxu0 %v1489
        %v2015 = vpop.f32.mrb[0].mxu0
        %v2016 = vadd.f32 0.0, %v2015
        %v2017 = vpop.f32.mrb[0].mxu0
        %v2018 = vpop.f32.mrb[0].mxu0
        %v2019 = vadd.f32 0.0, %v2018
        %v2020 = vpop.f32.mrb[0].mxu0
        %2021 = vmatprep.mubr.bf16.mxu0 0
        %2022 = vmatmul.mubr.bf16.gmra.mrb[0].mxu0 %v1490
        %v2023 = vpop.f32.mrb[0].mxu0
        %v2024 = vadd.f32 0.0, %v2023
        %v2025 = vpop.f32.mrb[0].mxu0
        %v2026 = vpop.f32.mrb[0].mxu0
        %v2027 = vadd.f32 0.0, %v2026
        %v2028 = vpop.f32.mrb[0].mxu0
        %2029 = vmatprep.mubr.bf16.mxu0 0
        %2030 = vmatmul.mubr.bf16.gmra.mrb[0].mxu0 %v1491
        %v2031 = vpop.f32.mrb[0].mxu0
        %v2032 = vadd.f32 0.0, %v2031
        %v2033 = vpop.f32.mrb[0].mxu0
        %v2034 = vpop.f32.mrb[0].mxu0
        %v2035 = vadd.f32 0.0, %v2034
        %v2036 = vpop.f32.mrb[0].mxu0
        %2037 = vmatprep.mubr.bf16.mxu0 0
        %2038 = vmatmul.mubr.bf16.gmra.mrb[0].mxu0 %v1492
        %v2039 = vpop.f32.mrb[0].mxu0
        %v2040 = vadd.f32 0.0, %v2039
        %v2041 = vpop.f32.mrb[0].mxu0
        %v2042 = vpop.f32.mrb[0].mxu0
        %v2043 = vadd.f32 0.0, %v2042
        %v2044 = vpop.f32.mrb[0].mxu0
        %2045 = vmatprep.mubr.bf16.mxu0 0
        %2046 = vmatmul.mubr.bf16.gmra.mrb[0].mxu0 %v1493
        %v2047 = vpop.f32.mrb[0].mxu0
        %v2048 = vadd.f32 0.0, %v2047
        %v2049 = vpop.f32.mrb[0].mxu0
        %v2050 = vpop.f32.mrb[0].mxu0
        %v2051 = vadd.f32 0.0, %v2050
        %v2052 = vpop.f32.mrb[0].mxu0
        %2053 = vmatprep.mubr.bf16.mxu0 0
        %2054 = vmatmul.mubr.bf16.gmra.mrb[0].mxu0 %v1494
        %v2055 = vpop.f32.mrb[0].mxu0
        %v2056 = vadd.f32 0.0, %v2055
        %v2057 = vpop.f32.mrb[0].mxu0
        %v2058 = vpop.f32.mrb[0].mxu0
        %v2059 = vadd.f32 0.0, %v2058
        %v2060 = vpop.f32.mrb[0].mxu0
        %2061 = vmatprep.mubr.bf16.mxu0 0
        %2062 = vmatmul.mubr.bf16.gmra.mrb[0].mxu0 %v1495
        %v2063 = vpop.f32.mrb[0].mxu0
        %v2064 = vadd.f32 0.0, %v2063
        %v2065 = vpop.f32.mrb[0].mxu0
        %v2066 = vpop.f32.mrb[0].mxu0
        %v2067 = vadd.f32 0.0, %v2066
        %v2068 = vpop.f32.mrb[0].mxu0
        %2069 = vmatprep.mubr.bf16.mxu0 0
        %2070 = vmatmul.mubr.bf16.gmra.mrb[0].mxu0 %v1496
        %v2071 = vpop.f32.mrb[0].mxu0
        %v2072 = vadd.f32 0.0, %v2071
        %v2073 = vpop.f32.mrb[0].mxu0
        %v2074 = vpop.f32.mrb[0].mxu0
        %v2075 = vadd.f32 0.0, %v2074
        %v2076 = vpop.f32.mrb[0].mxu0
        %2077 = vmatprep.mubr.bf16.mxu0 0
        %2078 = vmatmul.mubr.bf16.gmra.mrb[0].mxu0 %v1497
        %v2079 = vpop.f32.mrb[0].mxu0
        %v2080 = vadd.f32 0.0, %v2079
        %v2081 = vpop.f32.mrb[0].mxu0
        %v2082 = vpop.f32.mrb[0].mxu0
        %v2083 = vadd.f32 0.0, %v2082
        %v2084 = vpop.f32.mrb[0].mxu0
        %2085 = vmatprep.mubr.bf16.mxu0 0
        %2086 = vmatmul.mubr.bf16.gmra.mrb[0].mxu0 %v1498
        %v2087 = vpop.f32.mrb[0].mxu0
        %v2088 = vadd.f32 0.0, %v2087
        %v2089 = vpop.f32.mrb[0].mxu0
        %v2090 = vpop.f32.mrb[0].mxu0
        %v2091 = vadd.f32 0.0, %v2090
        %v2092 = vpop.f32.mrb[0].mxu0
        %2093 = vmatprep.mubr.bf16.mxu0 0
        %2094 = vmatmul.mubr.bf16.gmra.mrb[0].mxu0 %v1499
        %v2095 = vpop.f32.mrb[0].mxu0
        %v2096 = vadd.f32 0.0, %v2095
        %v2097 = vpop.f32.mrb[0].mxu0
        %v2098 = vpop.f32.mrb[0].mxu0
        %v2099 = vadd.f32 0.0, %v2098
        %v2100 = vpop.f32.mrb[0].mxu0
        %2101 = vmatprep.mubr.bf16.mxu0 0
        %2102 = vmatmul.mubr.bf16.gmra.mrb[0].mxu0 %v1500
        %v2103 = vpop.f32.mrb[0].mxu0
        %v2104 = vadd.f32 0.0, %v2103
        %v2105 = vpop.f32.mrb[0].mxu0
        %v2106 = vpop.f32.mrb[0].mxu0
        %v2107 = vadd.f32 0.0, %v2106
        %v2108 = vpop.f32.mrb[0].mxu0
        %2109 = vdwg.mxu0
        %2110 = vst.msk [vmem:[%s377] sm:$0xff] %vm666, %v744
        %2111 = vst.msk [vmem:[%s377 + $0x8] sm:$0xff] %vm666, %v745
        %2112 = vst.msk [vmem:[%s377 + $0x10] sm:$0xff] %vm666, %v746
        %2113 = vst.msk [vmem:[%s377 + $0x18] sm:$0xff] %vm666, %v747
        %2114 = vst.msk [vmem:[%s377 + $0x20] sm:$0xff] %vm666, %v748
        %2115 = vst.msk [vmem:[%s377 + $0x28] sm:$0xff] %vm666, %v749
        %2116 = vst.msk [vmem:[%s377 + $0x30] sm:$0xff] %vm666, %v750
        %2117 = vst.msk [vmem:[%s377 + $0x38] sm:$0xff] %vm666, %v751
        %v2118 = vsel %vm666, %v1600, -inf
        %2119 = vmax.xlane.f32.xlu0 %v2118
        %v2120 = vpop.xlane.xlu0 %2119
        %v2121 = vsel %vm666, %v1603, -inf
        %2122 = vmax.xlane.f32.xlu0 %v2121
        %v2123 = vpop.xlane.xlu0 %2122
        %v2124 = vsel %vm666, %v1608, -inf
        %2125 = vmax.xlane.f32.xlu0 %v2124
        %v2126 = vpop.xlane.xlu0 %2125
        %v2127 = vsel %vm666, %v1611, -inf
        %2128 = vmax.xlane.f32.xlu0 %v2127
        %v2129 = vpop.xlane.xlu0 %2128
        %v2130 = vsel %vm666, %v1616, -inf
        %2131 = vmax.xlane.f32.xlu0 %v2130
        %v2132 = vpop.xlane.xlu0 %2131
        %v2133 = vsel %vm666, %v1619, -inf
        %2134 = vmax.xlane.f32.xlu0 %v2133
        %v2135 = vpop.xlane.xlu0 %2134
        %v2136 = vsel %vm666, %v1624, -inf
        %2137 = vmax.xlane.f32.xlu0 %v2136
        %v2138 = vpop.xlane.xlu0 %2137
        %v2139 = vsel %vm666, %v1627, -inf
        %2140 = vmax.xlane.f32.xlu0 %v2139
        %v2141 = vpop.xlane.xlu0 %2140
        %v2142 = vsel %vm666, %v1632, -inf
        %2143 = vmax.xlane.f32.xlu0 %v2142
        %v2144 = vpop.xlane.xlu0 %2143
        %v2145 = vsel %vm666, %v1635, -inf
        %2146 = vmax.xlane.f32.xlu0 %v2145
        %v2147 = vpop.xlane.xlu0 %2146
        %v2148 = vsel %vm666, %v1640, -inf
        %2149 = vmax.xlane.f32.xlu0 %v2148
        %v2150 = vpop.xlane.xlu0 %2149
        %v2151 = vsel %vm666, %v1643, -inf
        %2152 = vmax.xlane.f32.xlu0 %v2151
        %v2153 = vpop.xlane.xlu0 %2152
        %v2154 = vsel %vm666, %v1648, -inf
        %2155 = vmax.xlane.f32.xlu0 %v2154
        %v2156 = vpop.xlane.xlu0 %2155
        %v2157 = vsel %vm666, %v1651, -inf
        %2158 = vmax.xlane.f32.xlu0 %v2157
        %v2159 = vpop.xlane.xlu0 %2158
        %v2160 = vsel %vm666, %v1656, -inf
        %2161 = vmax.xlane.f32.xlu0 %v2160
        %v2162 = vpop.xlane.xlu0 %2161
        %v2163 = vsel %vm666, %v1659, -inf
        %2164 = vmax.xlane.f32.xlu0 %v2163
        %v2165 = vpop.xlane.xlu0 %2164
        %v2166 = vsel %vm666, %v1664, -inf
        %2167 = vmax.xlane.f32.xlu0 %v2166
        %v2168 = vpop.xlane.xlu0 %2167
        %v2169 = vsel %vm666, %v1667, -inf
        %2170 = vmax.xlane.f32.xlu0 %v2169
        %v2171 = vpop.xlane.xlu0 %2170
        %v2172 = vsel %vm666, %v1672, -inf
        %2173 = vmax.xlane.f32.xlu0 %v2172
        %v2174 = vpop.xlane.xlu0 %2173
        %v2175 = vsel %vm666, %v1675, -inf
        %2176 = vmax.xlane.f32.xlu0 %v2175
        %v2177 = vpop.xlane.xlu0 %2176
        %v2178 = vsel %vm666, %v1680, -inf
        %2179 = vmax.xlane.f32.xlu0 %v2178
        %v2180 = vpop.xlane.xlu0 %2179
        %v2181 = vsel %vm666, %v1683, -inf
        %2182 = vmax.xlane.f32.xlu0 %v2181
        %v2183 = vpop.xlane.xlu0 %2182
        %v2184 = vsel %vm666, %v1688, -inf
        %2185 = vmax.xlane.f32.xlu0 %v2184
        %v2186 = vpop.xlane.xlu0 %2185
        %v2187 = vsel %vm666, %v1691, -inf
        %2188 = vmax.xlane.f32.xlu0 %v2187
        %v2189 = vpop.xlane.xlu0 %2188
        %v2190 = vsel %vm666, %v1696, -inf
        %2191 = vmax.xlane.f32.xlu0 %v2190
        %v2192 = vpop.xlane.xlu0 %2191
        %v2193 = vsel %vm666, %v1699, -inf
        %2194 = vmax.xlane.f32.xlu0 %v2193
        %v2195 = vpop.xlane.xlu0 %2194
        %v2196 = vsel %vm666, %v1704, -inf
        %2197 = vmax.xlane.f32.xlu0 %v2196
        %v2198 = vpop.xlane.xlu0 %2197
        %v2199 = vsel %vm666, %v1707, -inf
        %2200 = vmax.xlane.f32.xlu0 %v2199
        %v2201 = vpop.xlane.xlu0 %2200
        %v2202 = vsel %vm666, %v1712, -inf
        %2203 = vmax.xlane.f32.xlu0 %v2202
        %v2204 = vpop.xlane.xlu0 %2203
        %v2205 = vsel %vm666, %v1715, -inf
        %2206 = vmax.xlane.f32.xlu0 %v2205
        %v2207 = vpop.xlane.xlu0 %2206
        %v2208 = vsel %vm666, %v1720, -inf
        %2209 = vmax.xlane.f32.xlu0 %v2208
        %v2210 = vpop.xlane.xlu0 %2209
        %v2211 = vsel %vm666, %v1723, -inf
        %2212 = vmax.xlane.f32.xlu0 %v2211
        %v2213 = vpop.xlane.xlu0 %2212
        %v2214 = vsel %vm666, %v1728, -inf
        %2215 = vmax.xlane.f32.xlu0 %v2214
        %v2216 = vpop.xlane.xlu0 %2215
        %v2217 = vsel %vm666, %v1731, -inf
        %2218 = vmax.xlane.f32.xlu0 %v2217
        %v2219 = vpop.xlane.xlu0 %2218
        %v2220 = vsel %vm666, %v1736, -inf
        %2221 = vmax.xlane.f32.xlu0 %v2220
        %v2222 = vpop.xlane.xlu0 %2221
        %v2223 = vsel %vm666, %v1739, -inf
        %2224 = vmax.xlane.f32.xlu0 %v2223
        %v2225 = vpop.xlane.xlu0 %2224
        %v2226 = vsel %vm666, %v1744, -inf
        %2227 = vmax.xlane.f32.xlu0 %v2226
        %v2228 = vpop.xlane.xlu0 %2227
        %v2229 = vsel %vm666, %v1747, -inf
        %2230 = vmax.xlane.f32.xlu0 %v2229
        %v2231 = vpop.xlane.xlu0 %2230
        %v2232 = vsel %vm666, %v1752, -inf
        %2233 = vmax.xlane.f32.xlu0 %v2232
        %v2234 = vpop.xlane.xlu0 %2233
        %v2235 = vsel %vm666, %v1755, -inf
        %2236 = vmax.xlane.f32.xlu0 %v2235
        %v2237 = vpop.xlane.xlu0 %2236
        %v2238 = vsel %vm666, %v1760, -inf
        %2239 = vmax.xlane.f32.xlu0 %v2238
        %v2240 = vpop.xlane.xlu0 %2239
        %v2241 = vsel %vm666, %v1763, -inf
        %2242 = vmax.xlane.f32.xlu0 %v2241
        %v2243 = vpop.xlane.xlu0 %2242
        %v2244 = vsel %vm666, %v1768, -inf
        %2245 = vmax.xlane.f32.xlu0 %v2244
        %v2246 = vpop.xlane.xlu0 %2245
        %v2247 = vsel %vm666, %v1771, -inf
        %2248 = vmax.xlane.f32.xlu0 %v2247
        %v2249 = vpop.xlane.xlu0 %2248
        %v2250 = vsel %vm666, %v1776, -inf
        %2251 = vmax.xlane.f32.xlu0 %v2250
        %v2252 = vpop.xlane.xlu0 %2251
        %v2253 = vsel %vm666, %v1779, -inf
        %2254 = vmax.xlane.f32.xlu0 %v2253
        %v2255 = vpop.xlane.xlu0 %2254
        %v2256 = vsel %vm666, %v1784, -inf
        %2257 = vmax.xlane.f32.xlu0 %v2256
        %v2258 = vpop.xlane.xlu0 %2257
        %v2259 = vsel %vm666, %v1787, -inf
        %2260 = vmax.xlane.f32.xlu0 %v2259
        %v2261 = vpop.xlane.xlu0 %2260
        %v2262 = vsel %vm666, %v1792, -inf
        %2263 = vmax.xlane.f32.xlu0 %v2262
        %v2264 = vpop.xlane.xlu0 %2263
        %v2265 = vsel %vm666, %v1795, -inf
        %2266 = vmax.xlane.f32.xlu0 %v2265
        %v2267 = vpop.xlane.xlu0 %2266
        %v2268 = vsel %vm666, %v1800, -inf
        %2269 = vmax.xlane.f32.xlu0 %v2268
        %v2270 = vpop.xlane.xlu0 %2269
        %v2271 = vsel %vm666, %v1803, -inf
        %2272 = vmax.xlane.f32.xlu0 %v2271
        %v2273 = vpop.xlane.xlu0 %2272
        %v2274 = vsel %vm666, %v1808, -inf
        %2275 = vmax.xlane.f32.xlu0 %v2274
        %v2276 = vpop.xlane.xlu0 %2275
        %v2277 = vsel %vm666, %v1811, -inf
        %2278 = vmax.xlane.f32.xlu0 %v2277
        %v2279 = vpop.xlane.xlu0 %2278
        %v2280 = vsel %vm666, %v1816, -inf
        %2281 = vmax.xlane.f32.xlu0 %v2280
        %v2282 = vpop.xlane.xlu0 %2281
        %v2283 = vsel %vm666, %v1819, -inf
        %2284 = vmax.xlane.f32.xlu0 %v2283
        %v2285 = vpop.xlane.xlu0 %2284
        %v2286 = vsel %vm666, %v1824, -inf
        %2287 = vmax.xlane.f32.xlu0 %v2286
        %v2288 = vpop.xlane.xlu0 %2287
        %v2289 = vsel %vm666, %v1827, -inf
        %2290 = vmax.xlane.f32.xlu0 %v2289
        %v2291 = vpop.xlane.xlu0 %2290
        %v2292 = vsel %vm666, %v1832, -inf
        %2293 = vmax.xlane.f32.xlu0 %v2292
        %v2294 = vpop.xlane.xlu0 %2293
        %v2295 = vsel %vm666, %v1835, -inf
        %2296 = vmax.xlane.f32.xlu0 %v2295
        %v2297 = vpop.xlane.xlu0 %2296
        %v2298 = vsel %vm666, %v1840, -inf
        %2299 = vmax.xlane.f32.xlu0 %v2298
        %v2300 = vpop.xlane.xlu0 %2299
        %v2301 = vsel %vm666, %v1843, -inf
        %2302 = vmax.xlane.f32.xlu0 %v2301
        %v2303 = vpop.xlane.xlu0 %2302
        %v2304 = vsel %vm666, %v1848, -inf
        %2305 = vmax.xlane.f32.xlu0 %v2304
        %v2306 = vpop.xlane.xlu0 %2305
        %v2307 = vsel %vm666, %v1851, -inf
        %2308 = vmax.xlane.f32.xlu0 %v2307
        %v2309 = vpop.xlane.xlu0 %2308
        %v2310 = vsel %vm666, %v1856, -inf
        %2311 = vmax.xlane.f32.xlu0 %v2310
        %v2312 = vpop.xlane.xlu0 %2311
        %v2313 = vsel %vm666, %v1859, -inf
        %2314 = vmax.xlane.f32.xlu0 %v2313
        %v2315 = vpop.xlane.xlu0 %2314
        %v2316 = vsel %vm666, %v1864, -inf
        %2317 = vmax.xlane.f32.xlu0 %v2316
        %v2318 = vpop.xlane.xlu0 %2317
        %v2319 = vsel %vm666, %v1867, -inf
        %2320 = vmax.xlane.f32.xlu0 %v2319
        %v2321 = vpop.xlane.xlu0 %2320
        %v2322 = vsel %vm666, %v1872, -inf
        %2323 = vmax.xlane.f32.xlu0 %v2322
        %v2324 = vpop.xlane.xlu0 %2323
        %v2325 = vsel %vm666, %v1875, -inf
        %2326 = vmax.xlane.f32.xlu0 %v2325
        %v2327 = vpop.xlane.xlu0 %2326
        %v2328 = vsel %vm666, %v1880, -inf
        %2329 = vmax.xlane.f32.xlu0 %v2328
        %v2330 = vpop.xlane.xlu0 %2329
        %v2331 = vsel %vm666, %v1883, -inf
        %2332 = vmax.xlane.f32.xlu0 %v2331
        %v2333 = vpop.xlane.xlu0 %2332
        %v2334 = vsel %vm666, %v1888, -inf
        %2335 = vmax.xlane.f32.xlu0 %v2334
        %v2336 = vpop.xlane.xlu0 %2335
        %v2337 = vsel %vm666, %v1891, -inf
        %2338 = vmax.xlane.f32.xlu0 %v2337
        %v2339 = vpop.xlane.xlu0 %2338
        %v2340 = vsel %vm666, %v1896, -inf
        %2341 = vmax.xlane.f32.xlu0 %v2340
        %v2342 = vpop.xlane.xlu0 %2341
        %v2343 = vsel %vm666, %v1899, -inf
        %2344 = vmax.xlane.f32.xlu0 %v2343
        %v2345 = vpop.xlane.xlu0 %2344
        %v2346 = vsel %vm666, %v1904, -inf
        %2347 = vmax.xlane.f32.xlu0 %v2346
        %v2348 = vpop.xlane.xlu0 %2347
        %v2349 = vsel %vm666, %v1907, -inf
        %2350 = vmax.xlane.f32.xlu0 %v2349
        %v2351 = vpop.xlane.xlu0 %2350
        %v2352 = vsel %vm666, %v1912, -inf
        %2353 = vmax.xlane.f32.xlu0 %v2352
        %v2354 = vpop.xlane.xlu0 %2353
        %v2355 = vsel %vm666, %v1915, -inf
        %2356 = vmax.xlane.f32.xlu0 %v2355
        %v2357 = vpop.xlane.xlu0 %2356
        %v2358 = vsel %vm666, %v1920, -inf
        %2359 = vmax.xlane.f32.xlu0 %v2358
        %v2360 = vpop.xlane.xlu0 %2359
        %v2361 = vsel %vm666, %v1923, -inf
        %2362 = vmax.xlane.f32.xlu0 %v2361
        %v2363 = vpop.xlane.xlu0 %2362
        %v2364 = vsel %vm666, %v1928, -inf
        %2365 = vmax.xlane.f32.xlu0 %v2364
        %v2366 = vpop.xlane.xlu0 %2365
        %v2367 = vsel %vm666, %v1931, -inf
        %2368 = vmax.xlane.f32.xlu0 %v2367
        %v2369 = vpop.xlane.xlu0 %2368
        %v2370 = vsel %vm666, %v1936, -inf
        %2371 = vmax.xlane.f32.xlu0 %v2370
        %v2372 = vpop.xlane.xlu0 %2371
        %v2373 = vsel %vm666, %v1939, -inf
        %2374 = vmax.xlane.f32.xlu0 %v2373
        %v2375 = vpop.xlane.xlu0 %2374
        %v2376 = vsel %vm666, %v1944, -inf
        %2377 = vmax.xlane.f32.xlu0 %v2376
        %v2378 = vpop.xlane.xlu0 %2377
        %v2379 = vsel %vm666, %v1947, -inf
        %2380 = vmax.xlane.f32.xlu0 %v2379
        %v2381 = vpop.xlane.xlu0 %2380
        %v2382 = vsel %vm666, %v1952, -inf
        %2383 = vmax.xlane.f32.xlu0 %v2382
        %v2384 = vpop.xlane.xlu0 %2383
        %v2385 = vsel %vm666, %v1955, -inf
        %2386 = vmax.xlane.f32.xlu0 %v2385
        %v2387 = vpop.xlane.xlu0 %2386
        %v2388 = vsel %vm666, %v1960, -inf
        %2389 = vmax.xlane.f32.xlu0 %v2388
        %v2390 = vpop.xlane.xlu0 %2389
        %v2391 = vsel %vm666, %v1963, -inf
        %2392 = vmax.xlane.f32.xlu0 %v2391
        %v2393 = vpop.xlane.xlu0 %2392
        %v2394 = vsel %vm666, %v1968, -inf
        %2395 = vmax.xlane.f32.xlu0 %v2394
        %v2396 = vpop.xlane.xlu0 %2395
        %v2397 = vsel %vm666, %v1971, -inf
        %2398 = vmax.xlane.f32.xlu0 %v2397
        %v2399 = vpop.xlane.xlu0 %2398
        %v2400 = vsel %vm666, %v1976, -inf
        %2401 = vmax.xlane.f32.xlu0 %v2400
        %v2402 = vpop.xlane.xlu0 %2401
        %v2403 = vsel %vm666, %v1979, -inf
        %2404 = vmax.xlane.f32.xlu0 %v2403
        %v2405 = vpop.xlane.xlu0 %2404
        %v2406 = vsel %vm666, %v1984, -inf
        %2407 = vmax.xlane.f32.xlu0 %v2406
        %v2408 = vpop.xlane.xlu0 %2407
        %v2409 = vsel %vm666, %v1987, -inf
        %2410 = vmax.xlane.f32.xlu0 %v2409
        %v2411 = vpop.xlane.xlu0 %2410
        %v2412 = vsel %vm666, %v1992, -inf
        %2413 = vmax.xlane.f32.xlu0 %v2412
        %v2414 = vpop.xlane.xlu0 %2413
        %v2415 = vsel %vm666, %v1995, -inf
        %2416 = vmax.xlane.f32.xlu0 %v2415
        %v2417 = vpop.xlane.xlu0 %2416
        %v2418 = vsel %vm666, %v2000, -inf
        %2419 = vmax.xlane.f32.xlu0 %v2418
        %v2420 = vpop.xlane.xlu0 %2419
        %v2421 = vsel %vm666, %v2003, -inf
        %2422 = vmax.xlane.f32.xlu0 %v2421
        %v2423 = vpop.xlane.xlu0 %2422
        %v2424 = vsel %vm666, %v2008, -inf
        %2425 = vmax.xlane.f32.xlu0 %v2424
        %v2426 = vpop.xlane.xlu0 %2425
        %v2427 = vsel %vm666, %v2011, -inf
        %2428 = vmax.xlane.f32.xlu0 %v2427
        %v2429 = vpop.xlane.xlu0 %2428
        %v2430 = vsel %vm666, %v2016, -inf
        %2431 = vmax.xlane.f32.xlu0 %v2430
        %v2432 = vpop.xlane.xlu0 %2431
        %v2433 = vsel %vm666, %v2019, -inf
        %2434 = vmax.xlane.f32.xlu0 %v2433
        %v2435 = vpop.xlane.xlu0 %2434
        %v2436 = vsel %vm666, %v2024, -inf
        %2437 = vmax.xlane.f32.xlu0 %v2436
        %v2438 = vpop.xlane.xlu0 %2437
        %v2439 = vsel %vm666, %v2027, -inf
        %2440 = vmax.xlane.f32.xlu0 %v2439
        %v2441 = vpop.xlane.xlu0 %2440
        %v2442 = vsel %vm666, %v2032, -inf
        %2443 = vmax.xlane.f32.xlu0 %v2442
        %v2444 = vpop.xlane.xlu0 %2443
        %v2445 = vsel %vm666, %v2035, -inf
        %2446 = vmax.xlane.f32.xlu0 %v2445
        %v2447 = vpop.xlane.xlu0 %2446
        %v2448 = vsel %vm666, %v2040, -inf
        %2449 = vmax.xlane.f32.xlu0 %v2448
        %v2450 = vpop.xlane.xlu0 %2449
        %v2451 = vsel %vm666, %v2043, -inf
        %2452 = vmax.xlane.f32.xlu0 %v2451
        %v2453 = vpop.xlane.xlu0 %2452
        %v2454 = vsel %vm666, %v2048, -inf
        %2455 = vmax.xlane.f32.xlu0 %v2454
        %v2456 = vpop.xlane.xlu0 %2455
        %v2457 = vsel %vm666, %v2051, -inf
        %2458 = vmax.xlane.f32.xlu0 %v2457
        %v2459 = vpop.xlane.xlu0 %2458
        %v2460 = vsel %vm666, %v2056, -inf
        %2461 = vmax.xlane.f32.xlu0 %v2460
        %v2462 = vpop.xlane.xlu0 %2461
        %v2463 = vsel %vm666, %v2059, -inf
        %2464 = vmax.xlane.f32.xlu0 %v2463
        %v2465 = vpop.xlane.xlu0 %2464
        %v2466 = vsel %vm666, %v2064, -inf
        %2467 = vmax.xlane.f32.xlu0 %v2466
        %v2468 = vpop.xlane.xlu0 %2467
        %v2469 = vsel %vm666, %v2067, -inf
        %2470 = vmax.xlane.f32.xlu0 %v2469
        %v2471 = vpop.xlane.xlu0 %2470
        %v2472 = vsel %vm666, %v2072, -inf
        %2473 = vmax.xlane.f32.xlu0 %v2472
        %v2474 = vpop.xlane.xlu0 %2473
        %v2475 = vsel %vm666, %v2075, -inf
        %2476 = vmax.xlane.f32.xlu0 %v2475
        %v2477 = vpop.xlane.xlu0 %2476
        %v2478 = vsel %vm666, %v2080, -inf
        %2479 = vmax.xlane.f32.xlu0 %v2478
        %v2480 = vpop.xlane.xlu0 %2479
        %v2481 = vsel %vm666, %v2083, -inf
        %2482 = vmax.xlane.f32.xlu0 %v2481
        %v2483 = vpop.xlane.xlu0 %2482
        %v2484 = vsel %vm666, %v2088, -inf
        %2485 = vmax.xlane.f32.xlu0 %v2484
        %v2486 = vpop.xlane.xlu0 %2485
        %v2487 = vsel %vm666, %v2091, -inf
        %2488 = vmax.xlane.f32.xlu0 %v2487
        %v2489 = vpop.xlane.xlu0 %2488
        %v2490 = vsel %vm666, %v2096, -inf
        %2491 = vmax.xlane.f32.xlu0 %v2490
        %v2492 = vpop.xlane.xlu0 %2491
        %v2493 = vsel %vm666, %v2099, -inf
        %2494 = vmax.xlane.f32.xlu0 %v2493
        %v2495 = vpop.xlane.xlu0 %2494
        %v2496 = vsel %vm666, %v2104, -inf
        %2497 = vmax.xlane.f32.xlu0 %v2496
        %v2498 = vpop.xlane.xlu0 %2497
        %v2499 = vsel %vm666, %v2107, -inf
        %2500 = vmax.xlane.f32.xlu0 %v2499
        %v2501 = vpop.xlane.xlu0 %2500
        %p2502 = scmp.eq.s32.totalorder %s32, 0
        // Predicated region
        $region57: #{tpu_custom_call.1} parent=51 // pred_check
          %p2503 = pneg %p2502
        $region58: #{tpu_custom_call.1} parent=51 // pred_check_branch
          %2505 = sbr.rel (%p2503) target = $region60
        $region59: #{tpu_custom_call.1} parent=51 // pred_region
          %vm2506 = vcmask 7168
          %2507 = vst.msk [vmem:[%s407] sm:$0xff] %vm2506, %v2120
          %2508 = vst.msk [vmem:[%s407 + $0x8] sm:$0xff] %vm2506, %v2123
          %2509 = vst.msk [vmem:[%s407 + $0x10] sm:$0xff] %vm2506, %v2126
          %2510 = vst.msk [vmem:[%s407 + $0x18] sm:$0xff] %vm2506, %v2129
          %2511 = vst.msk [vmem:[%s407 + $0x20] sm:$0xff] %vm2506, %v2132
          %2512 = vst.msk [vmem:[%s407 + $0x28] sm:$0xff] %vm2506, %v2135
          %2513 = vst.msk [vmem:[%s407 + $0x30] sm:$0xff] %vm2506, %v2138
          %2514 = vst.msk [vmem:[%s407 + $0x38] sm:$0xff] %vm2506, %v2141
          %2515 = vst.msk [vmem:[%s407 + $0x40] sm:$0xff] %vm2506, %v2144
          %2516 = vst.msk [vmem:[%s407 + $0x48] sm:$0xff] %vm2506, %v2147
          %2517 = vst.msk [vmem:[%s407 + $0x50] sm:$0xff] %vm2506, %v2150
          %2518 = vst.msk [vmem:[%s407 + $0x58] sm:$0xff] %vm2506, %v2153
          %2519 = vst.msk [vmem:[%s407 + $0x60] sm:$0xff] %vm2506, %v2156
          %2520 = vst.msk [vmem:[%s407 + $0x68] sm:$0xff] %vm2506, %v2159
          %2521 = vst.msk [vmem:[%s407 + $0x70] sm:$0xff] %vm2506, %v2162
          %2522 = vst.msk [vmem:[%s407 + $0x78] sm:$0xff] %vm2506, %v2165
          %2523 = vst.msk [vmem:[%s407 + $0x80] sm:$0xff] %vm2506, %v2168
          %2524 = vst.msk [vmem:[%s407 + $0x88] sm:$0xff] %vm2506, %v2171
          %2525 = vst.msk [vmem:[%s407 + $0x90] sm:$0xff] %vm2506, %v2174
          %2526 = vst.msk [vmem:[%s407 + $0x98] sm:$0xff] %vm2506, %v2177
          %2527 = vst.msk [vmem:[%s407 + $0xa0] sm:$0xff] %vm2506, %v2180
          %2528 = vst.msk [vmem:[%s407 + $0xa8] sm:$0xff] %vm2506, %v2183
          %2529 = vst.msk [vmem:[%s407 + $0xb0] sm:$0xff] %vm2506, %v2186
          %2530 = vst.msk [vmem:[%s407 + $0xb8] sm:$0xff] %vm2506, %v2189
          %2531 = vst.msk [vmem:[%s407 + $0xc0] sm:$0xff] %vm2506, %v2192
          %2532 = vst.msk [vmem:[%s407 + $0xc8] sm:$0xff] %vm2506, %v2195
          %2533 = vst.msk [vmem:[%s407 + $0xd0] sm:$0xff] %vm2506, %v2198
          %2534 = vst.msk [vmem:[%s407 + $0xd8] sm:$0xff] %vm2506, %v2201
          %2535 = vst.msk [vmem:[%s407 + $0xe0] sm:$0xff] %vm2506, %v2204
          %2536 = vst.msk [vmem:[%s407 + $0xe8] sm:$0xff] %vm2506, %v2207
          %2537 = vst.msk [vmem:[%s407 + $0xf0] sm:$0xff] %vm2506, %v2210
          %2538 = vst.msk [vmem:[%s407 + $0xf8] sm:$0xff] %vm2506, %v2213
          %2539 = vst.msk [vmem:[%s407 + $0x100] sm:$0xff] %vm2506, %v2216
          %2540 = vst.msk [vmem:[%s407 + $0x108] sm:$0xff] %vm2506, %v2219
          %2541 = vst.msk [vmem:[%s407 + $0x110] sm:$0xff] %vm2506, %v2222
          %2542 = vst.msk [vmem:[%s407 + $0x118] sm:$0xff] %vm2506, %v2225
          %2543 = vst.msk [vmem:[%s407 + $0x120] sm:$0xff] %vm2506, %v2228
          %2544 = vst.msk [vmem:[%s407 + $0x128] sm:$0xff] %vm2506, %v2231
          %2545 = vst.msk [vmem:[%s407 + $0x130] sm:$0xff] %vm2506, %v2234
          %2546 = vst.msk [vmem:[%s407 + $0x138] sm:$0xff] %vm2506, %v2237
          %2547 = vst.msk [vmem:[%s407 + $0x140] sm:$0xff] %vm2506, %v2240
          %2548 = vst.msk [vmem:[%s407 + $0x148] sm:$0xff] %vm2506, %v2243
          %2549 = vst.msk [vmem:[%s407 + $0x150] sm:$0xff] %vm2506, %v2246
          %2550 = vst.msk [vmem:[%s407 + $0x158] sm:$0xff] %vm2506, %v2249
          %2551 = vst.msk [vmem:[%s407 + $0x160] sm:$0xff] %vm2506, %v2252
          %2552 = vst.msk [vmem:[%s407 + $0x168] sm:$0xff] %vm2506, %v2255
          %2553 = vst.msk [vmem:[%s407 + $0x170] sm:$0xff] %vm2506, %v2258
          %2554 = vst.msk [vmem:[%s407 + $0x178] sm:$0xff] %vm2506, %v2261
          %2555 = vst.msk [vmem:[%s407 + $0x180] sm:$0xff] %vm2506, %v2264
          %2556 = vst.msk [vmem:[%s407 + $0x188] sm:$0xff] %vm2506, %v2267
          %2557 = vst.msk [vmem:[%s407 + $0x190] sm:$0xff] %vm2506, %v2270
          %2558 = vst.msk [vmem:[%s407 + $0x198] sm:$0xff] %vm2506, %v2273
          %2559 = vst.msk [vmem:[%s407 + $0x1a0] sm:$0xff] %vm2506, %v2276
          %2560 = vst.msk [vmem:[%s407 + $0x1a8] sm:$0xff] %vm2506, %v2279
          %2561 = vst.msk [vmem:[%s407 + $0x1b0] sm:$0xff] %vm2506, %v2282
          %2562 = vst.msk [vmem:[%s407 + $0x1b8] sm:$0xff] %vm2506, %v2285
          %2563 = vst.msk [vmem:[%s407 + $0x1c0] sm:$0xff] %vm2506, %v2288
          %2564 = vst.msk [vmem:[%s407 + $0x1c8] sm:$0xff] %vm2506, %v2291
          %2565 = vst.msk [vmem:[%s407 + $0x1d0] sm:$0xff] %vm2506, %v2294
          %2566 = vst.msk [vmem:[%s407 + $0x1d8] sm:$0xff] %vm2506, %v2297
          %2567 = vst.msk [vmem:[%s407 + $0x1e0] sm:$0xff] %vm2506, %v2300
          %2568 = vst.msk [vmem:[%s407 + $0x1e8] sm:$0xff] %vm2506, %v2303
          %2569 = vst.msk [vmem:[%s407 + $0x1f0] sm:$0xff] %vm2506, %v2306
          %2570 = vst.msk [vmem:[%s407 + $0x1f8] sm:$0xff] %vm2506, %v2309
          %2571 = vst.msk [vmem:[%s407 + $0x200] sm:$0xff] %vm2506, %v2312
          %2572 = vst.msk [vmem:[%s407 + $0x208] sm:$0xff] %vm2506, %v2315
          %2573 = vst.msk [vmem:[%s407 + $0x210] sm:$0xff] %vm2506, %v2318
          %2574 = vst.msk [vmem:[%s407 + $0x218] sm:$0xff] %vm2506, %v2321
          %2575 = vst.msk [vmem:[%s407 + $0x220] sm:$0xff] %vm2506, %v2324
          %2576 = vst.msk [vmem:[%s407 + $0x228] sm:$0xff] %vm2506, %v2327
          %2577 = vst.msk [vmem:[%s407 + $0x230] sm:$0xff] %vm2506, %v2330
          %2578 = vst.msk [vmem:[%s407 + $0x238] sm:$0xff] %vm2506, %v2333
          %2579 = vst.msk [vmem:[%s407 + $0x240] sm:$0xff] %vm2506, %v2336
          %2580 = vst.msk [vmem:[%s407 + $0x248] sm:$0xff] %vm2506, %v2339
          %2581 = vst.msk [vmem:[%s407 + $0x250] sm:$0xff] %vm2506, %v2342
          %2582 = vst.msk [vmem:[%s407 + $0x258] sm:$0xff] %vm2506, %v2345
          %2583 = vst.msk [vmem:[%s407 + $0x260] sm:$0xff] %vm2506, %v2348
          %2584 = vst.msk [vmem:[%s407 + $0x268] sm:$0xff] %vm2506, %v2351
          %2585 = vst.msk [vmem:[%s407 + $0x270] sm:$0xff] %vm2506, %v2354
          %2586 = vst.msk [vmem:[%s407 + $0x278] sm:$0xff] %vm2506, %v2357
          %2587 = vst.msk [vmem:[%s407 + $0x280] sm:$0xff] %vm2506, %v2360
          %2588 = vst.msk [vmem:[%s407 + $0x288] sm:$0xff] %vm2506, %v2363
          %2589 = vst.msk [vmem:[%s407 + $0x290] sm:$0xff] %vm2506, %v2366
          %2590 = vst.msk [vmem:[%s407 + $0x298] sm:$0xff] %vm2506, %v2369
          %2591 = vst.msk [vmem:[%s407 + $0x2a0] sm:$0xff] %vm2506, %v2372
          %2592 = vst.msk [vmem:[%s407 + $0x2a8] sm:$0xff] %vm2506, %v2375
          %2593 = vst.msk [vmem:[%s407 + $0x2b0] sm:$0xff] %vm2506, %v2378
          %2594 = vst.msk [vmem:[%s407 + $0x2b8] sm:$0xff] %vm2506, %v2381
          %2595 = vst.msk [vmem:[%s407 + $0x2c0] sm:$0xff] %vm2506, %v2384
          %2596 = vst.msk [vmem:[%s407 + $0x2c8] sm:$0xff] %vm2506, %v2387
          %2597 = vst.msk [vmem:[%s407 + $0x2d0] sm:$0xff] %vm2506, %v2390
          %2598 = vst.msk [vmem:[%s407 + $0x2d8] sm:$0xff] %vm2506, %v2393
          %2599 = vst.msk [vmem:[%s407 + $0x2e0] sm:$0xff] %vm2506, %v2396
          %2600 = vst.msk [vmem:[%s407 + $0x2e8] sm:$0xff] %vm2506, %v2399
          %2601 = vst.msk [vmem:[%s407 + $0x2f0] sm:$0xff] %vm2506, %v2402
          %2602 = vst.msk [vmem:[%s407 + $0x2f8] sm:$0xff] %vm2506, %v2405
          %2603 = vst.msk [vmem:[%s407 + $0x300] sm:$0xff] %vm2506, %v2408
          %2604 = vst.msk [vmem:[%s407 + $0x308] sm:$0xff] %vm2506, %v2411
          %2605 = vst.msk [vmem:[%s407 + $0x310] sm:$0xff] %vm2506, %v2414
          %2606 = vst.msk [vmem:[%s407 + $0x318] sm:$0xff] %vm2506, %v2417
          %2607 = vst.msk [vmem:[%s407 + $0x320] sm:$0xff] %vm2506, %v2420
          %2608 = vst.msk [vmem:[%s407 + $0x328] sm:$0xff] %vm2506, %v2423
          %2609 = vst.msk [vmem:[%s407 + $0x330] sm:$0xff] %vm2506, %v2426
          %2610 = vst.msk [vmem:[%s407 + $0x338] sm:$0xff] %vm2506, %v2429
          %2611 = vst.msk [vmem:[%s407 + $0x340] sm:$0xff] %vm2506, %v2432
          %2612 = vst.msk [vmem:[%s407 + $0x348] sm:$0xff] %vm2506, %v2435
          %2613 = vst.msk [vmem:[%s407 + $0x350] sm:$0xff] %vm2506, %v2438
          %2614 = vst.msk [vmem:[%s407 + $0x358] sm:$0xff] %vm2506, %v2441
          %2615 = vst.msk [vmem:[%s407 + $0x360] sm:$0xff] %vm2506, %v2444
          %2616 = vst.msk [vmem:[%s407 + $0x368] sm:$0xff] %vm2506, %v2447
          %2617 = vst.msk [vmem:[%s407 + $0x370] sm:$0xff] %vm2506, %v2450
          %2618 = vst.msk [vmem:[%s407 + $0x378] sm:$0xff] %vm2506, %v2453
          %2619 = vst.msk [vmem:[%s407 + $0x380] sm:$0xff] %vm2506, %v2456
          %2620 = vst.msk [vmem:[%s407 + $0x388] sm:$0xff] %vm2506, %v2459
          %2621 = vst.msk [vmem:[%s407 + $0x390] sm:$0xff] %vm2506, %v2462
          %2622 = vst.msk [vmem:[%s407 + $0x398] sm:$0xff] %vm2506, %v2465
          %2623 = vst.msk [vmem:[%s407 + $0x3a0] sm:$0xff] %vm2506, %v2468
          %2624 = vst.msk [vmem:[%s407 + $0x3a8] sm:$0xff] %vm2506, %v2471
          %2625 = vst.msk [vmem:[%s407 + $0x3b0] sm:$0xff] %vm2506, %v2474
          %2626 = vst.msk [vmem:[%s407 + $0x3b8] sm:$0xff] %vm2506, %v2477
          %2627 = vst.msk [vmem:[%s407 + $0x3c0] sm:$0xff] %vm2506, %v2480
          %2628 = vst.msk [vmem:[%s407 + $0x3c8] sm:$0xff] %vm2506, %v2483
          %2629 = vst.msk [vmem:[%s407 + $0x3d0] sm:$0xff] %vm2506, %v2486
          %2630 = vst.msk [vmem:[%s407 + $0x3d8] sm:$0xff] %vm2506, %v2489
          %2631 = vst.msk [vmem:[%s407 + $0x3e0] sm:$0xff] %vm2506, %v2492
          %2632 = vst.msk [vmem:[%s407 + $0x3e8] sm:$0xff] %vm2506, %v2495
          %2633 = vst.msk [vmem:[%s407 + $0x3f0] sm:$0xff] %vm2506, %v2498
          %2634 = vst.msk [vmem:[%s407 + $0x3f8] sm:$0xff] %vm2506, %v2501
        $region60: #{tpu_custom_call.1} parent=51 // pred_fallthru
          _
        %p2635 = scmp.gt.s32.totalorder %s32, 0
        // Predicated region
        $region61: #{tpu_custom_call.1} parent=51 // pred_check
          %p2636 = pneg %p2635
        $region62: #{tpu_custom_call.1} parent=51 // pred_check_branch
          %2638 = sbr.rel (%p2636) target = $region64
        $region63: #{tpu_custom_call.1} parent=51 // pred_region
          %v2639 = vld [vmem:[%s407] sm:$0xff]
          %v2640 = vld [vmem:[%s407 + $0x8] sm:$0xff]
          %v2641 = vld [vmem:[%s407 + $0x10] sm:$0xff]
          %v2642 = vld [vmem:[%s407 + $0x18] sm:$0xff]
          %v2643 = vld [vmem:[%s407 + $0x20] sm:$0xff]
          %v2644 = vld [vmem:[%s407 + $0x28] sm:$0xff]
          %v2645 = vld [vmem:[%s407 + $0x30] sm:$0xff]
          %v2646 = vld [vmem:[%s407 + $0x38] sm:$0xff]
          %v2647 = vld [vmem:[%s407 + $0x40] sm:$0xff]
          %v2648 = vld [vmem:[%s407 + $0x48] sm:$0xff]
          %v2649 = vld [vmem:[%s407 + $0x50] sm:$0xff]
          %v2650 = vld [vmem:[%s407 + $0x58] sm:$0xff]
          %v2651 = vld [vmem:[%s407 + $0x60] sm:$0xff]
          %v2652 = vld [vmem:[%s407 + $0x68] sm:$0xff]
          %v2653 = vld [vmem:[%s407 + $0x70] sm:$0xff]
          %v2654 = vld [vmem:[%s407 + $0x78] sm:$0xff]
          %v2655 = vld [vmem:[%s407 + $0x80] sm:$0xff]
          %v2656 = vld [vmem:[%s407 + $0x88] sm:$0xff]
          %v2657 = vld [vmem:[%s407 + $0x90] sm:$0xff]
          %v2658 = vld [vmem:[%s407 + $0x98] sm:$0xff]
          %v2659 = vld [vmem:[%s407 + $0xa0] sm:$0xff]
          %v2660 = vld [vmem:[%s407 + $0xa8] sm:$0xff]
          %v2661 = vld [vmem:[%s407 + $0xb0] sm:$0xff]
          %v2662 = vld [vmem:[%s407 + $0xb8] sm:$0xff]
          %v2663 = vld [vmem:[%s407 + $0xc0] sm:$0xff]
          %v2664 = vld [vmem:[%s407 + $0xc8] sm:$0xff]
          %v2665 = vld [vmem:[%s407 + $0xd0] sm:$0xff]
          %v2666 = vld [vmem:[%s407 + $0xd8] sm:$0xff]
          %v2667 = vld [vmem:[%s407 + $0xe0] sm:$0xff]
          %v2668 = vld [vmem:[%s407 + $0xe8] sm:$0xff]
          %v2669 = vld [vmem:[%s407 + $0xf0] sm:$0xff]
          %v2670 = vld [vmem:[%s407 + $0xf8] sm:$0xff]
          %v2671 = vld [vmem:[%s407 + $0x100] sm:$0xff]
          %v2672 = vld [vmem:[%s407 + $0x108] sm:$0xff]
          %v2673 = vld [vmem:[%s407 + $0x110] sm:$0xff]
          %v2674 = vld [vmem:[%s407 + $0x118] sm:$0xff]
          %v2675 = vld [vmem:[%s407 + $0x120] sm:$0xff]
          %v2676 = vld [vmem:[%s407 + $0x128] sm:$0xff]
          %v2677 = vld [vmem:[%s407 + $0x130] sm:$0xff]
          %v2678 = vld [vmem:[%s407 + $0x138] sm:$0xff]
          %v2679 = vld [vmem:[%s407 + $0x140] sm:$0xff]
          %v2680 = vld [vmem:[%s407 + $0x148] sm:$0xff]
          %v2681 = vld [vmem:[%s407 + $0x150] sm:$0xff]
          %v2682 = vld [vmem:[%s407 + $0x158] sm:$0xff]
          %v2683 = vld [vmem:[%s407 + $0x160] sm:$0xff]
          %v2684 = vld [vmem:[%s407 + $0x168] sm:$0xff]
          %v2685 = vld [vmem:[%s407 + $0x170] sm:$0xff]
          %v2686 = vld [vmem:[%s407 + $0x178] sm:$0xff]
          %v2687 = vld [vmem:[%s407 + $0x180] sm:$0xff]
          %v2688 = vld [vmem:[%s407 + $0x188] sm:$0xff]
          %v2689 = vld [vmem:[%s407 + $0x190] sm:$0xff]
          %v2690 = vld [vmem:[%s407 + $0x198] sm:$0xff]
          %v2691 = vld [vmem:[%s407 + $0x1a0] sm:$0xff]
          %v2692 = vld [vmem:[%s407 + $0x1a8] sm:$0xff]
          %v2693 = vld [vmem:[%s407 + $0x1b0] sm:$0xff]
          %v2694 = vld [vmem:[%s407 + $0x1b8] sm:$0xff]
          %v2695 = vld [vmem:[%s407 + $0x1c0] sm:$0xff]
          %v2696 = vld [vmem:[%s407 + $0x1c8] sm:$0xff]
          %v2697 = vld [vmem:[%s407 + $0x1d0] sm:$0xff]
          %v2698 = vld [vmem:[%s407 + $0x1d8] sm:$0xff]
          %v2699 = vld [vmem:[%s407 + $0x1e0] sm:$0xff]
          %v2700 = vld [vmem:[%s407 + $0x1e8] sm:$0xff]
          %v2701 = vld [vmem:[%s407 + $0x1f0] sm:$0xff]
          %v2702 = vld [vmem:[%s407 + $0x1f8] sm:$0xff]
          %v2703 = vld [vmem:[%s407 + $0x200] sm:$0xff]
          %v2704 = vld [vmem:[%s407 + $0x208] sm:$0xff]
          %v2705 = vld [vmem:[%s407 + $0x210] sm:$0xff]
          %v2706 = vld [vmem:[%s407 + $0x218] sm:$0xff]
          %v2707 = vld [vmem:[%s407 + $0x220] sm:$0xff]
          %v2708 = vld [vmem:[%s407 + $0x228] sm:$0xff]
          %v2709 = vld [vmem:[%s407 + $0x230] sm:$0xff]
          %v2710 = vld [vmem:[%s407 + $0x238] sm:$0xff]
          %v2711 = vld [vmem:[%s407 + $0x240] sm:$0xff]
          %v2712 = vld [vmem:[%s407 + $0x248] sm:$0xff]
          %v2713 = vld [vmem:[%s407 + $0x250] sm:$0xff]
          %v2714 = vld [vmem:[%s407 + $0x258] sm:$0xff]
          %v2715 = vld [vmem:[%s407 + $0x260] sm:$0xff]
          %v2716 = vld [vmem:[%s407 + $0x268] sm:$0xff]
          %v2717 = vld [vmem:[%s407 + $0x270] sm:$0xff]
          %v2718 = vld [vmem:[%s407 + $0x278] sm:$0xff]
          %v2719 = vld [vmem:[%s407 + $0x280] sm:$0xff]
          %v2720 = vld [vmem:[%s407 + $0x288] sm:$0xff]
          %v2721 = vld [vmem:[%s407 + $0x290] sm:$0xff]
          %v2722 = vld [vmem:[%s407 + $0x298] sm:$0xff]
          %v2723 = vld [vmem:[%s407 + $0x2a0] sm:$0xff]
          %v2724 = vld [vmem:[%s407 + $0x2a8] sm:$0xff]
          %v2725 = vld [vmem:[%s407 + $0x2b0] sm:$0xff]
          %v2726 = vld [vmem:[%s407 + $0x2b8] sm:$0xff]
          %v2727 = vld [vmem:[%s407 + $0x2c0] sm:$0xff]
          %v2728 = vld [vmem:[%s407 + $0x2c8] sm:$0xff]
          %v2729 = vld [vmem:[%s407 + $0x2d0] sm:$0xff]
          %v2730 = vld [vmem:[%s407 + $0x2d8] sm:$0xff]
          %v2731 = vld [vmem:[%s407 + $0x2e0] sm:$0xff]
          %v2732 = vld [vmem:[%s407 + $0x2e8] sm:$0xff]
          %v2733 = vld [vmem:[%s407 + $0x2f0] sm:$0xff]
          %v2734 = vld [vmem:[%s407 + $0x2f8] sm:$0xff]
          %v2735 = vld [vmem:[%s407 + $0x300] sm:$0xff]
          %v2736 = vld [vmem:[%s407 + $0x308] sm:$0xff]
          %v2737 = vld [vmem:[%s407 + $0x310] sm:$0xff]
          %v2738 = vld [vmem:[%s407 + $0x318] sm:$0xff]
          %v2739 = vld [vmem:[%s407 + $0x320] sm:$0xff]
          %v2740 = vld [vmem:[%s407 + $0x328] sm:$0xff]
          %v2741 = vld [vmem:[%s407 + $0x330] sm:$0xff]
          %v2742 = vld [vmem:[%s407 + $0x338] sm:$0xff]
          %v2743 = vld [vmem:[%s407 + $0x340] sm:$0xff]
          %v2744 = vld [vmem:[%s407 + $0x348] sm:$0xff]
          %v2745 = vld [vmem:[%s407 + $0x350] sm:$0xff]
          %v2746 = vld [vmem:[%s407 + $0x358] sm:$0xff]
          %v2747 = vld [vmem:[%s407 + $0x360] sm:$0xff]
          %v2748 = vld [vmem:[%s407 + $0x368] sm:$0xff]
          %v2749 = vld [vmem:[%s407 + $0x370] sm:$0xff]
          %v2750 = vld [vmem:[%s407 + $0x378] sm:$0xff]
          %v2751 = vld [vmem:[%s407 + $0x380] sm:$0xff]
          %v2752 = vld [vmem:[%s407 + $0x388] sm:$0xff]
          %v2753 = vld [vmem:[%s407 + $0x390] sm:$0xff]
          %v2754 = vld [vmem:[%s407 + $0x398] sm:$0xff]
          %v2755 = vld [vmem:[%s407 + $0x3a0] sm:$0xff]
          %v2756 = vld [vmem:[%s407 + $0x3a8] sm:$0xff]
          %v2757 = vld [vmem:[%s407 + $0x3b0] sm:$0xff]
          %v2758 = vld [vmem:[%s407 + $0x3b8] sm:$0xff]
          %v2759 = vld [vmem:[%s407 + $0x3c0] sm:$0xff]
          %v2760 = vld [vmem:[%s407 + $0x3c8] sm:$0xff]
          %v2761 = vld [vmem:[%s407 + $0x3d0] sm:$0xff]
          %v2762 = vld [vmem:[%s407 + $0x3d8] sm:$0xff]
          %v2763 = vld [vmem:[%s407 + $0x3e0] sm:$0xff]
          %v2764 = vld [vmem:[%s407 + $0x3e8] sm:$0xff]
          %v2765 = vld [vmem:[%s407 + $0x3f0] sm:$0xff]
          %v2766 = vld [vmem:[%s407 + $0x3f8] sm:$0xff]
          %v2767 = vmax.f32 %v2639, %v2120
          %v2768 = vmax.f32 %v2640, %v2123
          %v2769 = vmax.f32 %v2641, %v2126
          %v2770 = vmax.f32 %v2642, %v2129
          %v2771 = vmax.f32 %v2643, %v2132
          %v2772 = vmax.f32 %v2644, %v2135
          %v2773 = vmax.f32 %v2645, %v2138
          %v2774 = vmax.f32 %v2646, %v2141
          %v2775 = vmax.f32 %v2647, %v2144
          %v2776 = vmax.f32 %v2648, %v2147
          %v2777 = vmax.f32 %v2649, %v2150
          %v2778 = vmax.f32 %v2650, %v2153
          %v2779 = vmax.f32 %v2651, %v2156
          %v2780 = vmax.f32 %v2652, %v2159
          %v2781 = vmax.f32 %v2653, %v2162
          %v2782 = vmax.f32 %v2654, %v2165
          %v2783 = vmax.f32 %v2655, %v2168
          %v2784 = vmax.f32 %v2656, %v2171
          %v2785 = vmax.f32 %v2657, %v2174
          %v2786 = vmax.f32 %v2658, %v2177
          %v2787 = vmax.f32 %v2659, %v2180
          %v2788 = vmax.f32 %v2660, %v2183
          %v2789 = vmax.f32 %v2661, %v2186
          %v2790 = vmax.f32 %v2662, %v2189
          %v2791 = vmax.f32 %v2663, %v2192
          %v2792 = vmax.f32 %v2664, %v2195
          %v2793 = vmax.f32 %v2665, %v2198
          %v2794 = vmax.f32 %v2666, %v2201
          %v2795 = vmax.f32 %v2667, %v2204
          %v2796 = vmax.f32 %v2668, %v2207
          %v2797 = vmax.f32 %v2669, %v2210
          %v2798 = vmax.f32 %v2670, %v2213
          %v2799 = vmax.f32 %v2671, %v2216
          %v2800 = vmax.f32 %v2672, %v2219
          %v2801 = vmax.f32 %v2673, %v2222
          %v2802 = vmax.f32 %v2674, %v2225
          %v2803 = vmax.f32 %v2675, %v2228
          %v2804 = vmax.f32 %v2676, %v2231
          %v2805 = vmax.f32 %v2677, %v2234
          %v2806 = vmax.f32 %v2678, %v2237
          %v2807 = vmax.f32 %v2679, %v2240
          %v2808 = vmax.f32 %v2680, %v2243
          %v2809 = vmax.f32 %v2681, %v2246
          %v2810 = vmax.f32 %v2682, %v2249
          %v2811 = vmax.f32 %v2683, %v2252
          %v2812 = vmax.f32 %v2684, %v2255
          %v2813 = vmax.f32 %v2685, %v2258
          %v2814 = vmax.f32 %v2686, %v2261
          %v2815 = vmax.f32 %v2687, %v2264
          %v2816 = vmax.f32 %v2688, %v2267
          %v2817 = vmax.f32 %v2689, %v2270
          %v2818 = vmax.f32 %v2690, %v2273
          %v2819 = vmax.f32 %v2691, %v2276
          %v2820 = vmax.f32 %v2692, %v2279
          %v2821 = vmax.f32 %v2693, %v2282
          %v2822 = vmax.f32 %v2694, %v2285
          %v2823 = vmax.f32 %v2695, %v2288
          %v2824 = vmax.f32 %v2696, %v2291
          %v2825 = vmax.f32 %v2697, %v2294
          %v2826 = vmax.f32 %v2698, %v2297
          %v2827 = vmax.f32 %v2699, %v2300
          %v2828 = vmax.f32 %v2700, %v2303
          %v2829 = vmax.f32 %v2701, %v2306
          %v2830 = vmax.f32 %v2702, %v2309
          %v2831 = vmax.f32 %v2703, %v2312
          %v2832 = vmax.f32 %v2704, %v2315
          %v2833 = vmax.f32 %v2705, %v2318
          %v2834 = vmax.f32 %v2706, %v2321
          %v2835 = vmax.f32 %v2707, %v2324
          %v2836 = vmax.f32 %v2708, %v2327
          %v2837 = vmax.f32 %v2709, %v2330
          %v2838 = vmax.f32 %v2710, %v2333
          %v2839 = vmax.f32 %v2711, %v2336
          %v2840 = vmax.f32 %v2712, %v2339
          %v2841 = vmax.f32 %v2713, %v2342
          %v2842 = vmax.f32 %v2714, %v2345
          %v2843 = vmax.f32 %v2715, %v2348
          %v2844 = vmax.f32 %v2716, %v2351
          %v2845 = vmax.f32 %v2717, %v2354
          %v2846 = vmax.f32 %v2718, %v2357
          %v2847 = vmax.f32 %v2719, %v2360
          %v2848 = vmax.f32 %v2720, %v2363
          %v2849 = vmax.f32 %v2721, %v2366
          %v2850 = vmax.f32 %v2722, %v2369
          %v2851 = vmax.f32 %v2723, %v2372
          %v2852 = vmax.f32 %v2724, %v2375
          %v2853 = vmax.f32 %v2725, %v2378
          %v2854 = vmax.f32 %v2726, %v2381
          %v2855 = vmax.f32 %v2727, %v2384
          %v2856 = vmax.f32 %v2728, %v2387
          %v2857 = vmax.f32 %v2729, %v2390
          %v2858 = vmax.f32 %v2730, %v2393
          %v2859 = vmax.f32 %v2731, %v2396
          %v2860 = vmax.f32 %v2732, %v2399
          %v2861 = vmax.f32 %v2733, %v2402
          %v2862 = vmax.f32 %v2734, %v2405
          %v2863 = vmax.f32 %v2735, %v2408
          %v2864 = vmax.f32 %v2736, %v2411
          %v2865 = vmax.f32 %v2737, %v2414
          %v2866 = vmax.f32 %v2738, %v2417
          %v2867 = vmax.f32 %v2739, %v2420
          %v2868 = vmax.f32 %v2740, %v2423
          %v2869 = vmax.f32 %v2741, %v2426
          %v2870 = vmax.f32 %v2742, %v2429
          %v2871 = vmax.f32 %v2743, %v2432
          %v2872 = vmax.f32 %v2744, %v2435
          %v2873 = vmax.f32 %v2745, %v2438
          %v2874 = vmax.f32 %v2746, %v2441
          %v2875 = vmax.f32 %v2747, %v2444
          %v2876 = vmax.f32 %v2748, %v2447
          %v2877 = vmax.f32 %v2749, %v2450
          %v2878 = vmax.f32 %v2750, %v2453
          %v2879 = vmax.f32 %v2751, %v2456
          %v2880 = vmax.f32 %v2752, %v2459
          %v2881 = vmax.f32 %v2753, %v2462
          %v2882 = vmax.f32 %v2754, %v2465
          %v2883 = vmax.f32 %v2755, %v2468
          %v2884 = vmax.f32 %v2756, %v2471
          %v2885 = vmax.f32 %v2757, %v2474
          %v2886 = vmax.f32 %v2758, %v2477
          %v2887 = vmax.f32 %v2759, %v2480
          %v2888 = vmax.f32 %v2760, %v2483
          %v2889 = vmax.f32 %v2761, %v2486
          %v2890 = vmax.f32 %v2762, %v2489
          %v2891 = vmax.f32 %v2763, %v2492
          %v2892 = vmax.f32 %v2764, %v2495
          %v2893 = vmax.f32 %v2765, %v2498
          %v2894 = vmax.f32 %v2766, %v2501
          %vm2895 = vcmask 7168
          %2896 = vst.msk [vmem:[%s407] sm:$0xff] %vm2895, %v2767
          %2897 = vst.msk [vmem:[%s407 + $0x8] sm:$0xff] %vm2895, %v2768
          %2898 = vst.msk [vmem:[%s407 + $0x10] sm:$0xff] %vm2895, %v2769
          %2899 = vst.msk [vmem:[%s407 + $0x18] sm:$0xff] %vm2895, %v2770
          %2900 = vst.msk [vmem:[%s407 + $0x20] sm:$0xff] %vm2895, %v2771
          %2901 = vst.msk [vmem:[%s407 + $0x28] sm:$0xff] %vm2895, %v2772
          %2902 = vst.msk [vmem:[%s407 + $0x30] sm:$0xff] %vm2895, %v2773
          %2903 = vst.msk [vmem:[%s407 + $0x38] sm:$0xff] %vm2895, %v2774
          %2904 = vst.msk [vmem:[%s407 + $0x40] sm:$0xff] %vm2895, %v2775
          %2905 = vst.msk [vmem:[%s407 + $0x48] sm:$0xff] %vm2895, %v2776
          %2906 = vst.msk [vmem:[%s407 + $0x50] sm:$0xff] %vm2895, %v2777
          %2907 = vst.msk [vmem:[%s407 + $0x58] sm:$0xff] %vm2895, %v2778
          %2908 = vst.msk [vmem:[%s407 + $0x60] sm:$0xff] %vm2895, %v2779
          %2909 = vst.msk [vmem:[%s407 + $0x68] sm:$0xff] %vm2895, %v2780
          %2910 = vst.msk [vmem:[%s407 + $0x70] sm:$0xff] %vm2895, %v2781
          %2911 = vst.msk [vmem:[%s407 + $0x78] sm:$0xff] %vm2895, %v2782
          %2912 = vst.msk [vmem:[%s407 + $0x80] sm:$0xff] %vm2895, %v2783
          %2913 = vst.msk [vmem:[%s407 + $0x88] sm:$0xff] %vm2895, %v2784
          %2914 = vst.msk [vmem:[%s407 + $0x90] sm:$0xff] %vm2895, %v2785
          %2915 = vst.msk [vmem:[%s407 + $0x98] sm:$0xff] %vm2895, %v2786
          %2916 = vst.msk [vmem:[%s407 + $0xa0] sm:$0xff] %vm2895, %v2787
          %2917 = vst.msk [vmem:[%s407 + $0xa8] sm:$0xff] %vm2895, %v2788
          %2918 = vst.msk [vmem:[%s407 + $0xb0] sm:$0xff] %vm2895, %v2789
          %2919 = vst.msk [vmem:[%s407 + $0xb8] sm:$0xff] %vm2895, %v2790
          %2920 = vst.msk [vmem:[%s407 + $0xc0] sm:$0xff] %vm2895, %v2791
          %2921 = vst.msk [vmem:[%s407 + $0xc8] sm:$0xff] %vm2895, %v2792
          %2922 = vst.msk [vmem:[%s407 + $0xd0] sm:$0xff] %vm2895, %v2793
          %2923 = vst.msk [vmem:[%s407 + $0xd8] sm:$0xff] %vm2895, %v2794
          %2924 = vst.msk [vmem:[%s407 + $0xe0] sm:$0xff] %vm2895, %v2795
          %2925 = vst.msk [vmem:[%s407 + $0xe8] sm:$0xff] %vm2895, %v2796
          %2926 = vst.msk [vmem:[%s407 + $0xf0] sm:$0xff] %vm2895, %v2797
          %2927 = vst.msk [vmem:[%s407 + $0xf8] sm:$0xff] %vm2895, %v2798
          %2928 = vst.msk [vmem:[%s407 + $0x100] sm:$0xff] %vm2895, %v2799
          %2929 = vst.msk [vmem:[%s407 + $0x108] sm:$0xff] %vm2895, %v2800
          %2930 = vst.msk [vmem:[%s407 + $0x110] sm:$0xff] %vm2895, %v2801
          %2931 = vst.msk [vmem:[%s407 + $0x118] sm:$0xff] %vm2895, %v2802
          %2932 = vst.msk [vmem:[%s407 + $0x120] sm:$0xff] %vm2895, %v2803
          %2933 = vst.msk [vmem:[%s407 + $0x128] sm:$0xff] %vm2895, %v2804
          %2934 = vst.msk [vmem:[%s407 + $0x130] sm:$0xff] %vm2895, %v2805
          %2935 = vst.msk [vmem:[%s407 + $0x138] sm:$0xff] %vm2895, %v2806
          %2936 = vst.msk [vmem:[%s407 + $0x140] sm:$0xff] %vm2895, %v2807
          %2937 = vst.msk [vmem:[%s407 + $0x148] sm:$0xff] %vm2895, %v2808
          %2938 = vst.msk [vmem:[%s407 + $0x150] sm:$0xff] %vm2895, %v2809
          %2939 = vst.msk [vmem:[%s407 + $0x158] sm:$0xff] %vm2895, %v2810
          %2940 = vst.msk [vmem:[%s407 + $0x160] sm:$0xff] %vm2895, %v2811
          %2941 = vst.msk [vmem:[%s407 + $0x168] sm:$0xff] %vm2895, %v2812
          %2942 = vst.msk [vmem:[%s407 + $0x170] sm:$0xff] %vm2895, %v2813
          %2943 = vst.msk [vmem:[%s407 + $0x178] sm:$0xff] %vm2895, %v2814
          %2944 = vst.msk [vmem:[%s407 + $0x180] sm:$0xff] %vm2895, %v2815
          %2945 = vst.msk [vmem:[%s407 + $0x188] sm:$0xff] %vm2895, %v2816
          %2946 = vst.msk [vmem:[%s407 + $0x190] sm:$0xff] %vm2895, %v2817
          %2947 = vst.msk [vmem:[%s407 + $0x198] sm:$0xff] %vm2895, %v2818
          %2948 = vst.msk [vmem:[%s407 + $0x1a0] sm:$0xff] %vm2895, %v2819
          %2949 = vst.msk [vmem:[%s407 + $0x1a8] sm:$0xff] %vm2895, %v2820
          %2950 = vst.msk [vmem:[%s407 + $0x1b0] sm:$0xff] %vm2895, %v2821
          %2951 = vst.msk [vmem:[%s407 + $0x1b8] sm:$0xff] %vm2895, %v2822
          %2952 = vst.msk [vmem:[%s407 + $0x1c0] sm:$0xff] %vm2895, %v2823
          %2953 = vst.msk [vmem:[%s407 + $0x1c8] sm:$0xff] %vm2895, %v2824
          %2954 = vst.msk [vmem:[%s407 + $0x1d0] sm:$0xff] %vm2895, %v2825
          %2955 = vst.msk [vmem:[%s407 + $0x1d8] sm:$0xff] %vm2895, %v2826
          %2956 = vst.msk [vmem:[%s407 + $0x1e0] sm:$0xff] %vm2895, %v2827
          %2957 = vst.msk [vmem:[%s407 + $0x1e8] sm:$0xff] %vm2895, %v2828
          %2958 = vst.msk [vmem:[%s407 + $0x1f0] sm:$0xff] %vm2895, %v2829
          %2959 = vst.msk [vmem:[%s407 + $0x1f8] sm:$0xff] %vm2895, %v2830
          %2960 = vst.msk [vmem:[%s407 + $0x200] sm:$0xff] %vm2895, %v2831
          %2961 = vst.msk [vmem:[%s407 + $0x208] sm:$0xff] %vm2895, %v2832
          %2962 = vst.msk [vmem:[%s407 + $0x210] sm:$0xff] %vm2895, %v2833
          %2963 = vst.msk [vmem:[%s407 + $0x218] sm:$0xff] %vm2895, %v2834
          %2964 = vst.msk [vmem:[%s407 + $0x220] sm:$0xff] %vm2895, %v2835
          %2965 = vst.msk [vmem:[%s407 + $0x228] sm:$0xff] %vm2895, %v2836
          %2966 = vst.msk [vmem:[%s407 + $0x230] sm:$0xff] %vm2895, %v2837
          %2967 = vst.msk [vmem:[%s407 + $0x238] sm:$0xff] %vm2895, %v2838
          %2968 = vst.msk [vmem:[%s407 + $0x240] sm:$0xff] %vm2895, %v2839
          %2969 = vst.msk [vmem:[%s407 + $0x248] sm:$0xff] %vm2895, %v2840
          %2970 = vst.msk [vmem:[%s407 + $0x250] sm:$0xff] %vm2895, %v2841
          %2971 = vst.msk [vmem:[%s407 + $0x258] sm:$0xff] %vm2895, %v2842
          %2972 = vst.msk [vmem:[%s407 + $0x260] sm:$0xff] %vm2895, %v2843
          %2973 = vst.msk [vmem:[%s407 + $0x268] sm:$0xff] %vm2895, %v2844
          %2974 = vst.msk [vmem:[%s407 + $0x270] sm:$0xff] %vm2895, %v2845
          %2975 = vst.msk [vmem:[%s407 + $0x278] sm:$0xff] %vm2895, %v2846
          %2976 = vst.msk [vmem:[%s407 + $0x280] sm:$0xff] %vm2895, %v2847
          %2977 = vst.msk [vmem:[%s407 + $0x288] sm:$0xff] %vm2895, %v2848
          %2978 = vst.msk [vmem:[%s407 + $0x290] sm:$0xff] %vm2895, %v2849
          %2979 = vst.msk [vmem:[%s407 + $0x298] sm:$0xff] %vm2895, %v2850
          %2980 = vst.msk [vmem:[%s407 + $0x2a0] sm:$0xff] %vm2895, %v2851
          %2981 = vst.msk [vmem:[%s407 + $0x2a8] sm:$0xff] %vm2895, %v2852
          %2982 = vst.msk [vmem:[%s407 + $0x2b0] sm:$0xff] %vm2895, %v2853
          %2983 = vst.msk [vmem:[%s407 + $0x2b8] sm:$0xff] %vm2895, %v2854
          %2984 = vst.msk [vmem:[%s407 + $0x2c0] sm:$0xff] %vm2895, %v2855
          %2985 = vst.msk [vmem:[%s407 + $0x2c8] sm:$0xff] %vm2895, %v2856
          %2986 = vst.msk [vmem:[%s407 + $0x2d0] sm:$0xff] %vm2895, %v2857
          %2987 = vst.msk [vmem:[%s407 + $0x2d8] sm:$0xff] %vm2895, %v2858
          %2988 = vst.msk [vmem:[%s407 + $0x2e0] sm:$0xff] %vm2895, %v2859
          %2989 = vst.msk [vmem:[%s407 + $0x2e8] sm:$0xff] %vm2895, %v2860
          %2990 = vst.msk [vmem:[%s407 + $0x2f0] sm:$0xff] %vm2895, %v2861
          %2991 = vst.msk [vmem:[%s407 + $0x2f8] sm:$0xff] %vm2895, %v2862
          %2992 = vst.msk [vmem:[%s407 + $0x300] sm:$0xff] %vm2895, %v2863
          %2993 = vst.msk [vmem:[%s407 + $0x308] sm:$0xff] %vm2895, %v2864
          %2994 = vst.msk [vmem:[%s407 + $0x310] sm:$0xff] %vm2895, %v2865
          %2995 = vst.msk [vmem:[%s407 + $0x318] sm:$0xff] %vm2895, %v2866
          %2996 = vst.msk [vmem:[%s407 + $0x320] sm:$0xff] %vm2895, %v2867
          %2997 = vst.msk [vmem:[%s407 + $0x328] sm:$0xff] %vm2895, %v2868
          %2998 = vst.msk [vmem:[%s407 + $0x330] sm:$0xff] %vm2895, %v2869
          %2999 = vst.msk [vmem:[%s407 + $0x338] sm:$0xff] %vm2895, %v2870
          %3000 = vst.msk [vmem:[%s407 + $0x340] sm:$0xff] %vm2895, %v2871
          %3001 = vst.msk [vmem:[%s407 + $0x348] sm:$0xff] %vm2895, %v2872
          %3002 = vst.msk [vmem:[%s407 + $0x350] sm:$0xff] %vm2895, %v2873
          %3003 = vst.msk [vmem:[%s407 + $0x358] sm:$0xff] %vm2895, %v2874
          %3004 = vst.msk [vmem:[%s407 + $0x360] sm:$0xff] %vm2895, %v2875
          %3005 = vst.msk [vmem:[%s407 + $0x368] sm:$0xff] %vm2895, %v2876
          %3006 = vst.msk [vmem:[%s407 + $0x370] sm:$0xff] %vm2895, %v2877
          %3007 = vst.msk [vmem:[%s407 + $0x378] sm:$0xff] %vm2895, %v2878
          %3008 = vst.msk [vmem:[%s407 + $0x380] sm:$0xff] %vm2895, %v2879
          %3009 = vst.msk [vmem:[%s407 + $0x388] sm:$0xff] %vm2895, %v2880
          %3010 = vst.msk [vmem:[%s407 + $0x390] sm:$0xff] %vm2895, %v2881
          %3011 = vst.msk [vmem:[%s407 + $0x398] sm:$0xff] %vm2895, %v2882
          %3012 = vst.msk [vmem:[%s407 + $0x3a0] sm:$0xff] %vm2895, %v2883
          %3013 = vst.msk [vmem:[%s407 + $0x3a8] sm:$0xff] %vm2895, %v2884
          %3014 = vst.msk [vmem:[%s407 + $0x3b0] sm:$0xff] %vm2895, %v2885
          %3015 = vst.msk [vmem:[%s407 + $0x3b8] sm:$0xff] %vm2895, %v2886
          %3016 = vst.msk [vmem:[%s407 + $0x3c0] sm:$0xff] %vm2895, %v2887
          %3017 = vst.msk [vmem:[%s407 + $0x3c8] sm:$0xff] %vm2895, %v2888
          %3018 = vst.msk [vmem:[%s407 + $0x3d0] sm:$0xff] %vm2895, %v2889
          %3019 = vst.msk [vmem:[%s407 + $0x3d8] sm:$0xff] %vm2895, %v2890
          %3020 = vst.msk [vmem:[%s407 + $0x3e0] sm:$0xff] %vm2895, %v2891
          %3021 = vst.msk [vmem:[%s407 + $0x3e8] sm:$0xff] %vm2895, %v2892
          %3022 = vst.msk [vmem:[%s407 + $0x3f0] sm:$0xff] %vm2895, %v2893
          %3023 = vst.msk [vmem:[%s407 + $0x3f8] sm:$0xff] %vm2895, %v2894
        $region64: #{tpu_custom_call.1} parent=51 // pred_fallthru
          _
        %s3024 = sand.u32 %s233, 1
        %s3025 = scalar_lea.sflag [#allocation4], %s3024
        %s3026 = sand.u32 %s233, 1
        %s3027 = smul.addr %s3026, 64
        %s3028 = scalar_lea.vmem [#allocation5], %s3027
        %p3029 = scmp.lt.s32.totalorder %s30, 1
        %s3030 = scalar_select %p3029, %s30, 1
        %p3031 = scmp.lt.s32.totalorder %s31, 0
        %s3032 = scalar_select %p3031, %s31, 0
        %s3033 = smul.addr %s3032, 128
        %s3034 = smul.addr %s3030, 128
        %s3035 = sadd.s32 %s3033, %s3034
        %s3036 = smul.addr %s3035, 8
        %s3037 = scalar_lea.vmem %s9, %s3036
        // Predicated region
        $region65: #{tpu_custom_call.1} parent=51 // pred_check
          %p3038 = pneg %p243
        $region66: #{tpu_custom_call.1} parent=51 // pred_check_branch
          %3040 = sbr.rel (%p3038) target = $region68
        $region67: #{tpu_custom_call.1} parent=51 // pred_region
          %s3041 = sadd.s32 %s31, %s32
          %s3043 = ssub.s32 1024, 1024
          %3044 = vsyncadd %s3025, %s3043
          %s3045 = smul.addr %s30, 8
          %s3046 = sadd.s32 %s3041, %s3045
          %s3047 = smul.addr %s3046, 128
          %s3048 = scalar_lea.hbm %s8, %s3047
          %s3049 = sshll.u32 %s3028, 4
          %s3050 = int_to_ptr.vmem [resolvable:$true] %s3049
          %3055 = dma.vmem_to_hbm [thread:$0]  %s3050, 1024, %s3048, %s3025, 128, 128, 8
        $region68: #{tpu_custom_call.1} parent=51 // pred_fallthru
          _
        // Predicated region
        $region69: #{tpu_custom_call.1} parent=51 // pred_check
          %p3056 = pneg %p271
        $region70: #{tpu_custom_call.1} parent=51 // pred_check_branch
          %3058 = sbr.rel (%p3056) target = $region72
        $region71: #{tpu_custom_call.1} parent=51 // pred_region
          _
        $region72: #{tpu_custom_call.1} parent=51 // pred_fallthru
          _
      $region52: #{tpu_custom_call.1} parent=5 // pred_fallthru
        _
      %p3059 = scmp.le.s32.totalorder 2, %s20
      // Predicated region
      $region73: #{tpu_custom_call.1} parent=5 // pred_check
        %p3060 = pneg %p3059
      $region74: #{tpu_custom_call.1} parent=5 // pred_check_branch
        %3062 = sbr.rel (%p3060) target = $region76
      $region75: #{tpu_custom_call.1} parent=5 // pred_region
        %s3063 = ssub.s32 %s20, 2
        // Predicated region
        $region77: #{tpu_custom_call.1} parent=75 // pred_check
          %p3064 = pneg %p249
        $region78: #{tpu_custom_call.1} parent=75 // pred_check_branch
          %3066 = sbr.rel (%p3064) target = $region80
        $region79: #{tpu_custom_call.1} parent=75 // pred_region
          %s3067 = sand.u32 %s234, 1
          %s3068 = scalar_lea.sflag [#allocation4], %s3067
          %s3069 = sand.u32 %s234, 1
          %s3070 = smul.addr %s3069, 64
          %s3071 = scalar_lea.vmem [#allocation5], %s3070
          %3072 = dma.done %s3068, 1024
        $region80: #{tpu_custom_call.1} parent=75 // pred_fallthru
          _
        // Predicated region
        $region81: #{tpu_custom_call.1} parent=75 // pred_check
          %p3073 = pneg %p277
        $region82: #{tpu_custom_call.1} parent=75 // pred_check_branch
          %3075 = sbr.rel (%p3073) target = $region84
        $region83: #{tpu_custom_call.1} parent=75 // pred_region
          %p3076 = scmp.lt.s32.totalorder %s33, 1
          %s3077 = scalar_select %p3076, %s33, 1
          %p3078 = scmp.lt.s32.totalorder %s34, 0
          %s3079 = scalar_select %p3078, %s34, 0
          %s3080 = smul.addr %s3079, 128
          %s3081 = smul.addr %s3077, 128
          %s3082 = sadd.s32 %s3080, %s3081
          %s3083 = smul.addr %s3082, 8
          %s3084 = scalar_lea.vmem %s9, %s3083
        $region84: #{tpu_custom_call.1} parent=75 // pred_fallthru
          _
      $region76: #{tpu_custom_call.1} parent=5 // pred_fallthru
        _
    $region6: #{tpu_custom_call.1} parent=1 // loop_footer
      %s24 = sadd.s32 1, %s20
    $region7: #{tpu_custom_call.1} parent=1 // loop_footer_branch
      %19 = sbr.rel target = $region3
    $region8: #{tpu_custom_call.1} parent=1 // loop_exit
      _
    %3085 = vsyncpa [#allocation3], 1
    %s3086 = scalar_lea.sflag [#allocation3], 1
    %3087 = vsyncpa %s3086, 1
    %3088 = vsyncpa [#allocation4], 1
    %s3089 = scalar_lea.sflag [#allocation4], 1
    %3090 = vsyncpa %s3089, 1

</llo_original>
